<compile_context>
chip_gen: v7x
topology: tpu7x:2x2x1
jax: 0.10.0
libtpu: 0.0.40
codegen_flags: <defaults>
</compile_context>

<pallas_src>
import jax
import jax.numpy as jnp
from jax import lax
from jax.experimental import pallas as pl
from jax.experimental.pallas import tpu as pltpu

HIDDEN = 32   # LSTMAgentBase hidden_size
LANES = 128


def _pad8(n):
    return ((n + 7) // 8) * 8


def _weight_layout(obs_space, batch):
    """Static row layout of the packed (rows, 128) parameter blob."""
    H = HIDDEN
    segs = (
        ("w1", _pad8(obs_space)),   # Linear(obs,64) weight (in,out), lanes [0:64]
        ("b1", 8),                  # its bias, row 0, lanes [0:64]
        ("w2", 64),                 # Linear(64,32) weight, lanes [0:32]
        ("b2", 8),                  # its bias, row 0, lanes [0:32]
        ("wih", H),                 # LSTM W_ih -> (H, 4H), lanes [0:128]
        ("whh", H),                 # LSTM W_hh -> (H, 4H), lanes [0:128]
        ("wo_h", H),                # [Wpi_h | wc_h^T] -> (H, A+1)
        ("wo_g", H),                # [Wpi_g | wc_g^T] -> (H, A+1)
        ("misc", 8),                # row 0: wc_a (nn lanes), then critic bias at lane nn
        ("h0c0", _pad8(batch)),     # initial [hx | cx] (B, 2H)
    )
    offs, r = {}, 0
    for name, rows in segs:
        offs[name] = r
        r += rows
    return offs, r


def pack_params(p, h0, c0, obs_space, nn_, action_space, batch):
    """Pack parameters + initial LSTM state into one lane-dense (rows, 128) f32 blob."""
    offs, rows = _weight_layout(obs_space, batch)
    blob = jnp.zeros((rows, LANES), jnp.float32)

    def put(b, name, arr):
        r = offs[name]
        return b.at[r:r + arr.shape[0], :arr.shape[1]].set(arr.astype(jnp.float32))

    blob = put(blob, "w1", p["w1"])
    blob = put(blob, "b1", p["b1"])
    blob = put(blob, "w2", p["w2"])
    blob = put(blob, "b2", p["b2"])
    blob = put(blob, "wih", p["wih"])
    blob = put(blob, "whh", p["whh"])
    # head weight: columns [0:A] = pi, column A = critic's hx / global_thought weights
    blob = put(blob, "wo_h", jnp.concatenate([p["wpi_h"], p["wc_h"].T], axis=1))
    blob = put(blob, "wo_g", jnp.concatenate([p["wpi_g"], p["wc_g"].T], axis=1))
    misc = jnp.zeros((1, LANES), jnp.float32)
    misc = misc.at[0, :nn_].set(p["wc_a"][0])
    misc = misc.at[0, nn_].set(p["bc"][0, 0])
    blob = put(blob, "misc", misc)
    blob = put(blob, "h0c0", jnp.concatenate([h0, c0], axis=1))
    return blob, offs


def _make_kernel(offs, obs_space, nn_, action_space, batch, t_tile, mm_dtype):
    H, A, B, TT = HIDDEN, action_space, batch, t_tile
    o_w1, o_b1, o_w2, o_b2 = offs["w1"], offs["b1"], offs["w2"], offs["b2"]
    o_wih, o_whh = offs["wih"], offs["whh"]
    o_woh, o_wog = offs["wo_h"], offs["wo_g"]
    o_misc, o_h0 = offs["misc"], offs["h0c0"]
    M = TT * B
    pad_lanes = LANES - (2 * H + A + 1)

    def kernel(w_ref, obs_ref, g_ref, na_ref, o_ref, hx_s, cx_s, x2_s, h_s, c_s):
        f32 = jnp.float32

        # Load initial LSTM state into the carried scratch on the first time tile.
        @pl.when(pl.program_id(0) == 0)
        def _():
            hx_s[...] = w_ref[o_h0:o_h0 + B, 0:H]
            cx_s[...] = w_ref[o_h0:o_h0 + B, H:2 * H]

        # ===== batched (M = TT*B) non-recurrent pre-pass: x_layer =====
        obs = obs_ref[...].reshape(M, obs_space).astype(mm_dtype)
        w1 = w_ref[o_w1:o_w1 + obs_space, 0:64].astype(mm_dtype)
        b1 = w_ref[o_b1:o_b1 + 1, 0:64]
        w2 = w_ref[o_w2:o_w2 + 64, 0:H].astype(mm_dtype)
        b2 = w_ref[o_b2:o_b2 + 1, 0:H]
        x1 = jnp.maximum(jnp.dot(obs, w1, preferred_element_type=f32) + b1, 0.0)
        x2 = jnp.maximum(jnp.dot(x1.astype(mm_dtype), w2,
                                 preferred_element_type=f32) + b2, 0.0)
        x2_s[...] = x2.reshape(TT, B, H)

        # Recurrent weights: cast once, reused every step (hoisted off the serial path).
        wih = w_ref[o_wih:o_wih + H, 0:4 * H].astype(mm_dtype)
        whh = w_ref[o_whh:o_whh + H, 0:4 * H].astype(mm_dtype)

        # ===== serial recurrence: only the LSTM cell on the critical path =====
        def step(t, carry):
            hx = hx_s[...]
            cx = cx_s[...]
            # Two accumulated matmuls -> no lane concat inside the loop.
            gates = (jnp.dot(x2_s[t].astype(mm_dtype), wih, preferred_element_type=f32)
                     + jnp.dot(hx.astype(mm_dtype), whh, preferred_element_type=f32))
            # Full 128-lane EUP passes over the i,f,g,o gates; lanes whose results are
            # discarded cost nothing extra (vreg-wide op either way).
            sg = jax.nn.sigmoid(gates)
            th = jnp.tanh(gates)
            c_new = sg[:, H:2 * H] * cx + sg[:, 0:H] * th[:, 2 * H:3 * H]
            h_new = sg[:, 3 * H:4 * H] * jnp.tanh(c_new)
            hx_s[...] = h_new
            cx_s[...] = c_new
            h_s[t] = h_new
            c_s[t] = c_new
            return carry

        lax.fori_loop(0, TT, step, 0, unroll=(TT <= 16))

        # ===== batched non-recurrent post-pass: pi + critic head + output assembly =====
        h_all = h_s[...].reshape(M, H)
        c_all = c_s[...].reshape(M, H)
        g_all = g_ref[...].reshape(M, H)
        na_all = na_ref[...].reshape(M, nn_)
        wo_h = w_ref[o_woh:o_woh + H, 0:A + 1].astype(mm_dtype)
        wo_g = w_ref[o_wog:o_wog + H, 0:A + 1].astype(mm_dtype)
        mm = (jnp.dot(h_all.astype(mm_dtype), wo_h, preferred_element_type=f32)
              + jnp.dot(g_all.astype(mm_dtype), wo_g, preferred_element_type=f32))
        misc = w_ref[o_misc:o_misc + 1, :]
        wca = misc[:, 0:nn_]
        bc = misc[:, nn_:nn_ + 1]
        pi = mm[:, 0:A]
        v = mm[:, A:A + 1] + jnp.sum(na_all * wca, axis=1, keepdims=True) + bc

        # Single lane-dense (TT, B, 128) store: [h | c | pi | v | pad] per step.
        pad = jnp.zeros((M, pad_lanes), f32)
        o_ref[...] = jnp.concatenate([h_all, c_all, pi, v, pad],
                                     axis=-1).reshape(TT, B, LANES)

    return kernel


def siha_rollout(obs_seq, global_thought_seq, neighbours_action_seq,
                 h0, c0, params, action_space,
                 matmul_dtype=jnp.bfloat16, max_time_tile=128):
    """Run T fused SIHAAgent steps (get_thought + forward + critic) in one kernel.

    Returns (h_seq, c_seq, pi_seq, v_seq), each with leading dims (T, B, ...).
    """
    T, B, obs_space = obs_seq.shape
    nn_ = neighbours_action_seq.shape[-1]
    H = HIDDEN
    A = action_space
    assert 2 * H + A + 1 <= LANES, "packed output row must fit in 128 lanes"

    # Pad batch to a sublane multiple (8) so in-kernel (TT,B,.)->(TT*B,.) reshapes are
    # layout no-ops; pad time to a multiple of the time tile.
    Bp = _pad8(B)
    if Bp != B:
        pb = ((0, 0), (0, Bp - B), (0, 0))
        obs_seq = jnp.pad(obs_seq, pb)
        global_thought_seq = jnp.pad(global_thought_seq, pb)
        neighbours_action_seq = jnp.pad(neighbours_action_seq, pb)
        h0 = jnp.pad(h0, ((0, Bp - B), (0, 0)))
        c0 = jnp.pad(c0, ((0, Bp - B), (0, 0)))

    # Time tile: capped so the (double-buffered) streamed blocks stay small even for
    # long rollouts (fits comfortably within v7x's 32 MiB scoped VMEM default).
    TT = min(T, max_time_tile)
    Tp = ((T + TT - 1) // TT) * TT
    if Tp != T:
        pt = ((0, Tp - T), (0, 0), (0, 0))
        obs_seq = jnp.pad(obs_seq, pt)
        global_thought_seq = jnp.pad(global_thought_seq, pt)
        neighbours_action_seq = jnp.pad(neighbours_action_seq, pt)

    w_blob, offs = pack_params(params, h0, c0, obs_space, nn_, A, Bp)
    kernel = _make_kernel(offs, obs_space, nn_, A, Bp, TT, matmul_dtype)

    flops = 2 * Tp * Bp * (obs_space * 64 + 64 * H + 2 * H * 4 * H
                           + 2 * H * (A + 1) + nn_)
    transcendentals = Tp * Bp * (2 * 4 * H + H)
    bytes_accessed = 4 * (w_blob.size + obs_seq.size + global_thought_seq.size
                          + neighbours_action_seq.size + Tp * Bp * LANES)

    out = pl.pallas_call(
        kernel,
        out_shape=jax.ShapeDtypeStruct((Tp, Bp, LANES), jnp.float32),
        grid_spec=pltpu.PrefetchScalarGridSpec(
            num_scalar_prefetch=0,
            grid=(Tp // TT,),
            in_specs=[
                # weights + init state: constant block index -> DMA'd once, resident
                pl.BlockSpec(w_blob.shape, lambda i: (0, 0)),
                # per-tile streamed inputs (one time tile per grid step)
                pl.BlockSpec((TT, Bp, obs_space), lambda i: (i, 0, 0)),
                pl.BlockSpec((TT, Bp, H), lambda i: (i, 0, 0)),
                pl.BlockSpec((TT, Bp, nn_), lambda i: (i, 0, 0)),
            ],
            out_specs=pl.BlockSpec((TT, Bp, LANES), lambda i: (i, 0, 0)),
            scratch_shapes=[pltpu.VMEM((Bp, H), jnp.float32),       # hx carry
                            pltpu.VMEM((Bp, H), jnp.float32),       # cx carry
                            pltpu.VMEM((TT, Bp, H), jnp.float32),   # x2 pre-pass
                            pltpu.VMEM((TT, Bp, H), jnp.float32),   # per-step h
                            pltpu.VMEM((TT, Bp, H), jnp.float32)],  # per-step c
        ),
        compiler_params=pltpu.CompilerParams(
            dimension_semantics=("arbitrary",)),   # recurrence -> sequential time tiles
        cost_estimate=pl.CostEstimate(flops=flops,
                                      transcendentals=transcendentals,
                                      bytes_accessed=bytes_accessed),
    )(w_blob, obs_seq, global_thought_seq, neighbours_action_seq)

    out = out[:T, :B]
    h_seq = out[:, :, 0:H]
    c_seq = out[:, :, H:2 * H]
    pi_seq = out[:, :, 2 * H:2 * H + A]
    v_seq = out[:, :, 2 * H + A:2 * H + A + 1]
    return h_seq, c_seq, pi_seq, v_seq


def init_params(key, obs_space, neighbours_n, action_space):
    """Deterministic init mirroring PyTorch defaults + the zeroing done in __init__."""
    ks = jax.random.split(key, 8)

    def uni(k, shape, fan_in):
        bound = 1.0 / jnp.sqrt(jnp.float32(fan_in))
        return jax.random.uniform(k, shape, jnp.float32, -bound, bound)

    H = HIDDEN
    return {
        # x_layer (weights stored as (in, out))
        "w1": uni(ks[0], (obs_space, 64), obs_space),
        "b1": uni(ks[1], (1, 64), obs_space),
        "w2": uni(ks[2], (64, H), 64),
        "b2": uni(ks[3], (1, H), 64),
        # LSTMCell (bias_ih/bias_hh zeroed in LSTMAgentBase.__init__, so omitted)
        "wih": uni(ks[4], (H, 4 * H), H),
        "whh": uni(ks[5], (H, 4 * H), H),
        # pi: Linear(2H -> A, bias=False); split over [hx | global_thought]
        "wpi_h": uni(ks[6], (H, action_space), 2 * H),
        "wpi_g": uni(ks[7], (H, action_space), 2 * H),
        # _critic: Linear(2H+nn -> 1); weight and bias filled with 0 in __init__
        "wc_h": jnp.zeros((1, H), jnp.float32),
        "wc_g": jnp.zeros((1, H), jnp.float32),
        "wc_a": jnp.zeros((1, neighbours_n), jnp.float32),
        "bc": jnp.zeros((1, 1), jnp.float32),
    }


def reference(obs_seq, g_seq, na_seq, h0, c0, p):
    """Pure-JAX per-step reference matching the PyTorch module."""
    H = HIDDEN
    hx, cx = h0, c0
    hs, cs, pis, vs = [], [], [], []
    for t in range(obs_seq.shape[0]):
        obs, g, na = obs_seq[t], g_seq[t], na_seq[t]
        x = jnp.maximum(obs @ p["w1"] + p["b1"], 0.0)
        x = jnp.maximum(x @ p["w2"] + p["b2"], 0.0)
        gates = x @ p["wih"] + hx @ p["whh"]
        i = jax.nn.sigmoid(gates[:, 0:H])
        f = jax.nn.sigmoid(gates[:, H:2 * H])
        gg = jnp.tanh(gates[:, 2 * H:3 * H])
        o = jax.nn.sigmoid(gates[:, 3 * H:4 * H])
        cx = f * cx + i * gg
        hx = o * jnp.tanh(cx)
        pi = hx @ p["wpi_h"] + g @ p["wpi_g"]
        v = hx @ p["wc_h"].T + g @ p["wc_g"].T + na @ p["wc_a"].T + p["bc"]
        hs.append(hx); cs.append(cx); pis.append(pi); vs.append(v)
    return jnp.stack(hs), jnp.stack(cs), jnp.stack(pis), jnp.stack(vs)


if __name__ == "__main__":
    obs_space, n_agents, action_space = 16, 3, 5
    neighbours_n = n_agents - 1
    B, T = 8, 8   # batch of agents/envs (one sublane group) x rollout length

    key = jax.random.PRNGKey(0)
    kp, ko, kg, kn, kc = jax.random.split(key, 5)
    params = init_params(kp, obs_space, neighbours_n, action_space)

    obs_seq = jax.random.normal(ko, (T, B, obs_space), jnp.float32)
    g_seq = jax.random.normal(kg, (T, B, HIDDEN), jnp.float32)
    na_seq = jax.random.normal(kn, (T, B, neighbours_n), jnp.float32)
    h0 = jnp.zeros((B, HIDDEN), jnp.float32)   # init_hidden()
    c0 = jnp.zeros((B, HIDDEN), jnp.float32)

    refs = reference(obs_seq, g_seq, na_seq, h0, c0, params)

    # 1) exact-parity f32 matmul path, module-default params (critic weights are zero).
    outs = siha_rollout(obs_seq, g_seq, na_seq, h0, c0, params, action_space,
                        matmul_dtype=jnp.float32)
    outs = jax.block_until_ready(outs)
    for o, r in zip(outs, refs):
        assert o.shape == r.shape and o.dtype == r.dtype
        assert jnp.allclose(o, r, atol=1e-4, rtol=1e-4)

    # 2) f32 path with randomized critic weights (the module zero-inits them, which
    #    would hide packing bugs in the head/critic), and a smaller time tile so the
    #    hx/cx carry crosses grid steps (grid=(2,)).
    pr = dict(params)
    kc1, kc2, kc3, kc4 = jax.random.split(kc, 4)
    pr["wc_h"] = 0.1 * jax.random.normal(kc1, (1, HIDDEN), jnp.float32)
    pr["wc_g"] = 0.1 * jax.random.normal(kc2, (1, HIDDEN), jnp.float32)
    pr["wc_a"] = 0.1 * jax.random.normal(kc3, (1, neighbours_n), jnp.float32)
    pr["bc"] = 0.1 * jax.random.normal(kc4, (1, 1), jnp.float32)
    refs_r = reference(obs_seq, g_seq, na_seq, h0, c0, pr)
    outs_r = jax.block_until_ready(
        siha_rollout(obs_seq, g_seq, na_seq, h0, c0, pr, action_space,
                     matmul_dtype=jnp.float32, max_time_tile=4))
    for o, r in zip(outs_r, refs_r):
        assert o.shape == r.shape
        assert jnp.allclose(o, r, atol=1e-4, rtol=1e-4)

    # 3) performance path: bf16 MXU operands with f32 accumulation / elementwise.
    #    Tolerance deliberately loosened vs the f32 reference (bf16 rounding).
    outs_bf = jax.block_until_ready(
        siha_rollout(obs_seq, g_seq, na_seq, h0, c0, params, action_space,
                     matmul_dtype=jnp.bfloat16))
    for o, r in zip(outs_bf, refs):
        assert o.shape == r.shape
        assert jnp.allclose(o, r, atol=2e-2, rtol=2e-2)

    print("KERNEL_OK")
</pallas_src>

<mosaic_0001>
module attributes {stable_mosaic.version = 11 : i64} {
  func.func @kernel(%arg0: i32, %arg1: memref<240x128xf32, #tpu.memory_space<vmem>>, %arg2: memref<8x8x16xf32, #tpu.memory_space<vmem>>, %arg3: memref<8x8x32xf32, #tpu.memory_space<vmem>>, %arg4: memref<8x8x2xf32, #tpu.memory_space<vmem>>, %arg5: memref<8x8x128xf32, #tpu.memory_space<vmem>>, %arg6: memref<8x32xf32, #tpu.memory_space<vmem>>, %arg7: memref<8x32xf32, #tpu.memory_space<vmem>>, %arg8: memref<8x8x32xf32, #tpu.memory_space<vmem>>, %arg9: memref<8x8x32xf32, #tpu.memory_space<vmem>>, %arg10: memref<8x8x32xf32, #tpu.memory_space<vmem>>) attributes {dimension_semantics = [#tpu.dimension_semantics<arbitrary>], iteration_bounds = array<i64: 1>, scalar_prefetch = 0 : i64, scratch_operands = 5 : i64, tpu.core_type = #tpu.core_type<tc>, window_params = [{pipeline_mode = #tpu.pipeline_mode<synchronous>, transform_indices = @transform_0, window_bounds = array<i64: 240, 128>}, {transform_indices = @transform_1, window_bounds = array<i64: 8, 8, 16>}, {transform_indices = @transform_2, window_bounds = array<i64: 8, 8, 32>}, {transform_indices = @transform_3, window_bounds = array<i64: 8, 8, 2>}, {transform_indices = @transform_4, window_bounds = array<i64: 8, 8, 128>}]} {
    %c0_i32 = arith.constant 0 : i32
    %0 = arith.cmpi eq, %arg0, %c0_i32 : i32
    %1 = arith.extui %0 : i1 to i32
    %c0_i32_0 = arith.constant 0 : i32
    %2 = arith.cmpi ne, %1, %c0_i32_0 : i32
    scf.if %2 {
      %c232 = arith.constant 232 : index
      %c0_175 = arith.constant 0 : index
      %316 = vector.load %arg1[%c232, %c0_175] : memref<240x128xf32, #tpu.memory_space<vmem>>, vector<8x32xf32>
      %c0_176 = arith.constant 0 : index
      %c0_177 = arith.constant 0 : index
      %317 = vector.load %arg6[%c0_176, %c0_177] : memref<8x32xf32, #tpu.memory_space<vmem>>, vector<8x32xf32>
      tpu.vector_store %arg6[%c0_176, %c0_177], %316 {strides = array<i32>} : memref<8x32xf32, #tpu.memory_space<vmem>>, vector<8x32xf32>,
      %c232_178 = arith.constant 232 : index
      %c32 = arith.constant 32 : index
      %318 = vector.load %arg1[%c232_178, %c32] : memref<240x128xf32, #tpu.memory_space<vmem>>, vector<8x32xf32>
      %c0_179 = arith.constant 0 : index
      %c0_180 = arith.constant 0 : index
      %319 = vector.load %arg7[%c0_179, %c0_180] : memref<8x32xf32, #tpu.memory_space<vmem>>, vector<8x32xf32>
      tpu.vector_store %arg7[%c0_179, %c0_180], %318 {strides = array<i32>} : memref<8x32xf32, #tpu.memory_space<vmem>>, vector<8x32xf32>,
    } else {
    }
    %c0 = arith.constant 0 : index
    %c0_1 = arith.constant 0 : index
    %c0_2 = arith.constant 0 : index
    %3 = vector.load %arg2[%c0, %c0_1, %c0_2] : memref<8x8x16xf32, #tpu.memory_space<vmem>>, vector<8x8x16xf32>
    %4 = vector.shape_cast %3 : vector<8x8x16xf32> to vector<64x16xf32>
    %c0_3 = arith.constant 0 : index
    %c0_4 = arith.constant 0 : index
    %5 = vector.load %arg1[%c0_3, %c0_4] : memref<240x128xf32, #tpu.memory_space<vmem>>, vector<16x64xf32>
    %c16 = arith.constant 16 : index
    %c0_5 = arith.constant 0 : index
    %6 = vector.load %arg1[%c16, %c0_5] : memref<240x128xf32, #tpu.memory_space<vmem>>, vector<1x64xf32>
    %c24 = arith.constant 24 : index
    %c0_6 = arith.constant 0 : index
    %7 = vector.load %arg1[%c24, %c0_6] : memref<240x128xf32, #tpu.memory_space<vmem>>, vector<64x32xf32>
    %c88 = arith.constant 88 : index
    %c0_7 = arith.constant 0 : index
    %8 = vector.load %arg1[%c88, %c0_7] : memref<240x128xf32, #tpu.memory_space<vmem>>, vector<1x32xf32>
    %cst = arith.constant dense<0.000000e+00> : vector<64x64xf32>
    %9 = tpu.matmul %4, %5, %cst {dimension_numbers = #tpu.dot_dimension_numbers<[1], [0], [0], [1], [0, 0, 1, 1], [], []>} : vector<64x16xf32>, vector<16x64xf32>, vector<64x64xf32> -> vector<64x64xf32>
    %10 = vector.broadcast %6 : vector<1x64xf32> to vector<64x64xf32>
    %11 = arith.addf %9, %10 : vector<64x64xf32>
    %cst_8 = arith.constant 0.000000e+00 : f32
    %12 = vector.broadcast %cst_8 : f32 to vector<64x64xf32>
    %13 = arith.maximumf %11, %12 : vector<64x64xf32>
    %cst_9 = arith.constant dense<0.000000e+00> : vector<64x32xf32>
    %14 = tpu.matmul %13, %7, %cst_9 {dimension_numbers = #tpu.dot_dimension_numbers<[1], [0], [0], [1], [0, 0, 1, 1], [], []>} : vector<64x64xf32>, vector<64x32xf32>, vector<64x32xf32> -> vector<64x32xf32>
    %15 = vector.broadcast %8 : vector<1x32xf32> to vector<64x32xf32>
    %16 = arith.addf %14, %15 : vector<64x32xf32>
    %cst_10 = arith.constant 0.000000e+00 : f32
    %17 = vector.broadcast %cst_10 : f32 to vector<64x32xf32>
    %18 = arith.maximumf %16, %17 : vector<64x32xf32>
    %19 = vector.shape_cast %18 : vector<64x32xf32> to vector<8x8x32xf32>
    %c0_11 = arith.constant 0 : index
    %c0_12 = arith.constant 0 : index
    %c0_13 = arith.constant 0 : index
    %20 = vector.load %arg8[%c0_11, %c0_12, %c0_13] : memref<8x8x32xf32, #tpu.memory_space<vmem>>, vector<8x8x32xf32>
    tpu.vector_store %arg8[%c0_11, %c0_12, %c0_13], %19 {strides = array<i32>} : memref<8x8x32xf32, #tpu.memory_space<vmem>>, vector<8x8x32xf32>,
    %c96 = arith.constant 96 : index
    %c0_14 = arith.constant 0 : index
    %21 = vector.load %arg1[%c96, %c0_14] : memref<240x128xf32, #tpu.memory_space<vmem>>, vector<32x128xf32>
    %c128 = arith.constant 128 : index
    %c0_15 = arith.constant 0 : index
    %22 = vector.load %arg1[%c128, %c0_15] : memref<240x128xf32, #tpu.memory_space<vmem>>, vector<32x128xf32>
    %c0_i32_16 = arith.constant 0 : i32
    %c0_17 = arith.constant 0 : index
    %c0_18 = arith.constant 0 : index
    %23 = vector.load %arg6[%c0_17, %c0_18] : memref<8x32xf32, #tpu.memory_space<vmem>>, vector<8x32xf32>
    %c0_19 = arith.constant 0 : index
    %c0_20 = arith.constant 0 : index
    %24 = vector.load %arg7[%c0_19, %c0_20] : memref<8x32xf32, #tpu.memory_space<vmem>>, vector<8x32xf32>
    %25 = arith.index_cast %c0_i32_16 : i32 to index
    %c0_21 = arith.constant 0 : index
    %c0_22 = arith.constant 0 : index
    %26 = vector.load %arg8[%25, %c0_21, %c0_22] : memref<8x8x32xf32, #tpu.memory_space<vmem>>, vector<1x8x32xf32>
    %27 = vector.shape_cast %26 : vector<1x8x32xf32> to vector<8x32xf32>
    %cst_23 = arith.constant dense<0.000000e+00> : vector<8x128xf32>
    %28 = tpu.matmul %27, %21, %cst_23 {dimension_numbers = #tpu.dot_dimension_numbers<[1], [0], [0], [1], [0, 0, 1, 1], [], []>} : vector<8x32xf32>, vector<32x128xf32>, vector<8x128xf32> -> vector<8x128xf32>
    %cst_24 = arith.constant dense<0.000000e+00> : vector<8x128xf32>
    %29 = tpu.matmul %23, %22, %cst_24 {dimension_numbers = #tpu.dot_dimension_numbers<[1], [0], [0], [1], [0, 0, 1, 1], [], []>} : vector<8x32xf32>, vector<32x128xf32>, vector<8x128xf32> -> vector<8x128xf32>
    %30 = arith.addf %28, %29 : vector<8x128xf32>
    %31 = arith.negf %30 : vector<8x128xf32>
    %32 = math.exp %31 : vector<8x128xf32>
    %cst_25 = arith.constant 1.000000e+00 : f32
    %33 = vector.broadcast %cst_25 : f32 to vector<8x128xf32>
    %34 = arith.addf %33, %32 : vector<8x128xf32>
    %35 = arith.divf %33, %34 : vector<8x128xf32>
    %36 = math.tanh %30 : vector<8x128xf32>
    %37 = vector.extract_strided_slice %35 {offsets = [0, 32], sizes = [8, 32], strides = [1, 1]} : vector<8x128xf32> to vector<8x32xf32>
    %38 = arith.mulf %37, %24 : vector<8x32xf32>
    %39 = vector.extract_strided_slice %35 {offsets = [0, 0], sizes = [8, 32], strides = [1, 1]} : vector<8x128xf32> to vector<8x32xf32>
    %40 = vector.extract_strided_slice %36 {offsets = [0, 64], sizes = [8, 32], strides = [1, 1]} : vector<8x128xf32> to vector<8x32xf32>
    %41 = arith.mulf %39, %40 : vector<8x32xf32>
    %42 = arith.addf %38, %41 : vector<8x32xf32>
    %43 = vector.extract_strided_slice %35 {offsets = [0, 96], sizes = [8, 32], strides = [1, 1]} : vector<8x128xf32> to vector<8x32xf32>
    %44 = math.tanh %42 : vector<8x32xf32>
    %45 = arith.mulf %43, %44 : vector<8x32xf32>
    %c0_26 = arith.constant 0 : index
    %c0_27 = arith.constant 0 : index
    %46 = vector.load %arg6[%c0_26, %c0_27] : memref<8x32xf32, #tpu.memory_space<vmem>>, vector<8x32xf32>
    tpu.vector_store %arg6[%c0_26, %c0_27], %45 {strides = array<i32>} : memref<8x32xf32, #tpu.memory_space<vmem>>, vector<8x32xf32>,
    %c0_28 = arith.constant 0 : index
    %c0_29 = arith.constant 0 : index
    %47 = vector.load %arg7[%c0_28, %c0_29] : memref<8x32xf32, #tpu.memory_space<vmem>>, vector<8x32xf32>
    tpu.vector_store %arg7[%c0_28, %c0_29], %42 {strides = array<i32>} : memref<8x32xf32, #tpu.memory_space<vmem>>, vector<8x32xf32>,
    %48 = arith.index_cast %c0_i32_16 : i32 to index
    %c0_30 = arith.constant 0 : index
    %c0_31 = arith.constant 0 : index
    %49 = vector.load %arg9[%48, %c0_30, %c0_31] : memref<8x8x32xf32, #tpu.memory_space<vmem>>, vector<1x8x32xf32>
    %50 = vector.shape_cast %49 : vector<1x8x32xf32> to vector<8x32xf32>
    %51 = vector.shape_cast %45 : vector<8x32xf32> to vector<1x8x32xf32>
    tpu.vector_store %arg9[%48, %c0_30, %c0_31], %51 {strides = array<i32>} : memref<8x8x32xf32, #tpu.memory_space<vmem>>, vector<1x8x32xf32>,
    %52 = arith.index_cast %c0_i32_16 : i32 to index
    %c0_32 = arith.constant 0 : index
    %c0_33 = arith.constant 0 : index
    %53 = vector.load %arg10[%52, %c0_32, %c0_33] : memref<8x8x32xf32, #tpu.memory_space<vmem>>, vector<1x8x32xf32>
    %54 = vector.shape_cast %53 : vector<1x8x32xf32> to vector<8x32xf32>
    %55 = vector.shape_cast %42 : vector<8x32xf32> to vector<1x8x32xf32>
    tpu.vector_store %arg10[%52, %c0_32, %c0_33], %55 {strides = array<i32>} : memref<8x8x32xf32, #tpu.memory_space<vmem>>, vector<1x8x32xf32>,
    %c1_i32 = arith.constant 1 : i32
    %c0_34 = arith.constant 0 : index
    %c0_35 = arith.constant 0 : index
    %56 = vector.load %arg6[%c0_34, %c0_35] : memref<8x32xf32, #tpu.memory_space<vmem>>, vector<8x32xf32>
    %c0_36 = arith.constant 0 : index
    %c0_37 = arith.constant 0 : index
    %57 = vector.load %arg7[%c0_36, %c0_37] : memref<8x32xf32, #tpu.memory_space<vmem>>, vector<8x32xf32>
    %58 = arith.index_cast %c1_i32 : i32 to index
    %c0_38 = arith.constant 0 : index
    %c0_39 = arith.constant 0 : index
    %59 = vector.load %arg8[%58, %c0_38, %c0_39] : memref<8x8x32xf32, #tpu.memory_space<vmem>>, vector<1x8x32xf32>
    %60 = vector.shape_cast %59 : vector<1x8x32xf32> to vector<8x32xf32>
    %cst_40 = arith.constant dense<0.000000e+00> : vector<8x128xf32>
    %61 = tpu.matmul %60, %21, %cst_40 {dimension_numbers = #tpu.dot_dimension_numbers<[1], [0], [0], [1], [0, 0, 1, 1], [], []>} : vector<8x32xf32>, vector<32x128xf32>, vector<8x128xf32> -> vector<8x128xf32>
    %cst_41 = arith.constant dense<0.000000e+00> : vector<8x128xf32>
    %62 = tpu.matmul %56, %22, %cst_41 {dimension_numbers = #tpu.dot_dimension_numbers<[1], [0], [0], [1], [0, 0, 1, 1], [], []>} : vector<8x32xf32>, vector<32x128xf32>, vector<8x128xf32> -> vector<8x128xf32>
    %63 = arith.addf %61, %62 : vector<8x128xf32>
    %64 = arith.negf %63 : vector<8x128xf32>
    %65 = math.exp %64 : vector<8x128xf32>
    %cst_42 = arith.constant 1.000000e+00 : f32
    %66 = vector.broadcast %cst_42 : f32 to vector<8x128xf32>
    %67 = arith.addf %66, %65 : vector<8x128xf32>
    %68 = arith.divf %66, %67 : vector<8x128xf32>
    %69 = math.tanh %63 : vector<8x128xf32>
    %70 = vector.extract_strided_slice %68 {offsets = [0, 32], sizes = [8, 32], strides = [1, 1]} : vector<8x128xf32> to vector<8x32xf32>
    %71 = arith.mulf %70, %57 : vector<8x32xf32>
    %72 = vector.extract_strided_slice %68 {offsets = [0, 0], sizes = [8, 32], strides = [1, 1]} : vector<8x128xf32> to vector<8x32xf32>
    %73 = vector.extract_strided_slice %69 {offsets = [0, 64], sizes = [8, 32], strides = [1, 1]} : vector<8x128xf32> to vector<8x32xf32>
    %74 = arith.mulf %72, %73 : vector<8x32xf32>
    %75 = arith.addf %71, %74 : vector<8x32xf32>
    %76 = vector.extract_strided_slice %68 {offsets = [0, 96], sizes = [8, 32], strides = [1, 1]} : vector<8x128xf32> to vector<8x32xf32>
    %77 = math.tanh %75 : vector<8x32xf32>
    %78 = arith.mulf %76, %77 : vector<8x32xf32>
    %c0_43 = arith.constant 0 : index
    %c0_44 = arith.constant 0 : index
    %79 = vector.load %arg6[%c0_43, %c0_44] : memref<8x32xf32, #tpu.memory_space<vmem>>, vector<8x32xf32>
    tpu.vector_store %arg6[%c0_43, %c0_44], %78 {strides = array<i32>} : memref<8x32xf32, #tpu.memory_space<vmem>>, vector<8x32xf32>,
    %c0_45 = arith.constant 0 : index
    %c0_46 = arith.constant 0 : index
    %80 = vector.load %arg7[%c0_45, %c0_46] : memref<8x32xf32, #tpu.memory_space<vmem>>, vector<8x32xf32>
    tpu.vector_store %arg7[%c0_45, %c0_46], %75 {strides = array<i32>} : memref<8x32xf32, #tpu.memory_space<vmem>>, vector<8x32xf32>,
    %81 = arith.index_cast %c1_i32 : i32 to index
    %c0_47 = arith.constant 0 : index
    %c0_48 = arith.constant 0 : index
    %82 = vector.load %arg9[%81, %c0_47, %c0_48] : memref<8x8x32xf32, #tpu.memory_space<vmem>>, vector<1x8x32xf32>
    %83 = vector.shape_cast %82 : vector<1x8x32xf32> to vector<8x32xf32>
    %84 = vector.shape_cast %78 : vector<8x32xf32> to vector<1x8x32xf32>
    tpu.vector_store %arg9[%81, %c0_47, %c0_48], %84 {strides = array<i32>} : memref<8x8x32xf32, #tpu.memory_space<vmem>>, vector<1x8x32xf32>,
    %85 = arith.index_cast %c1_i32 : i32 to index
    %c0_49 = arith.constant 0 : index
    %c0_50 = arith.constant 0 : index
    %86 = vector.load %arg10[%85, %c0_49, %c0_50] : memref<8x8x32xf32, #tpu.memory_space<vmem>>, vector<1x8x32xf32>
    %87 = vector.shape_cast %86 : vector<1x8x32xf32> to vector<8x32xf32>
    %88 = vector.shape_cast %75 : vector<8x32xf32> to vector<1x8x32xf32>
    tpu.vector_store %arg10[%85, %c0_49, %c0_50], %88 {strides = array<i32>} : memref<8x8x32xf32, #tpu.memory_space<vmem>>, vector<1x8x32xf32>,
    %c2_i32 = arith.constant 2 : i32
    %c0_51 = arith.constant 0 : index
    %c0_52 = arith.constant 0 : index
    %89 = vector.load %arg6[%c0_51, %c0_52] : memref<8x32xf32, #tpu.memory_space<vmem>>, vector<8x32xf32>
    %c0_53 = arith.constant 0 : index
    %c0_54 = arith.constant 0 : index
    %90 = vector.load %arg7[%c0_53, %c0_54] : memref<8x32xf32, #tpu.memory_space<vmem>>, vector<8x32xf32>
    %91 = arith.index_cast %c2_i32 : i32 to index
    %c0_55 = arith.constant 0 : index
    %c0_56 = arith.constant 0 : index
    %92 = vector.load %arg8[%91, %c0_55, %c0_56] : memref<8x8x32xf32, #tpu.memory_space<vmem>>, vector<1x8x32xf32>
    %93 = vector.shape_cast %92 : vector<1x8x32xf32> to vector<8x32xf32>
    %cst_57 = arith.constant dense<0.000000e+00> : vector<8x128xf32>
    %94 = tpu.matmul %93, %21, %cst_57 {dimension_numbers = #tpu.dot_dimension_numbers<[1], [0], [0], [1], [0, 0, 1, 1], [], []>} : vector<8x32xf32>, vector<32x128xf32>, vector<8x128xf32> -> vector<8x128xf32>
    %cst_58 = arith.constant dense<0.000000e+00> : vector<8x128xf32>
    %95 = tpu.matmul %89, %22, %cst_58 {dimension_numbers = #tpu.dot_dimension_numbers<[1], [0], [0], [1], [0, 0, 1, 1], [], []>} : vector<8x32xf32>, vector<32x128xf32>, vector<8x128xf32> -> vector<8x128xf32>
    %96 = arith.addf %94, %95 : vector<8x128xf32>
    %97 = arith.negf %96 : vector<8x128xf32>
    %98 = math.exp %97 : vector<8x128xf32>
    %cst_59 = arith.constant 1.000000e+00 : f32
    %99 = vector.broadcast %cst_59 : f32 to vector<8x128xf32>
    %100 = arith.addf %99, %98 : vector<8x128xf32>
    %101 = arith.divf %99, %100 : vector<8x128xf32>
    %102 = math.tanh %96 : vector<8x128xf32>
    %103 = vector.extract_strided_slice %101 {offsets = [0, 32], sizes = [8, 32], strides = [1, 1]} : vector<8x128xf32> to vector<8x32xf32>
    %104 = arith.mulf %103, %90 : vector<8x32xf32>
    %105 = vector.extract_strided_slice %101 {offsets = [0, 0], sizes = [8, 32], strides = [1, 1]} : vector<8x128xf32> to vector<8x32xf32>
    %106 = vector.extract_strided_slice %102 {offsets = [0, 64], sizes = [8, 32], strides = [1, 1]} : vector<8x128xf32> to vector<8x32xf32>
    %107 = arith.mulf %105, %106 : vector<8x32xf32>
    %108 = arith.addf %104, %107 : vector<8x32xf32>
    %109 = vector.extract_strided_slice %101 {offsets = [0, 96], sizes = [8, 32], strides = [1, 1]} : vector<8x128xf32> to vector<8x32xf32>
    %110 = math.tanh %108 : vector<8x32xf32>
    %111 = arith.mulf %109, %110 : vector<8x32xf32>
    %c0_60 = arith.constant 0 : index
    %c0_61 = arith.constant 0 : index
    %112 = vector.load %arg6[%c0_60, %c0_61] : memref<8x32xf32, #tpu.memory_space<vmem>>, vector<8x32xf32>
    tpu.vector_store %arg6[%c0_60, %c0_61], %111 {strides = array<i32>} : memref<8x32xf32, #tpu.memory_space<vmem>>, vector<8x32xf32>,
    %c0_62 = arith.constant 0 : index
    %c0_63 = arith.constant 0 : index
    %113 = vector.load %arg7[%c0_62, %c0_63] : memref<8x32xf32, #tpu.memory_space<vmem>>, vector<8x32xf32>
    tpu.vector_store %arg7[%c0_62, %c0_63], %108 {strides = array<i32>} : memref<8x32xf32, #tpu.memory_space<vmem>>, vector<8x32xf32>,
    %114 = arith.index_cast %c2_i32 : i32 to index
    %c0_64 = arith.constant 0 : index
    %c0_65 = arith.constant 0 : index
    %115 = vector.load %arg9[%114, %c0_64, %c0_65] : memref<8x8x32xf32, #tpu.memory_space<vmem>>, vector<1x8x32xf32>
    %116 = vector.shape_cast %115 : vector<1x8x32xf32> to vector<8x32xf32>
    %117 = vector.shape_cast %111 : vector<8x32xf32> to vector<1x8x32xf32>
    tpu.vector_store %arg9[%114, %c0_64, %c0_65], %117 {strides = array<i32>} : memref<8x8x32xf32, #tpu.memory_space<vmem>>, vector<1x8x32xf32>,
    %118 = arith.index_cast %c2_i32 : i32 to index
    %c0_66 = arith.constant 0 : index
    %c0_67 = arith.constant 0 : index
    %119 = vector.load %arg10[%118, %c0_66, %c0_67] : memref<8x8x32xf32, #tpu.memory_space<vmem>>, vector<1x8x32xf32>
    %120 = vector.shape_cast %119 : vector<1x8x32xf32> to vector<8x32xf32>
    %121 = vector.shape_cast %108 : vector<8x32xf32> to vector<1x8x32xf32>
    tpu.vector_store %arg10[%118, %c0_66, %c0_67], %121 {strides = array<i32>} : memref<8x8x32xf32, #tpu.memory_space<vmem>>, vector<1x8x32xf32>,
    %c3_i32 = arith.constant 3 : i32
    %c0_68 = arith.constant 0 : index
    %c0_69 = arith.constant 0 : index
    %122 = vector.load %arg6[%c0_68, %c0_69] : memref<8x32xf32, #tpu.memory_space<vmem>>, vector<8x32xf32>
    %c0_70 = arith.constant 0 : index
    %c0_71 = arith.constant 0 : index
    %123 = vector.load %arg7[%c0_70, %c0_71] : memref<8x32xf32, #tpu.memory_space<vmem>>, vector<8x32xf32>
    %124 = arith.index_cast %c3_i32 : i32 to index
    %c0_72 = arith.constant 0 : index
    %c0_73 = arith.constant 0 : index
    %125 = vector.load %arg8[%124, %c0_72, %c0_73] : memref<8x8x32xf32, #tpu.memory_space<vmem>>, vector<1x8x32xf32>
    %126 = vector.shape_cast %125 : vector<1x8x32xf32> to vector<8x32xf32>
    %cst_74 = arith.constant dense<0.000000e+00> : vector<8x128xf32>
    %127 = tpu.matmul %126, %21, %cst_74 {dimension_numbers = #tpu.dot_dimension_numbers<[1], [0], [0], [1], [0, 0, 1, 1], [], []>} : vector<8x32xf32>, vector<32x128xf32>, vector<8x128xf32> -> vector<8x128xf32>
    %cst_75 = arith.constant dense<0.000000e+00> : vector<8x128xf32>
    %128 = tpu.matmul %122, %22, %cst_75 {dimension_numbers = #tpu.dot_dimension_numbers<[1], [0], [0], [1], [0, 0, 1, 1], [], []>} : vector<8x32xf32>, vector<32x128xf32>, vector<8x128xf32> -> vector<8x128xf32>
    %129 = arith.addf %127, %128 : vector<8x128xf32>
    %130 = arith.negf %129 : vector<8x128xf32>
    %131 = math.exp %130 : vector<8x128xf32>
    %cst_76 = arith.constant 1.000000e+00 : f32
    %132 = vector.broadcast %cst_76 : f32 to vector<8x128xf32>
    %133 = arith.addf %132, %131 : vector<8x128xf32>
    %134 = arith.divf %132, %133 : vector<8x128xf32>
    %135 = math.tanh %129 : vector<8x128xf32>
    %136 = vector.extract_strided_slice %134 {offsets = [0, 32], sizes = [8, 32], strides = [1, 1]} : vector<8x128xf32> to vector<8x32xf32>
    %137 = arith.mulf %136, %123 : vector<8x32xf32>
    %138 = vector.extract_strided_slice %134 {offsets = [0, 0], sizes = [8, 32], strides = [1, 1]} : vector<8x128xf32> to vector<8x32xf32>
    %139 = vector.extract_strided_slice %135 {offsets = [0, 64], sizes = [8, 32], strides = [1, 1]} : vector<8x128xf32> to vector<8x32xf32>
    %140 = arith.mulf %138, %139 : vector<8x32xf32>
    %141 = arith.addf %137, %140 : vector<8x32xf32>
    %142 = vector.extract_strided_slice %134 {offsets = [0, 96], sizes = [8, 32], strides = [1, 1]} : vector<8x128xf32> to vector<8x32xf32>
    %143 = math.tanh %141 : vector<8x32xf32>
    %144 = arith.mulf %142, %143 : vector<8x32xf32>
    %c0_77 = arith.constant 0 : index
    %c0_78 = arith.constant 0 : index
    %145 = vector.load %arg6[%c0_77, %c0_78] : memref<8x32xf32, #tpu.memory_space<vmem>>, vector<8x32xf32>
    tpu.vector_store %arg6[%c0_77, %c0_78], %144 {strides = array<i32>} : memref<8x32xf32, #tpu.memory_space<vmem>>, vector<8x32xf32>,
    %c0_79 = arith.constant 0 : index
    %c0_80 = arith.constant 0 : index
    %146 = vector.load %arg7[%c0_79, %c0_80] : memref<8x32xf32, #tpu.memory_space<vmem>>, vector<8x32xf32>
    tpu.vector_store %arg7[%c0_79, %c0_80], %141 {strides = array<i32>} : memref<8x32xf32, #tpu.memory_space<vmem>>, vector<8x32xf32>,
    %147 = arith.index_cast %c3_i32 : i32 to index
    %c0_81 = arith.constant 0 : index
    %c0_82 = arith.constant 0 : index
    %148 = vector.load %arg9[%147, %c0_81, %c0_82] : memref<8x8x32xf32, #tpu.memory_space<vmem>>, vector<1x8x32xf32>
    %149 = vector.shape_cast %148 : vector<1x8x32xf32> to vector<8x32xf32>
    %150 = vector.shape_cast %144 : vector<8x32xf32> to vector<1x8x32xf32>
    tpu.vector_store %arg9[%147, %c0_81, %c0_82], %150 {strides = array<i32>} : memref<8x8x32xf32, #tpu.memory_space<vmem>>, vector<1x8x32xf32>,
    %151 = arith.index_cast %c3_i32 : i32 to index
    %c0_83 = arith.constant 0 : index
    %c0_84 = arith.constant 0 : index
    %152 = vector.load %arg10[%151, %c0_83, %c0_84] : memref<8x8x32xf32, #tpu.memory_space<vmem>>, vector<1x8x32xf32>
    %153 = vector.shape_cast %152 : vector<1x8x32xf32> to vector<8x32xf32>
    %154 = vector.shape_cast %141 : vector<8x32xf32> to vector<1x8x32xf32>
    tpu.vector_store %arg10[%151, %c0_83, %c0_84], %154 {strides = array<i32>} : memref<8x8x32xf32, #tpu.memory_space<vmem>>, vector<1x8x32xf32>,
    %c4_i32 = arith.constant 4 : i32
    %c0_85 = arith.constant 0 : index
    %c0_86 = arith.constant 0 : index
    %155 = vector.load %arg6[%c0_85, %c0_86] : memref<8x32xf32, #tpu.memory_space<vmem>>, vector<8x32xf32>
    %c0_87 = arith.constant 0 : index
    %c0_88 = arith.constant 0 : index
    %156 = vector.load %arg7[%c0_87, %c0_88] : memref<8x32xf32, #tpu.memory_space<vmem>>, vector<8x32xf32>
    %157 = arith.index_cast %c4_i32 : i32 to index
    %c0_89 = arith.constant 0 : index
    %c0_90 = arith.constant 0 : index
    %158 = vector.load %arg8[%157, %c0_89, %c0_90] : memref<8x8x32xf32, #tpu.memory_space<vmem>>, vector<1x8x32xf32>
    %159 = vector.shape_cast %158 : vector<1x8x32xf32> to vector<8x32xf32>
    %cst_91 = arith.constant dense<0.000000e+00> : vector<8x128xf32>
    %160 = tpu.matmul %159, %21, %cst_91 {dimension_numbers = #tpu.dot_dimension_numbers<[1], [0], [0], [1], [0, 0, 1, 1], [], []>} : vector<8x32xf32>, vector<32x128xf32>, vector<8x128xf32> -> vector<8x128xf32>
    %cst_92 = arith.constant dense<0.000000e+00> : vector<8x128xf32>
    %161 = tpu.matmul %155, %22, %cst_92 {dimension_numbers = #tpu.dot_dimension_numbers<[1], [0], [0], [1], [0, 0, 1, 1], [], []>} : vector<8x32xf32>, vector<32x128xf32>, vector<8x128xf32> -> vector<8x128xf32>
    %162 = arith.addf %160, %161 : vector<8x128xf32>
    %163 = arith.negf %162 : vector<8x128xf32>
    %164 = math.exp %163 : vector<8x128xf32>
    %cst_93 = arith.constant 1.000000e+00 : f32
    %165 = vector.broadcast %cst_93 : f32 to vector<8x128xf32>
    %166 = arith.addf %165, %164 : vector<8x128xf32>
    %167 = arith.divf %165, %166 : vector<8x128xf32>
    %168 = math.tanh %162 : vector<8x128xf32>
    %169 = vector.extract_strided_slice %167 {offsets = [0, 32], sizes = [8, 32], strides = [1, 1]} : vector<8x128xf32> to vector<8x32xf32>
    %170 = arith.mulf %169, %156 : vector<8x32xf32>
    %171 = vector.extract_strided_slice %167 {offsets = [0, 0], sizes = [8, 32], strides = [1, 1]} : vector<8x128xf32> to vector<8x32xf32>
    %172 = vector.extract_strided_slice %168 {offsets = [0, 64], sizes = [8, 32], strides = [1, 1]} : vector<8x128xf32> to vector<8x32xf32>
    %173 = arith.mulf %171, %172 : vector<8x32xf32>
    %174 = arith.addf %170, %173 : vector<8x32xf32>
    %175 = vector.extract_strided_slice %167 {offsets = [0, 96], sizes = [8, 32], strides = [1, 1]} : vector<8x128xf32> to vector<8x32xf32>
    %176 = math.tanh %174 : vector<8x32xf32>
    %177 = arith.mulf %175, %176 : vector<8x32xf32>
    %c0_94 = arith.constant 0 : index
    %c0_95 = arith.constant 0 : index
    %178 = vector.load %arg6[%c0_94, %c0_95] : memref<8x32xf32, #tpu.memory_space<vmem>>, vector<8x32xf32>
    tpu.vector_store %arg6[%c0_94, %c0_95], %177 {strides = array<i32>} : memref<8x32xf32, #tpu.memory_space<vmem>>, vector<8x32xf32>,
    %c0_96 = arith.constant 0 : index
    %c0_97 = arith.constant 0 : index
    %179 = vector.load %arg7[%c0_96, %c0_97] : memref<8x32xf32, #tpu.memory_space<vmem>>, vector<8x32xf32>
    tpu.vector_store %arg7[%c0_96, %c0_97], %174 {strides = array<i32>} : memref<8x32xf32, #tpu.memory_space<vmem>>, vector<8x32xf32>,
    %180 = arith.index_cast %c4_i32 : i32 to index
    %c0_98 = arith.constant 0 : index
    %c0_99 = arith.constant 0 : index
    %181 = vector.load %arg9[%180, %c0_98, %c0_99] : memref<8x8x32xf32, #tpu.memory_space<vmem>>, vector<1x8x32xf32>
    %182 = vector.shape_cast %181 : vector<1x8x32xf32> to vector<8x32xf32>
    %183 = vector.shape_cast %177 : vector<8x32xf32> to vector<1x8x32xf32>
    tpu.vector_store %arg9[%180, %c0_98, %c0_99], %183 {strides = array<i32>} : memref<8x8x32xf32, #tpu.memory_space<vmem>>, vector<1x8x32xf32>,
    %184 = arith.index_cast %c4_i32 : i32 to index
    %c0_100 = arith.constant 0 : index
    %c0_101 = arith.constant 0 : index
    %185 = vector.load %arg10[%184, %c0_100, %c0_101] : memref<8x8x32xf32, #tpu.memory_space<vmem>>, vector<1x8x32xf32>
    %186 = vector.shape_cast %185 : vector<1x8x32xf32> to vector<8x32xf32>
    %187 = vector.shape_cast %174 : vector<8x32xf32> to vector<1x8x32xf32>
    tpu.vector_store %arg10[%184, %c0_100, %c0_101], %187 {strides = array<i32>} : memref<8x8x32xf32, #tpu.memory_space<vmem>>, vector<1x8x32xf32>,
    %c5_i32 = arith.constant 5 : i32
    %c0_102 = arith.constant 0 : index
    %c0_103 = arith.constant 0 : index
    %188 = vector.load %arg6[%c0_102, %c0_103] : memref<8x32xf32, #tpu.memory_space<vmem>>, vector<8x32xf32>
    %c0_104 = arith.constant 0 : index
    %c0_105 = arith.constant 0 : index
    %189 = vector.load %arg7[%c0_104, %c0_105] : memref<8x32xf32, #tpu.memory_space<vmem>>, vector<8x32xf32>
    %190 = arith.index_cast %c5_i32 : i32 to index
    %c0_106 = arith.constant 0 : index
    %c0_107 = arith.constant 0 : index
    %191 = vector.load %arg8[%190, %c0_106, %c0_107] : memref<8x8x32xf32, #tpu.memory_space<vmem>>, vector<1x8x32xf32>
    %192 = vector.shape_cast %191 : vector<1x8x32xf32> to vector<8x32xf32>
    %cst_108 = arith.constant dense<0.000000e+00> : vector<8x128xf32>
    %193 = tpu.matmul %192, %21, %cst_108 {dimension_numbers = #tpu.dot_dimension_numbers<[1], [0], [0], [1], [0, 0, 1, 1], [], []>} : vector<8x32xf32>, vector<32x128xf32>, vector<8x128xf32> -> vector<8x128xf32>
    %cst_109 = arith.constant dense<0.000000e+00> : vector<8x128xf32>
    %194 = tpu.matmul %188, %22, %cst_109 {dimension_numbers = #tpu.dot_dimension_numbers<[1], [0], [0], [1], [0, 0, 1, 1], [], []>} : vector<8x32xf32>, vector<32x128xf32>, vector<8x128xf32> -> vector<8x128xf32>
    %195 = arith.addf %193, %194 : vector<8x128xf32>
    %196 = arith.negf %195 : vector<8x128xf32>
    %197 = math.exp %196 : vector<8x128xf32>
    %cst_110 = arith.constant 1.000000e+00 : f32
    %198 = vector.broadcast %cst_110 : f32 to vector<8x128xf32>
    %199 = arith.addf %198, %197 : vector<8x128xf32>
    %200 = arith.divf %198, %199 : vector<8x128xf32>
    %201 = math.tanh %195 : vector<8x128xf32>
    %202 = vector.extract_strided_slice %200 {offsets = [0, 32], sizes = [8, 32], strides = [1, 1]} : vector<8x128xf32> to vector<8x32xf32>
    %203 = arith.mulf %202, %189 : vector<8x32xf32>
    %204 = vector.extract_strided_slice %200 {offsets = [0, 0], sizes = [8, 32], strides = [1, 1]} : vector<8x128xf32> to vector<8x32xf32>
    %205 = vector.extract_strided_slice %201 {offsets = [0, 64], sizes = [8, 32], strides = [1, 1]} : vector<8x128xf32> to vector<8x32xf32>
    %206 = arith.mulf %204, %205 : vector<8x32xf32>
    %207 = arith.addf %203, %206 : vector<8x32xf32>
    %208 = vector.extract_strided_slice %200 {offsets = [0, 96], sizes = [8, 32], strides = [1, 1]} : vector<8x128xf32> to vector<8x32xf32>
    %209 = math.tanh %207 : vector<8x32xf32>
    %210 = arith.mulf %208, %209 : vector<8x32xf32>
    %c0_111 = arith.constant 0 : index
    %c0_112 = arith.constant 0 : index
    %211 = vector.load %arg6[%c0_111, %c0_112] : memref<8x32xf32, #tpu.memory_space<vmem>>, vector<8x32xf32>
    tpu.vector_store %arg6[%c0_111, %c0_112], %210 {strides = array<i32>} : memref<8x32xf32, #tpu.memory_space<vmem>>, vector<8x32xf32>,
    %c0_113 = arith.constant 0 : index
    %c0_114 = arith.constant 0 : index
    %212 = vector.load %arg7[%c0_113, %c0_114] : memref<8x32xf32, #tpu.memory_space<vmem>>, vector<8x32xf32>
    tpu.vector_store %arg7[%c0_113, %c0_114], %207 {strides = array<i32>} : memref<8x32xf32, #tpu.memory_space<vmem>>, vector<8x32xf32>,
    %213 = arith.index_cast %c5_i32 : i32 to index
    %c0_115 = arith.constant 0 : index
    %c0_116 = arith.constant 0 : index
    %214 = vector.load %arg9[%213, %c0_115, %c0_116] : memref<8x8x32xf32, #tpu.memory_space<vmem>>, vector<1x8x32xf32>
    %215 = vector.shape_cast %214 : vector<1x8x32xf32> to vector<8x32xf32>
    %216 = vector.shape_cast %210 : vector<8x32xf32> to vector<1x8x32xf32>
    tpu.vector_store %arg9[%213, %c0_115, %c0_116], %216 {strides = array<i32>} : memref<8x8x32xf32, #tpu.memory_space<vmem>>, vector<1x8x32xf32>,
    %217 = arith.index_cast %c5_i32 : i32 to index
    %c0_117 = arith.constant 0 : index
    %c0_118 = arith.constant 0 : index
    %218 = vector.load %arg10[%217, %c0_117, %c0_118] : memref<8x8x32xf32, #tpu.memory_space<vmem>>, vector<1x8x32xf32>
    %219 = vector.shape_cast %218 : vector<1x8x32xf32> to vector<8x32xf32>
    %220 = vector.shape_cast %207 : vector<8x32xf32> to vector<1x8x32xf32>
    tpu.vector_store %arg10[%217, %c0_117, %c0_118], %220 {strides = array<i32>} : memref<8x8x32xf32, #tpu.memory_space<vmem>>, vector<1x8x32xf32>,
    %c6_i32 = arith.constant 6 : i32
    %c0_119 = arith.constant 0 : index
    %c0_120 = arith.constant 0 : index
    %221 = vector.load %arg6[%c0_119, %c0_120] : memref<8x32xf32, #tpu.memory_space<vmem>>, vector<8x32xf32>
    %c0_121 = arith.constant 0 : index
    %c0_122 = arith.constant 0 : index
    %222 = vector.load %arg7[%c0_121, %c0_122] : memref<8x32xf32, #tpu.memory_space<vmem>>, vector<8x32xf32>
    %223 = arith.index_cast %c6_i32 : i32 to index
    %c0_123 = arith.constant 0 : index
    %c0_124 = arith.constant 0 : index
    %224 = vector.load %arg8[%223, %c0_123, %c0_124] : memref<8x8x32xf32, #tpu.memory_space<vmem>>, vector<1x8x32xf32>
    %225 = vector.shape_cast %224 : vector<1x8x32xf32> to vector<8x32xf32>
    %cst_125 = arith.constant dense<0.000000e+00> : vector<8x128xf32>
    %226 = tpu.matmul %225, %21, %cst_125 {dimension_numbers = #tpu.dot_dimension_numbers<[1], [0], [0], [1], [0, 0, 1, 1], [], []>} : vector<8x32xf32>, vector<32x128xf32>, vector<8x128xf32> -> vector<8x128xf32>
    %cst_126 = arith.constant dense<0.000000e+00> : vector<8x128xf32>
    %227 = tpu.matmul %221, %22, %cst_126 {dimension_numbers = #tpu.dot_dimension_numbers<[1], [0], [0], [1], [0, 0, 1, 1], [], []>} : vector<8x32xf32>, vector<32x128xf32>, vector<8x128xf32> -> vector<8x128xf32>
    %228 = arith.addf %226, %227 : vector<8x128xf32>
    %229 = arith.negf %228 : vector<8x128xf32>
    %230 = math.exp %229 : vector<8x128xf32>
    %cst_127 = arith.constant 1.000000e+00 : f32
    %231 = vector.broadcast %cst_127 : f32 to vector<8x128xf32>
    %232 = arith.addf %231, %230 : vector<8x128xf32>
    %233 = arith.divf %231, %232 : vector<8x128xf32>
    %234 = math.tanh %228 : vector<8x128xf32>
    %235 = vector.extract_strided_slice %233 {offsets = [0, 32], sizes = [8, 32], strides = [1, 1]} : vector<8x128xf32> to vector<8x32xf32>
    %236 = arith.mulf %235, %222 : vector<8x32xf32>
    %237 = vector.extract_strided_slice %233 {offsets = [0, 0], sizes = [8, 32], strides = [1, 1]} : vector<8x128xf32> to vector<8x32xf32>
    %238 = vector.extract_strided_slice %234 {offsets = [0, 64], sizes = [8, 32], strides = [1, 1]} : vector<8x128xf32> to vector<8x32xf32>
    %239 = arith.mulf %237, %238 : vector<8x32xf32>
    %240 = arith.addf %236, %239 : vector<8x32xf32>
    %241 = vector.extract_strided_slice %233 {offsets = [0, 96], sizes = [8, 32], strides = [1, 1]} : vector<8x128xf32> to vector<8x32xf32>
    %242 = math.tanh %240 : vector<8x32xf32>
    %243 = arith.mulf %241, %242 : vector<8x32xf32>
    %c0_128 = arith.constant 0 : index
    %c0_129 = arith.constant 0 : index
    %244 = vector.load %arg6[%c0_128, %c0_129] : memref<8x32xf32, #tpu.memory_space<vmem>>, vector<8x32xf32>
    tpu.vector_store %arg6[%c0_128, %c0_129], %243 {strides = array<i32>} : memref<8x32xf32, #tpu.memory_space<vmem>>, vector<8x32xf32>,
    %c0_130 = arith.constant 0 : index
    %c0_131 = arith.constant 0 : index
    %245 = vector.load %arg7[%c0_130, %c0_131] : memref<8x32xf32, #tpu.memory_space<vmem>>, vector<8x32xf32>
    tpu.vector_store %arg7[%c0_130, %c0_131], %240 {strides = array<i32>} : memref<8x32xf32, #tpu.memory_space<vmem>>, vector<8x32xf32>,
    %246 = arith.index_cast %c6_i32 : i32 to index
    %c0_132 = arith.constant 0 : index
    %c0_133 = arith.constant 0 : index
    %247 = vector.load %arg9[%246, %c0_132, %c0_133] : memref<8x8x32xf32, #tpu.memory_space<vmem>>, vector<1x8x32xf32>
    %248 = vector.shape_cast %247 : vector<1x8x32xf32> to vector<8x32xf32>
    %249 = vector.shape_cast %243 : vector<8x32xf32> to vector<1x8x32xf32>
    tpu.vector_store %arg9[%246, %c0_132, %c0_133], %249 {strides = array<i32>} : memref<8x8x32xf32, #tpu.memory_space<vmem>>, vector<1x8x32xf32>,
    %250 = arith.index_cast %c6_i32 : i32 to index
    %c0_134 = arith.constant 0 : index
    %c0_135 = arith.constant 0 : index
    %251 = vector.load %arg10[%250, %c0_134, %c0_135] : memref<8x8x32xf32, #tpu.memory_space<vmem>>, vector<1x8x32xf32>
    %252 = vector.shape_cast %251 : vector<1x8x32xf32> to vector<8x32xf32>
    %253 = vector.shape_cast %240 : vector<8x32xf32> to vector<1x8x32xf32>
    tpu.vector_store %arg10[%250, %c0_134, %c0_135], %253 {strides = array<i32>} : memref<8x8x32xf32, #tpu.memory_space<vmem>>, vector<1x8x32xf32>,
    %c7_i32 = arith.constant 7 : i32
    %c0_136 = arith.constant 0 : index
    %c0_137 = arith.constant 0 : index
    %254 = vector.load %arg6[%c0_136, %c0_137] : memref<8x32xf32, #tpu.memory_space<vmem>>, vector<8x32xf32>
    %c0_138 = arith.constant 0 : index
    %c0_139 = arith.constant 0 : index
    %255 = vector.load %arg7[%c0_138, %c0_139] : memref<8x32xf32, #tpu.memory_space<vmem>>, vector<8x32xf32>
    %256 = arith.index_cast %c7_i32 : i32 to index
    %c0_140 = arith.constant 0 : index
    %c0_141 = arith.constant 0 : index
    %257 = vector.load %arg8[%256, %c0_140, %c0_141] : memref<8x8x32xf32, #tpu.memory_space<vmem>>, vector<1x8x32xf32>
    %258 = vector.shape_cast %257 : vector<1x8x32xf32> to vector<8x32xf32>
    %cst_142 = arith.constant dense<0.000000e+00> : vector<8x128xf32>
    %259 = tpu.matmul %258, %21, %cst_142 {dimension_numbers = #tpu.dot_dimension_numbers<[1], [0], [0], [1], [0, 0, 1, 1], [], []>} : vector<8x32xf32>, vector<32x128xf32>, vector<8x128xf32> -> vector<8x128xf32>
    %cst_143 = arith.constant dense<0.000000e+00> : vector<8x128xf32>
    %260 = tpu.matmul %254, %22, %cst_143 {dimension_numbers = #tpu.dot_dimension_numbers<[1], [0], [0], [1], [0, 0, 1, 1], [], []>} : vector<8x32xf32>, vector<32x128xf32>, vector<8x128xf32> -> vector<8x128xf32>
    %261 = arith.addf %259, %260 : vector<8x128xf32>
    %262 = arith.negf %261 : vector<8x128xf32>
    %263 = math.exp %262 : vector<8x128xf32>
    %cst_144 = arith.constant 1.000000e+00 : f32
    %264 = vector.broadcast %cst_144 : f32 to vector<8x128xf32>
    %265 = arith.addf %264, %263 : vector<8x128xf32>
    %266 = arith.divf %264, %265 : vector<8x128xf32>
    %267 = math.tanh %261 : vector<8x128xf32>
    %268 = vector.extract_strided_slice %266 {offsets = [0, 32], sizes = [8, 32], strides = [1, 1]} : vector<8x128xf32> to vector<8x32xf32>
    %269 = arith.mulf %268, %255 : vector<8x32xf32>
    %270 = vector.extract_strided_slice %266 {offsets = [0, 0], sizes = [8, 32], strides = [1, 1]} : vector<8x128xf32> to vector<8x32xf32>
    %271 = vector.extract_strided_slice %267 {offsets = [0, 64], sizes = [8, 32], strides = [1, 1]} : vector<8x128xf32> to vector<8x32xf32>
    %272 = arith.mulf %270, %271 : vector<8x32xf32>
    %273 = arith.addf %269, %272 : vector<8x32xf32>
    %274 = vector.extract_strided_slice %266 {offsets = [0, 96], sizes = [8, 32], strides = [1, 1]} : vector<8x128xf32> to vector<8x32xf32>
    %275 = math.tanh %273 : vector<8x32xf32>
    %276 = arith.mulf %274, %275 : vector<8x32xf32>
    %c0_145 = arith.constant 0 : index
    %c0_146 = arith.constant 0 : index
    %277 = vector.load %arg6[%c0_145, %c0_146] : memref<8x32xf32, #tpu.memory_space<vmem>>, vector<8x32xf32>
    tpu.vector_store %arg6[%c0_145, %c0_146], %276 {strides = array<i32>} : memref<8x32xf32, #tpu.memory_space<vmem>>, vector<8x32xf32>,
    %c0_147 = arith.constant 0 : index
    %c0_148 = arith.constant 0 : index
    %278 = vector.load %arg7[%c0_147, %c0_148] : memref<8x32xf32, #tpu.memory_space<vmem>>, vector<8x32xf32>
    tpu.vector_store %arg7[%c0_147, %c0_148], %273 {strides = array<i32>} : memref<8x32xf32, #tpu.memory_space<vmem>>, vector<8x32xf32>,
    %279 = arith.index_cast %c7_i32 : i32 to index
    %c0_149 = arith.constant 0 : index
    %c0_150 = arith.constant 0 : index
    %280 = vector.load %arg9[%279, %c0_149, %c0_150] : memref<8x8x32xf32, #tpu.memory_space<vmem>>, vector<1x8x32xf32>
    %281 = vector.shape_cast %280 : vector<1x8x32xf32> to vector<8x32xf32>
    %282 = vector.shape_cast %276 : vector<8x32xf32> to vector<1x8x32xf32>
    tpu.vector_store %arg9[%279, %c0_149, %c0_150], %282 {strides = array<i32>} : memref<8x8x32xf32, #tpu.memory_space<vmem>>, vector<1x8x32xf32>,
    %283 = arith.index_cast %c7_i32 : i32 to index
    %c0_151 = arith.constant 0 : index
    %c0_152 = arith.constant 0 : index
    %284 = vector.load %arg10[%283, %c0_151, %c0_152] : memref<8x8x32xf32, #tpu.memory_space<vmem>>, vector<1x8x32xf32>
    %285 = vector.shape_cast %284 : vector<1x8x32xf32> to vector<8x32xf32>
    %286 = vector.shape_cast %273 : vector<8x32xf32> to vector<1x8x32xf32>
    tpu.vector_store %arg10[%283, %c0_151, %c0_152], %286 {strides = array<i32>} : memref<8x8x32xf32, #tpu.memory_space<vmem>>, vector<1x8x32xf32>,
    %c8_i32 = arith.constant 8 : i32
    %c0_153 = arith.constant 0 : index
    %c0_154 = arith.constant 0 : index
    %c0_155 = arith.constant 0 : index
    %287 = vector.load %arg9[%c0_153, %c0_154, %c0_155] : memref<8x8x32xf32, #tpu.memory_space<vmem>>, vector<8x8x32xf32>
    %288 = vector.shape_cast %287 : vector<8x8x32xf32> to vector<64x32xf32>
    %c0_156 = arith.constant 0 : index
    %c0_157 = arith.constant 0 : index
    %c0_158 = arith.constant 0 : index
    %289 = vector.load %arg10[%c0_156, %c0_157, %c0_158] : memref<8x8x32xf32, #tpu.memory_space<vmem>>, vector<8x8x32xf32>
    %290 = vector.shape_cast %289 : vector<8x8x32xf32> to vector<64x32xf32>
    %c0_159 = arith.constant 0 : index
    %c0_160 = arith.constant 0 : index
    %c0_161 = arith.constant 0 : index
    %291 = vector.load %arg3[%c0_159, %c0_160, %c0_161] : memref<8x8x32xf32, #tpu.memory_space<vmem>>, vector<8x8x32xf32>
    %292 = vector.shape_cast %291 : vector<8x8x32xf32> to vector<64x32xf32>
    %c0_162 = arith.constant 0 : index
    %c0_163 = arith.constant 0 : index
    %c0_164 = arith.constant 0 : index
    %293 = vector.load %arg4[%c0_162, %c0_163, %c0_164] : memref<8x8x2xf32, #tpu.memory_space<vmem>>, vector<8x8x2xf32>
    %294 = vector.shape_cast %293 : vector<8x8x2xf32> to vector<64x2xf32>
    %c160 = arith.constant 160 : index
    %c0_165 = arith.constant 0 : index
    %295 = vector.load %arg1[%c160, %c0_165] : memref<240x128xf32, #tpu.memory_space<vmem>>, vector<32x6xf32>
    %c192 = arith.constant 192 : index
    %c0_166 = arith.constant 0 : index
    %296 = vector.load %arg1[%c192, %c0_166] : memref<240x128xf32, #tpu.memory_space<vmem>>, vector<32x6xf32>
    %cst_167 = arith.constant dense<0.000000e+00> : vector<64x6xf32>
    %297 = tpu.matmul %288, %295, %cst_167 {dimension_numbers = #tpu.dot_dimension_numbers<[1], [0], [0], [1], [0, 0, 1, 1], [], []>} : vector<64x32xf32>, vector<32x6xf32>, vector<64x6xf32> -> vector<64x6xf32>
    %cst_168 = arith.constant dense<0.000000e+00> : vector<64x6xf32>
    %298 = tpu.matmul %292, %296, %cst_168 {dimension_numbers = #tpu.dot_dimension_numbers<[1], [0], [0], [1], [0, 0, 1, 1], [], []>} : vector<64x32xf32>, vector<32x6xf32>, vector<64x6xf32> -> vector<64x6xf32>
    %299 = arith.addf %297, %298 : vector<64x6xf32>
    %c224 = arith.constant 224 : index
    %c0_169 = arith.constant 0 : index
    %300 = vector.load %arg1[%c224, %c0_169] : memref<240x128xf32, #tpu.memory_space<vmem>>, vector<1x128xf32>
    %301 = vector.extract_strided_slice %300 {offsets = [0, 0], sizes = [1, 2], strides = [1, 1]} : vector<1x128xf32> to vector<1x2xf32>
    %302 = vector.extract_strided_slice %300 {offsets = [0, 2], sizes = [1, 1], strides = [1, 1]} : vector<1x128xf32> to vector<1x1xf32>
    %303 = vector.extract_strided_slice %299 {offsets = [0, 0], sizes = [64, 5], strides = [1, 1]} : vector<64x6xf32> to vector<64x5xf32>
    %304 = vector.extract_strided_slice %299 {offsets = [0, 5], sizes = [64, 1], strides = [1, 1]} : vector<64x6xf32> to vector<64x1xf32>
    %305 = vector.broadcast %301 : vector<1x2xf32> to vector<64x2xf32>
    %306 = arith.mulf %294, %305 : vector<64x2xf32>
    %cst_170 = arith.constant dense<0.000000e+00> : vector<64xf32>
    %307 = vector.multi_reduction <add>, %306, %cst_170 [1] : vector<64x2xf32> to vector<64xf32>
    %308 = vector.shape_cast %307 : vector<64xf32> to vector<64x1xf32>
    %309 = arith.addf %304, %308 : vector<64x1xf32>
    %310 = vector.broadcast %302 : vector<1x1xf32> to vector<64x1xf32>
    %311 = arith.addf %309, %310 : vector<64x1xf32>
    %cst_171 = arith.constant 0.000000e+00 : f32
    %312 = vector.broadcast %cst_171 : f32 to vector<64x58xf32>
    %313 = tpu.concatenate %288, %290, %303, %311, %312 in 1 : vector<64x32xf32>, vector<64x32xf32>, vector<64x5xf32>, vector<64x1xf32>, vector<64x58xf32> -> vector<64x128xf32>
    %314 = vector.shape_cast %313 : vector<64x128xf32> to vector<8x8x128xf32>
    %c0_172 = arith.constant 0 : index
    %c0_173 = arith.constant 0 : index
    %c0_174 = arith.constant 0 : index
    %315 = vector.load %arg5[%c0_172, %c0_173, %c0_174] : memref<8x8x128xf32, #tpu.memory_space<vmem>>, vector<8x8x128xf32>
    tpu.vector_store %arg5[%c0_172, %c0_173, %c0_174], %314 {strides = array<i32>} : memref<8x8x128xf32, #tpu.memory_space<vmem>>, vector<8x8x128xf32>,
    return
  }
  func.func @transform_0(%arg0: i32) -> (i32, i32) {
    %c0_i32 = arith.constant 0 : i32
    %c0_i32_0 = arith.constant 0 : i32
    %c0_i32_1 = arith.constant 0 : i32
    return %c0_i32, %c0_i32_0 : i32, i32
  }
  func.func @transform_1(%arg0: i32) -> (i32, i32, i32) {
    %c0_i32 = arith.constant 0 : i32
    %c0_i32_0 = arith.constant 0 : i32
    %c0_i32_1 = arith.constant 0 : i32
    return %arg0, %c0_i32, %c0_i32_0 : i32, i32, i32
  }
  func.func @transform_2(%arg0: i32) -> (i32, i32, i32) {
    %c0_i32 = arith.constant 0 : i32
    %c0_i32_0 = arith.constant 0 : i32
    %c0_i32_1 = arith.constant 0 : i32
    return %arg0, %c0_i32, %c0_i32_0 : i32, i32, i32
  }
  func.func @transform_3(%arg0: i32) -> (i32, i32, i32) {
    %c0_i32 = arith.constant 0 : i32
    %c0_i32_0 = arith.constant 0 : i32
    %c0_i32_1 = arith.constant 0 : i32
    return %arg0, %c0_i32, %c0_i32_0 : i32, i32, i32
  }
  func.func @transform_4(%arg0: i32) -> (i32, i32, i32) {
    %c0_i32 = arith.constant 0 : i32
    %c0_i32_0 = arith.constant 0 : i32
    %c0_i32_1 = arith.constant 0 : i32
    return %arg0, %c0_i32, %c0_i32_0 : i32, i32, i32
  }
}

</mosaic_0001>

<llo_original>
// kernel: tpu_custom_call.1
$region0: #{tpu_custom_call.1}
  #allocation0 [shape = 'u32[]', space=smem, size = 0x4, offset = 0x4, fixed_abs, tag = 'smem constant byte address 0x4 - core index']
  #allocation1 [shape = 'u32[144,128]{1,0:T(1,128)}', space=vmem, size = 0x12000, scoped, tag = 'internal scratch']
  #allocation2 [shape = 'f32[8,32]{1,0:T(8,128)}', space=vmem, size = 0x1000, scoped, tag = 'scratch operand']
  #allocation3 [shape = 'f32[8,32]{1,0:T(8,128)}', space=vmem, size = 0x1000, scoped, tag = 'scratch operand']
  #allocation4 [shape = 'f32[8,8,32]{2,1,0:T(8,128)}', space=vmem, size = 0x8000, scoped, tag = 'scratch operand']
  #allocation5 [shape = 'f32[8,8,32]{2,1,0:T(8,128)}', space=vmem, size = 0x8000, scoped, tag = 'scratch operand']
  #allocation6 [shape = 'f32[8,8,32]{2,1,0:T(8,128)}', space=vmem, size = 0x8000, scoped, tag = 'scratch operand']
  %s0 = inlined_call_operand.hbm [shape: f32[240,128], index: 0, kind: input, shape index: {}]
  %s1 = inlined_call_operand.vmem [shape: f32[8,8,16], index: 1, kind: input, shape index: {}]
  %s2 = inlined_call_operand.hbm [shape: f32[8,8,32], index: 2, kind: input, shape index: {}]
  %s3 = inlined_call_operand.vmem [shape: f32[8,8,2], index: 3, kind: input, shape index: {}]
  %s4 = inlined_call_operand.hbm [shape: f32[8,8,128], index: 4, kind: output, shape index: {}]
  %s5 = sld [smem:[#allocation0]]
  $region38: #{tpu_custom_call.1} parent=0
    _
  %s7 = ssub.s32 1, %s5
  %s8 = scalar_select 0, %s7, %s5
  $region1: #{tpu_custom_call.1} parent=0
    #allocation7 [shape = 'u8[122880]{0}', space=vmem, size = 0x1e000, scoped, tag = 'input window, operand 0, single buffered']
    #allocation8 [shape = 's32[1]{0}', space=sflag, size = 0x4, scoped, tag = 'scoped memory for tpu_custom_call.1']
    #allocation9 [shape = 's32[1]{0}', space=sflag, size = 0x4, scoped, tag = 'scoped memory for tpu_custom_call.1']
    #allocation10 [shape = 'u8[32768]{0}', space=vmem, size = 0x8000, scoped, tag = 'input window, operand 2, single buffered']
    #allocation11 [shape = 's32[1]{0}', space=sflag, size = 0x4, scoped, tag = 'scoped memory for tpu_custom_call.1']
    #allocation12 [shape = 'u8[32768]{0}', space=vmem, size = 0x8000, scoped, tag = 'output window, operand 0, single buffered']
    %9 = vsyncpa [#allocation8], 0
    %10 = vsyncpa [#allocation11], 0
    %11 = vsyncpa [#allocation9], 0
    // Predicated region
    $region2: #{tpu_custom_call.1} parent=1 // pred_check
      _
    $region3: #{tpu_custom_call.1} parent=1 // pred_check_branch
      %13 = sbr.rel (0) target = $region5
    $region4: #{tpu_custom_call.1} parent=1 // pred_region
      %s15 = ssub.s32 3840, 3840
      %16 = vsyncadd [#allocation8], %s15
      %s17 = sshll.u32 [#allocation7], 4
      %s18 = int_to_ptr.vmem [resolvable:$true] %s17
      %23 = dma.hbm_to_vmem [thread:$0]  %s0, 3840, %s18, [#allocation8], 128, 128, 8
    $region5: #{tpu_custom_call.1} parent=1 // pred_fallthru
      _
    // Predicated region
    $region6: #{tpu_custom_call.1} parent=1 // pred_check
      _
    $region7: #{tpu_custom_call.1} parent=1 // pred_check_branch
      %25 = sbr.rel (0) target = $region9
    $region8: #{tpu_custom_call.1} parent=1 // pred_region
      _
    $region9: #{tpu_custom_call.1} parent=1 // pred_fallthru
      _
    // Predicated region
    $region10: #{tpu_custom_call.1} parent=1 // pred_check
      _
    $region11: #{tpu_custom_call.1} parent=1 // pred_check_branch
      %27 = sbr.rel (0) target = $region13
    $region12: #{tpu_custom_call.1} parent=1 // pred_region
      %s29 = ssub.s32 1024, 1024
      %30 = vsyncadd [#allocation11], %s29
      %s31 = sshll.u32 [#allocation10], 4
      %s32 = int_to_ptr.vmem [resolvable:$true] %s31
      %37 = dma.hbm_to_vmem [thread:$0]  %s2, 1024, %s32, [#allocation11], 128, 128, 8
    $region13: #{tpu_custom_call.1} parent=1 // pred_fallthru
      _
    // Predicated region
    $region14: #{tpu_custom_call.1} parent=1 // pred_check
      _
    $region15: #{tpu_custom_call.1} parent=1 // pred_check_branch
      %39 = sbr.rel (0) target = $region17
    $region16: #{tpu_custom_call.1} parent=1 // pred_region
      _
    $region17: #{tpu_custom_call.1} parent=1 // pred_fallthru
      _
    // Predicated region
    $region18: #{tpu_custom_call.1} parent=1 // pred_check
      _
    $region19: #{tpu_custom_call.1} parent=1 // pred_check_branch
      %41 = sbr.rel (0) target = $region21
    $region20: #{tpu_custom_call.1} parent=1 // pred_region
      %42 = dma.done [#allocation8], 3840
    $region21: #{tpu_custom_call.1} parent=1 // pred_fallthru
      _
    // Predicated region
    $region22: #{tpu_custom_call.1} parent=1 // pred_check
      _
    $region23: #{tpu_custom_call.1} parent=1 // pred_check_branch
      %44 = sbr.rel (0) target = $region25
    $region24: #{tpu_custom_call.1} parent=1 // pred_region
      %45 = dma.done [#allocation11], 1024
    $region25: #{tpu_custom_call.1} parent=1 // pred_fallthru
      _
    %p46 = scmp.eq.s32.totalorder 0, 0
    // Predicated region
    $region26: #{tpu_custom_call.1} parent=1 // pred_check
      %p47 = pneg %p46
    $region27: #{tpu_custom_call.1} parent=1 // pred_check_branch
      %49 = sbr.rel (%p47) target = $region29
    $region28: #{tpu_custom_call.1} parent=1 // pred_region
      %v50 = vld [vmem:[#allocation7 + $0xe8] sm:$0xff]
      %vm51 = vcmask 261120
      %52 = vst.msk [vmem:[#allocation2] sm:$0xff] %vm51, %v50
      %v53 = vld [vmem:[#allocation7 + $0xe8] sm:$0xff]
      %55 = vrot.lane.b32.xlu0 %v53, 96
      %v56 = vpop.permute.xlu0 %55
      %58 = vst.msk [vmem:[#allocation3] sm:$0xff] %vm51, %v56
    $region29: #{tpu_custom_call.1} parent=1 // pred_fallthru
      _
    %v59 = vld [vmem:[%s1] sm:$0xff]
    %v60 = vld [vmem:[%s1 + $0x8] sm:$0xff]
    %v61 = vld [vmem:[%s1 + $0x10] sm:$0xff]
    %v62 = vld [vmem:[%s1 + $0x18] sm:$0xff]
    %v63 = vld [vmem:[%s1 + $0x20] sm:$0xff]
    %v64 = vld [vmem:[%s1 + $0x28] sm:$0xff]
    %v65 = vld [vmem:[%s1 + $0x30] sm:$0xff]
    %v66 = vld [vmem:[%s1 + $0x38] sm:$0xff]
    %v67 = vld [vmem:[#allocation7] sm:$0xff]
    %v68 = vld [vmem:[#allocation7 + $0x8] sm:$0xff]
    %v69 = vld [vmem:[#allocation7 + $0x10] sm:$0x1]
    %v70 = vld [vmem:[#allocation7 + $0x18] sm:$0xff]
    %v71 = vld [vmem:[#allocation7 + $0x20] sm:$0xff]
    %v72 = vld [vmem:[#allocation7 + $0x28] sm:$0xff]
    %v73 = vld [vmem:[#allocation7 + $0x30] sm:$0xff]
    %v74 = vld [vmem:[#allocation7 + $0x38] sm:$0xff]
    %v75 = vld [vmem:[#allocation7 + $0x40] sm:$0xff]
    %v76 = vld [vmem:[#allocation7 + $0x48] sm:$0xff]
    %v77 = vld [vmem:[#allocation7 + $0x50] sm:$0xff]
    %v78 = vld [vmem:[#allocation7 + $0x58] sm:$0x1]
    %v79 = vlaneseq
    %v80 = vshrl.u32 %v79, 7
    %v81 = vsub.s32 0, %v80
    %v82 = vrot.slane %v69, %v81
    %vm83 = vcmask 130048
    %v85 = vsel %vm83, %v59, 0
    %v88 = vsel %vm83, %v60, 0
    %v91 = vsel %vm83, %v61, 0
    %v94 = vsel %vm83, %v62, 0
    %v97 = vsel %vm83, %v63, 0
    %v100 = vsel %vm83, %v64, 0
    %v103 = vsel %vm83, %v65, 0
    %v106 = vsel %vm83, %v66, 0
    %108 = vmatprep.subr.mxu0 0.0
    %109 = vmatpush1.msra.mxu0 %v67
    %110 = vmatprep.subr.mxu0 0.0
    %111 = vmatpush1.msra.mxu0 %v68
    %112 = vmatprep.subr.mxu0 0.0
    %113 = vmatpush1.msra.mxu0 0.0
    %114 = vmatprep.subr.mxu0 0.0
    %115 = vmatpush1.msra.mxu0 0.0
    %116 = vmatprep.subr.mxu0 0.0
    %117 = vmatpush1.msra.mxu0 0.0
    %118 = vmatprep.subr.mxu0 0.0
    %119 = vmatpush1.msra.mxu0 0.0
    %120 = vmatprep.subr.mxu0 0.0
    %121 = vmatpush1.msra.mxu0 0.0
    %122 = vmatprep.subr.mxu0 0.0
    %123 = vmatpush1.msra.mxu0 0.0
    %124 = vmatprep.subr.mxu0 0.0
    %125 = vmatpush1.msra.mxu0 0.0
    %126 = vmatprep.subr.mxu0 0.0
    %127 = vmatpush1.msra.mxu0 0.0
    %128 = vmatprep.subr.mxu0 0.0
    %129 = vmatpush1.msra.mxu0 0.0
    %130 = vmatprep.subr.mxu0 0.0
    %131 = vmatpush1.msra.mxu0 0.0
    %132 = vmatprep.subr.mxu0 0.0
    %133 = vmatpush1.msra.mxu0 0.0
    %134 = vmatprep.subr.mxu0 0.0
    %135 = vmatpush1.msra.mxu0 0.0
    %136 = vmatprep.subr.mxu0 0.0
    %137 = vmatpush1.msra.mxu0 0.0
    %138 = vmatprep.subr.mxu0 0.0
    %139 = vmatpush1.msra.mxu0 0.0
    %140 = vmatprep.subr.mxu0 0.0
    %141 = vmatpush1.msra.mxu0 0.0
    %142 = vmatprep.subr.mxu0 0.0
    %143 = vmatpush1.msra.mxu0 0.0
    %144 = vmatprep.subr.mxu0 0.0
    %145 = vmatpush1.msra.mxu0 0.0
    %146 = vmatprep.subr.mxu0 0.0
    %147 = vmatpush1.msra.mxu0 0.0
    %148 = vmatprep.subr.mxu0 0.0
    %149 = vmatpush1.msra.mxu0 0.0
    %150 = vmatprep.subr.mxu0 0.0
    %151 = vmatpush1.msra.mxu0 0.0
    %152 = vmatprep.subr.mxu0 0.0
    %153 = vmatpush1.msra.mxu0 0.0
    %154 = vmatprep.subr.mxu0 0.0
    %155 = vmatpush1.msra.mxu0 0.0
    %156 = vmatprep.subr.mxu0 0.0
    %157 = vmatpush1.msra.mxu0 0.0
    %158 = vmatprep.subr.mxu0 0.0
    %159 = vmatpush1.msra.mxu0 0.0
    %160 = vmatprep.subr.mxu0 0.0
    %161 = vmatpush1.msra.mxu0 0.0
    %162 = vmatprep.subr.mxu0 0.0
    %163 = vmatpush1.msra.mxu0 0.0
    %164 = vmatprep.subr.mxu0 0.0
    %165 = vmatpush1.msra.mxu0 0.0
    %166 = vmatprep.subr.mxu0 0.0
    %167 = vmatpush1.msra.mxu0 0.0
    %168 = vmatprep.subr.mxu0 0.0
    %169 = vmatpush1.msra.mxu0 0.0
    %170 = vmatprep.subr.mxu0 0.0
    %171 = vmatpush1.msra.mxu0 0.0
    %172 = vmatprep.mubr.f32.mxu0 0.0
    %173 = vmatmul.mubr.f32.gmra.mrb[0].mxu0 %v85
    %v174 = vpop.f32.mrb[0].mxu0
    %v175 = vadd.f32 %v82, %v174
    %v176 = vpop.f32.mrb[0].mxu0
    %177 = vmatprep.mubr.f32.mxu0 0.0
    %178 = vmatmul.mubr.f32.gmra.mrb[0].mxu0 %v88
    %v179 = vpop.f32.mrb[0].mxu0
    %v180 = vadd.f32 %v82, %v179
    %v181 = vpop.f32.mrb[0].mxu0
    %182 = vmatprep.mubr.f32.mxu0 0.0
    %183 = vmatmul.mubr.f32.gmra.mrb[0].mxu0 %v91
    %v184 = vpop.f32.mrb[0].mxu0
    %v185 = vadd.f32 %v82, %v184
    %v186 = vpop.f32.mrb[0].mxu0
    %187 = vmatprep.mubr.f32.mxu0 0.0
    %188 = vmatmul.mubr.f32.gmra.mrb[0].mxu0 %v94
    %v189 = vpop.f32.mrb[0].mxu0
    %v190 = vadd.f32 %v82, %v189
    %v191 = vpop.f32.mrb[0].mxu0
    %192 = vmatprep.mubr.f32.mxu0 0.0
    %193 = vmatmul.mubr.f32.gmra.mrb[0].mxu0 %v97
    %v194 = vpop.f32.mrb[0].mxu0
    %v195 = vadd.f32 %v82, %v194
    %v196 = vpop.f32.mrb[0].mxu0
    %197 = vmatprep.mubr.f32.mxu0 0.0
    %198 = vmatmul.mubr.f32.gmra.mrb[0].mxu0 %v100
    %v199 = vpop.f32.mrb[0].mxu0
    %v200 = vadd.f32 %v82, %v199
    %v201 = vpop.f32.mrb[0].mxu0
    %202 = vmatprep.mubr.f32.mxu0 0.0
    %203 = vmatmul.mubr.f32.gmra.mrb[0].mxu0 %v103
    %v204 = vpop.f32.mrb[0].mxu0
    %v205 = vadd.f32 %v82, %v204
    %v206 = vpop.f32.mrb[0].mxu0
    %207 = vmatprep.mubr.f32.mxu0 0.0
    %208 = vmatmul.mubr.f32.gmra.mrb[0].mxu0 %v106
    %v209 = vpop.f32.mrb[0].mxu0
    %v210 = vadd.f32 %v82, %v209
    %v211 = vpop.f32.mrb[0].mxu0
    %212 = vdwg.mxu0
    %v213 = vmax.f32 %v175, 0.0
    %v214 = vmax.f32 %v180, 0.0
    %v215 = vmax.f32 %v185, 0.0
    %v216 = vmax.f32 %v190, 0.0
    %v217 = vmax.f32 %v195, 0.0
    %v218 = vmax.f32 %v200, 0.0
    %v219 = vmax.f32 %v205, 0.0
    %v220 = vmax.f32 %v210, 0.0
    %v221 = vlaneseq
    %v222 = vshrl.u32 %v221, 7
    %v223 = vsub.s32 0, %v222
    %v224 = vrot.slane %v78, %v223
    %vm225 = vcmask 523264
    %v227 = vsel %vm225, %v213, 0
    %v230 = vsel %vm225, %v214, 0
    %v233 = vsel %vm225, %v215, 0
    %v236 = vsel %vm225, %v216, 0
    %v239 = vsel %vm225, %v217, 0
    %v242 = vsel %vm225, %v218, 0
    %v245 = vsel %vm225, %v219, 0
    %v248 = vsel %vm225, %v220, 0
    %250 = vmatprep.subr.mxu0 0.0
    %251 = vmatpush1.msra.mxu0 %v70
    %252 = vmatprep.subr.mxu0 0.0
    %253 = vmatpush1.msra.mxu0 %v71
    %254 = vmatprep.subr.mxu0 0.0
    %255 = vmatpush1.msra.mxu0 %v72
    %256 = vmatprep.subr.mxu0 0.0
    %257 = vmatpush1.msra.mxu0 %v73
    %258 = vmatprep.subr.mxu0 0.0
    %259 = vmatpush1.msra.mxu0 %v74
    %260 = vmatprep.subr.mxu0 0.0
    %261 = vmatpush1.msra.mxu0 %v75
    %262 = vmatprep.subr.mxu0 0.0
    %263 = vmatpush1.msra.mxu0 %v76
    %264 = vmatprep.subr.mxu0 0.0
    %265 = vmatpush1.msra.mxu0 %v77
    %266 = vmatprep.subr.mxu0 0.0
    %267 = vmatpush1.msra.mxu0 0.0
    %268 = vmatprep.subr.mxu0 0.0
    %269 = vmatpush1.msra.mxu0 0.0
    %270 = vmatprep.subr.mxu0 0.0
    %271 = vmatpush1.msra.mxu0 0.0
    %272 = vmatprep.subr.mxu0 0.0
    %273 = vmatpush1.msra.mxu0 0.0
    %274 = vmatprep.subr.mxu0 0.0
    %275 = vmatpush1.msra.mxu0 0.0
    %276 = vmatprep.subr.mxu0 0.0
    %277 = vmatpush1.msra.mxu0 0.0
    %278 = vmatprep.subr.mxu0 0.0
    %279 = vmatpush1.msra.mxu0 0.0
    %280 = vmatprep.subr.mxu0 0.0
    %281 = vmatpush1.msra.mxu0 0.0
    %282 = vmatprep.subr.mxu0 0.0
    %283 = vmatpush1.msra.mxu0 0.0
    %284 = vmatprep.subr.mxu0 0.0
    %285 = vmatpush1.msra.mxu0 0.0
    %286 = vmatprep.subr.mxu0 0.0
    %287 = vmatpush1.msra.mxu0 0.0
    %288 = vmatprep.subr.mxu0 0.0
    %289 = vmatpush1.msra.mxu0 0.0
    %290 = vmatprep.subr.mxu0 0.0
    %291 = vmatpush1.msra.mxu0 0.0
    %292 = vmatprep.subr.mxu0 0.0
    %293 = vmatpush1.msra.mxu0 0.0
    %294 = vmatprep.subr.mxu0 0.0
    %295 = vmatpush1.msra.mxu0 0.0
    %296 = vmatprep.subr.mxu0 0.0
    %297 = vmatpush1.msra.mxu0 0.0
    %298 = vmatprep.subr.mxu0 0.0
    %299 = vmatpush1.msra.mxu0 0.0
    %300 = vmatprep.subr.mxu0 0.0
    %301 = vmatpush1.msra.mxu0 0.0
    %302 = vmatprep.subr.mxu0 0.0
    %303 = vmatpush1.msra.mxu0 0.0
    %304 = vmatprep.subr.mxu0 0.0
    %305 = vmatpush1.msra.mxu0 0.0
    %306 = vmatprep.subr.mxu0 0.0
    %307 = vmatpush1.msra.mxu0 0.0
    %308 = vmatprep.subr.mxu0 0.0
    %309 = vmatpush1.msra.mxu0 0.0
    %310 = vmatprep.subr.mxu0 0.0
    %311 = vmatpush1.msra.mxu0 0.0
    %312 = vmatprep.subr.mxu0 0.0
    %313 = vmatpush1.msra.mxu0 0.0
    %314 = vmatprep.mubr.f32.mxu0 0.0
    %315 = vmatmul.mubr.f32.gmra.mrb[0].mxu0 %v227
    %v316 = vpop.f32.mrb[0].mxu0
    %v317 = vadd.f32 %v224, %v316
    %v318 = vpop.f32.mrb[0].mxu0
    %319 = vmatprep.mubr.f32.mxu0 0.0
    %320 = vmatmul.mubr.f32.gmra.mrb[0].mxu0 %v230
    %v321 = vpop.f32.mrb[0].mxu0
    %v322 = vadd.f32 %v224, %v321
    %v323 = vpop.f32.mrb[0].mxu0
    %324 = vmatprep.mubr.f32.mxu0 0.0
    %325 = vmatmul.mubr.f32.gmra.mrb[0].mxu0 %v233
    %v326 = vpop.f32.mrb[0].mxu0
    %v327 = vadd.f32 %v224, %v326
    %v328 = vpop.f32.mrb[0].mxu0
    %329 = vmatprep.mubr.f32.mxu0 0.0
    %330 = vmatmul.mubr.f32.gmra.mrb[0].mxu0 %v236
    %v331 = vpop.f32.mrb[0].mxu0
    %v332 = vadd.f32 %v224, %v331
    %v333 = vpop.f32.mrb[0].mxu0
    %334 = vmatprep.mubr.f32.mxu0 0.0
    %335 = vmatmul.mubr.f32.gmra.mrb[0].mxu0 %v239
    %v336 = vpop.f32.mrb[0].mxu0
    %v337 = vadd.f32 %v224, %v336
    %v338 = vpop.f32.mrb[0].mxu0
    %339 = vmatprep.mubr.f32.mxu0 0.0
    %340 = vmatmul.mubr.f32.gmra.mrb[0].mxu0 %v242
    %v341 = vpop.f32.mrb[0].mxu0
    %v342 = vadd.f32 %v224, %v341
    %v343 = vpop.f32.mrb[0].mxu0
    %344 = vmatprep.mubr.f32.mxu0 0.0
    %345 = vmatmul.mubr.f32.gmra.mrb[0].mxu0 %v245
    %v346 = vpop.f32.mrb[0].mxu0
    %v347 = vadd.f32 %v224, %v346
    %v348 = vpop.f32.mrb[0].mxu0
    %349 = vmatprep.mubr.f32.mxu0 0.0
    %350 = vmatmul.mubr.f32.gmra.mrb[0].mxu0 %v248
    %v351 = vpop.f32.mrb[0].mxu0
    %v352 = vadd.f32 %v224, %v351
    %v353 = vpop.f32.mrb[0].mxu0
    %354 = vdwg.mxu0
    %v355 = vmax.f32 %v317, 0.0
    %v356 = vmax.f32 %v322, 0.0
    %v357 = vmax.f32 %v327, 0.0
    %v358 = vmax.f32 %v332, 0.0
    %v359 = vmax.f32 %v337, 0.0
    %v360 = vmax.f32 %v342, 0.0
    %v361 = vmax.f32 %v347, 0.0
    %v362 = vmax.f32 %v352, 0.0
    %vm363 = vcmask 261120
    %364 = vst.msk [vmem:[#allocation4] sm:$0xff] %vm363, %v355
    %365 = vst.msk [vmem:[#allocation4 + $0x8] sm:$0xff] %vm363, %v356
    %366 = vst.msk [vmem:[#allocation4 + $0x10] sm:$0xff] %vm363, %v357
    %367 = vst.msk [vmem:[#allocation4 + $0x18] sm:$0xff] %vm363, %v358
    %368 = vst.msk [vmem:[#allocation4 + $0x20] sm:$0xff] %vm363, %v359
    %369 = vst.msk [vmem:[#allocation4 + $0x28] sm:$0xff] %vm363, %v360
    %370 = vst.msk [vmem:[#allocation4 + $0x30] sm:$0xff] %vm363, %v361
    %371 = vst.msk [vmem:[#allocation4 + $0x38] sm:$0xff] %vm363, %v362
    %v372 = vld [vmem:[#allocation7 + $0x60] sm:$0xff]
    %v373 = vld [vmem:[#allocation7 + $0x68] sm:$0xff]
    %v374 = vld [vmem:[#allocation7 + $0x70] sm:$0xff]
    %v375 = vld [vmem:[#allocation7 + $0x78] sm:$0xff]
    %v376 = vld [vmem:[#allocation7 + $0x80] sm:$0xff]
    %v377 = vld [vmem:[#allocation7 + $0x88] sm:$0xff]
    %v378 = vld [vmem:[#allocation7 + $0x90] sm:$0xff]
    %v379 = vld [vmem:[#allocation7 + $0x98] sm:$0xff]
    %v380 = vld [vmem:[#allocation2] sm:$0xff]
    %v381 = vld [vmem:[#allocation3] sm:$0xff]
    %v382 = vld [vmem:[#allocation4] sm:$0xff]
    %v384 = vsel %vm363, %v380, 0
    %386 = vmatprep.subr.mxu0 0.0
    %387 = vmatpush1.msra.mxu0 %v376
    %388 = vmatprep.subr.mxu0 0.0
    %389 = vmatpush1.msra.mxu0 %v377
    %390 = vmatprep.subr.mxu0 0.0
    %391 = vmatpush1.msra.mxu0 %v378
    %392 = vmatprep.subr.mxu0 0.0
    %393 = vmatpush1.msra.mxu0 %v379
    %394 = vmatprep.subr.mxu0 0.0
    %395 = vmatpush1.msra.mxu0 0.0
    %396 = vmatprep.subr.mxu0 0.0
    %397 = vmatpush1.msra.mxu0 0.0
    %398 = vmatprep.subr.mxu0 0.0
    %399 = vmatpush1.msra.mxu0 0.0
    %400 = vmatprep.subr.mxu0 0.0
    %401 = vmatpush1.msra.mxu0 0.0
    %402 = vmatprep.subr.mxu0 0.0
    %403 = vmatpush1.msra.mxu0 0.0
    %404 = vmatprep.subr.mxu0 0.0
    %405 = vmatpush1.msra.mxu0 0.0
    %406 = vmatprep.subr.mxu0 0.0
    %407 = vmatpush1.msra.mxu0 0.0
    %408 = vmatprep.subr.mxu0 0.0
    %409 = vmatpush1.msra.mxu0 0.0
    %410 = vmatprep.subr.mxu0 0.0
    %411 = vmatpush1.msra.mxu0 0.0
    %412 = vmatprep.subr.mxu0 0.0
    %413 = vmatpush1.msra.mxu0 0.0
    %414 = vmatprep.subr.mxu0 0.0
    %415 = vmatpush1.msra.mxu0 0.0
    %416 = vmatprep.subr.mxu0 0.0
    %417 = vmatpush1.msra.mxu0 0.0
    %418 = vmatprep.subr.mxu0 0.0
    %419 = vmatpush1.msra.mxu0 0.0
    %420 = vmatprep.subr.mxu0 0.0
    %421 = vmatpush1.msra.mxu0 0.0
    %422 = vmatprep.subr.mxu0 0.0
    %423 = vmatpush1.msra.mxu0 0.0
    %424 = vmatprep.subr.mxu0 0.0
    %425 = vmatpush1.msra.mxu0 0.0
    %426 = vmatprep.subr.mxu0 0.0
    %427 = vmatpush1.msra.mxu0 0.0
    %428 = vmatprep.subr.mxu0 0.0
    %429 = vmatpush1.msra.mxu0 0.0
    %430 = vmatprep.subr.mxu0 0.0
    %431 = vmatpush1.msra.mxu0 0.0
    %432 = vmatprep.subr.mxu0 0.0
    %433 = vmatpush1.msra.mxu0 0.0
    %434 = vmatprep.subr.mxu0 0.0
    %435 = vmatpush1.msra.mxu0 0.0
    %436 = vmatprep.subr.mxu0 0.0
    %437 = vmatpush1.msra.mxu0 0.0
    %438 = vmatprep.subr.mxu0 0.0
    %439 = vmatpush1.msra.mxu0 0.0
    %440 = vmatprep.subr.mxu0 0.0
    %441 = vmatpush1.msra.mxu0 0.0
    %442 = vmatprep.subr.mxu0 0.0
    %443 = vmatpush1.msra.mxu0 0.0
    %444 = vmatprep.subr.mxu0 0.0
    %445 = vmatpush1.msra.mxu0 0.0
    %446 = vmatprep.subr.mxu0 0.0
    %447 = vmatpush1.msra.mxu0 0.0
    %448 = vmatprep.subr.mxu0 0.0
    %449 = vmatpush1.msra.mxu0 0.0
    %450 = vmatprep.mubr.f32.mxu0 0.0
    %451 = vmatmul.mubr.f32.gmra.mrb[0].mxu0 %v384
    %v452 = vpop.f32.mrb[0].mxu0
    %v453 = vadd.f32 0.0, %v452
    %v454 = vpop.f32.mrb[0].mxu0
    %455 = vdwg.mxu0
    %v457 = vsel %vm363, %v382, 0
    %459 = vmatprep.subr.mxu0 0.0
    %460 = vmatpush1.msra.mxu0 %v372
    %461 = vmatprep.subr.mxu0 0.0
    %462 = vmatpush1.msra.mxu0 %v373
    %463 = vmatprep.subr.mxu0 0.0
    %464 = vmatpush1.msra.mxu0 %v374
    %465 = vmatprep.subr.mxu0 0.0
    %466 = vmatpush1.msra.mxu0 %v375
    %467 = vmatprep.subr.mxu0 0.0
    %468 = vmatpush1.msra.mxu0 0.0
    %469 = vmatprep.subr.mxu0 0.0
    %470 = vmatpush1.msra.mxu0 0.0
    %471 = vmatprep.subr.mxu0 0.0
    %472 = vmatpush1.msra.mxu0 0.0
    %473 = vmatprep.subr.mxu0 0.0
    %474 = vmatpush1.msra.mxu0 0.0
    %475 = vmatprep.subr.mxu0 0.0
    %476 = vmatpush1.msra.mxu0 0.0
    %477 = vmatprep.subr.mxu0 0.0
    %478 = vmatpush1.msra.mxu0 0.0
    %479 = vmatprep.subr.mxu0 0.0
    %480 = vmatpush1.msra.mxu0 0.0
    %481 = vmatprep.subr.mxu0 0.0
    %482 = vmatpush1.msra.mxu0 0.0
    %483 = vmatprep.subr.mxu0 0.0
    %484 = vmatpush1.msra.mxu0 0.0
    %485 = vmatprep.subr.mxu0 0.0
    %486 = vmatpush1.msra.mxu0 0.0
    %487 = vmatprep.subr.mxu0 0.0
    %488 = vmatpush1.msra.mxu0 0.0
    %489 = vmatprep.subr.mxu0 0.0
    %490 = vmatpush1.msra.mxu0 0.0
    %491 = vmatprep.subr.mxu0 0.0
    %492 = vmatpush1.msra.mxu0 0.0
    %493 = vmatprep.subr.mxu0 0.0
    %494 = vmatpush1.msra.mxu0 0.0
    %495 = vmatprep.subr.mxu0 0.0
    %496 = vmatpush1.msra.mxu0 0.0
    %497 = vmatprep.subr.mxu0 0.0
    %498 = vmatpush1.msra.mxu0 0.0
    %499 = vmatprep.subr.mxu0 0.0
    %500 = vmatpush1.msra.mxu0 0.0
    %501 = vmatprep.subr.mxu0 0.0
    %502 = vmatpush1.msra.mxu0 0.0
    %503 = vmatprep.subr.mxu0 0.0
    %504 = vmatpush1.msra.mxu0 0.0
    %505 = vmatprep.subr.mxu0 0.0
    %506 = vmatpush1.msra.mxu0 0.0
    %507 = vmatprep.subr.mxu0 0.0
    %508 = vmatpush1.msra.mxu0 0.0
    %509 = vmatprep.subr.mxu0 0.0
    %510 = vmatpush1.msra.mxu0 0.0
    %511 = vmatprep.subr.mxu0 0.0
    %512 = vmatpush1.msra.mxu0 0.0
    %513 = vmatprep.subr.mxu0 0.0
    %514 = vmatpush1.msra.mxu0 0.0
    %515 = vmatprep.subr.mxu0 0.0
    %516 = vmatpush1.msra.mxu0 0.0
    %517 = vmatprep.subr.mxu0 0.0
    %518 = vmatpush1.msra.mxu0 0.0
    %519 = vmatprep.subr.mxu0 0.0
    %520 = vmatpush1.msra.mxu0 0.0
    %521 = vmatprep.subr.mxu0 0.0
    %522 = vmatpush1.msra.mxu0 0.0
    %523 = vmatprep.mubr.f32.mxu0 0.0
    %524 = vmatmul.mubr.f32.gmra.mrb[0].mxu0 %v457
    %v525 = vpop.f32.mrb[0].mxu0
    %v526 = vadd.f32 %v453, %v525
    %v527 = vpop.f32.mrb[0].mxu0
    %528 = vdwg.mxu0
    %v529 = vxor.u32 %v526, 2147483648
    %v530 = vmul.f32 %v529, 1.442695
    %v531 = vpow.pop %v530
    %v532 = vadd.f32 %v531, 1.0
    %v533 = vrcp.pop %v532
    %v534 = vmul.f32 1.0, %v533
    %v535 = vtanh.pop %v526
    %537 = vrot.lane.b32.xlu0 %v381, 32
    %v538 = vpop.permute.xlu0 %537
    %v540 = vmul.f32 %v534, %v538
    %542 = vrot.lane.b32.xlu0 %v535, 64
    %v543 = vpop.permute.xlu0 %542
    %v545 = vmul.f32 %v534, %v543
    %547 = vrot.lane.b32.xlu0 %v545, 32
    %v548 = vpop.permute.xlu0 %547
    %v550 = vadd.f32 %v540, %v548
    %v551 = vtanh.pop %v550
    %553 = vrot.lane.b32.xlu0 %v551, 64
    %v554 = vpop.permute.xlu0 %553
    %v556 = vmul.f32 %v534, %v554
    %558 = vrot.lane.b32.xlu0 %v556, 32
    %v559 = vpop.permute.xlu0 %558
    %561 = vst.msk [vmem:[#allocation2] sm:$0xff] %vm363, %v559
    %563 = vrot.lane.b32.xlu0 %v550, 96
    %v564 = vpop.permute.xlu0 %563
    %566 = vst.msk [vmem:[#allocation3] sm:$0xff] %vm363, %v564
    %567 = vst.msk [vmem:[#allocation5] sm:$0xff] %vm363, %v559
    %568 = vst.msk [vmem:[#allocation6] sm:$0xff] %vm363, %v564
    %v569 = vld [vmem:[#allocation2] sm:$0xff]
    %v570 = vld [vmem:[#allocation3] sm:$0xff]
    %s571 = scalar_lea.vmem [#allocation4], 8
    %v572 = vld [vmem:[%s571] sm:$0xff]
    %v574 = vsel %vm363, %v569, 0
    %576 = vmatprep.subr.mxu0 0.0
    %577 = vmatpush1.msra.mxu0 %v376
    %578 = vmatprep.subr.mxu0 0.0
    %579 = vmatpush1.msra.mxu0 %v377
    %580 = vmatprep.subr.mxu0 0.0
    %581 = vmatpush1.msra.mxu0 %v378
    %582 = vmatprep.subr.mxu0 0.0
    %583 = vmatpush1.msra.mxu0 %v379
    %584 = vmatprep.subr.mxu0 0.0
    %585 = vmatpush1.msra.mxu0 0.0
    %586 = vmatprep.subr.mxu0 0.0
    %587 = vmatpush1.msra.mxu0 0.0
    %588 = vmatprep.subr.mxu0 0.0
    %589 = vmatpush1.msra.mxu0 0.0
    %590 = vmatprep.subr.mxu0 0.0
    %591 = vmatpush1.msra.mxu0 0.0
    %592 = vmatprep.subr.mxu0 0.0
    %593 = vmatpush1.msra.mxu0 0.0
    %594 = vmatprep.subr.mxu0 0.0
    %595 = vmatpush1.msra.mxu0 0.0
    %596 = vmatprep.subr.mxu0 0.0
    %597 = vmatpush1.msra.mxu0 0.0
    %598 = vmatprep.subr.mxu0 0.0
    %599 = vmatpush1.msra.mxu0 0.0
    %600 = vmatprep.subr.mxu0 0.0
    %601 = vmatpush1.msra.mxu0 0.0
    %602 = vmatprep.subr.mxu0 0.0
    %603 = vmatpush1.msra.mxu0 0.0
    %604 = vmatprep.subr.mxu0 0.0
    %605 = vmatpush1.msra.mxu0 0.0
    %606 = vmatprep.subr.mxu0 0.0
    %607 = vmatpush1.msra.mxu0 0.0
    %608 = vmatprep.subr.mxu0 0.0
    %609 = vmatpush1.msra.mxu0 0.0
    %610 = vmatprep.subr.mxu0 0.0
    %611 = vmatpush1.msra.mxu0 0.0
    %612 = vmatprep.subr.mxu0 0.0
    %613 = vmatpush1.msra.mxu0 0.0
    %614 = vmatprep.subr.mxu0 0.0
    %615 = vmatpush1.msra.mxu0 0.0
    %616 = vmatprep.subr.mxu0 0.0
    %617 = vmatpush1.msra.mxu0 0.0
    %618 = vmatprep.subr.mxu0 0.0
    %619 = vmatpush1.msra.mxu0 0.0
    %620 = vmatprep.subr.mxu0 0.0
    %621 = vmatpush1.msra.mxu0 0.0
    %622 = vmatprep.subr.mxu0 0.0
    %623 = vmatpush1.msra.mxu0 0.0
    %624 = vmatprep.subr.mxu0 0.0
    %625 = vmatpush1.msra.mxu0 0.0
    %626 = vmatprep.subr.mxu0 0.0
    %627 = vmatpush1.msra.mxu0 0.0
    %628 = vmatprep.subr.mxu0 0.0
    %629 = vmatpush1.msra.mxu0 0.0
    %630 = vmatprep.subr.mxu0 0.0
    %631 = vmatpush1.msra.mxu0 0.0
    %632 = vmatprep.subr.mxu0 0.0
    %633 = vmatpush1.msra.mxu0 0.0
    %634 = vmatprep.subr.mxu0 0.0
    %635 = vmatpush1.msra.mxu0 0.0
    %636 = vmatprep.subr.mxu0 0.0
    %637 = vmatpush1.msra.mxu0 0.0
    %638 = vmatprep.subr.mxu0 0.0
    %639 = vmatpush1.msra.mxu0 0.0
    %640 = vmatprep.mubr.f32.mxu0 0.0
    %641 = vmatmul.mubr.f32.gmra.mrb[0].mxu0 %v574
    %v642 = vpop.f32.mrb[0].mxu0
    %v643 = vadd.f32 0.0, %v642
    %v644 = vpop.f32.mrb[0].mxu0
    %645 = vdwg.mxu0
    %v647 = vsel %vm363, %v572, 0
    %649 = vmatprep.subr.mxu0 0.0
    %650 = vmatpush1.msra.mxu0 %v372
    %651 = vmatprep.subr.mxu0 0.0
    %652 = vmatpush1.msra.mxu0 %v373
    %653 = vmatprep.subr.mxu0 0.0
    %654 = vmatpush1.msra.mxu0 %v374
    %655 = vmatprep.subr.mxu0 0.0
    %656 = vmatpush1.msra.mxu0 %v375
    %657 = vmatprep.subr.mxu0 0.0
    %658 = vmatpush1.msra.mxu0 0.0
    %659 = vmatprep.subr.mxu0 0.0
    %660 = vmatpush1.msra.mxu0 0.0
    %661 = vmatprep.subr.mxu0 0.0
    %662 = vmatpush1.msra.mxu0 0.0
    %663 = vmatprep.subr.mxu0 0.0
    %664 = vmatpush1.msra.mxu0 0.0
    %665 = vmatprep.subr.mxu0 0.0
    %666 = vmatpush1.msra.mxu0 0.0
    %667 = vmatprep.subr.mxu0 0.0
    %668 = vmatpush1.msra.mxu0 0.0
    %669 = vmatprep.subr.mxu0 0.0
    %670 = vmatpush1.msra.mxu0 0.0
    %671 = vmatprep.subr.mxu0 0.0
    %672 = vmatpush1.msra.mxu0 0.0
    %673 = vmatprep.subr.mxu0 0.0
    %674 = vmatpush1.msra.mxu0 0.0
    %675 = vmatprep.subr.mxu0 0.0
    %676 = vmatpush1.msra.mxu0 0.0
    %677 = vmatprep.subr.mxu0 0.0
    %678 = vmatpush1.msra.mxu0 0.0
    %679 = vmatprep.subr.mxu0 0.0
    %680 = vmatpush1.msra.mxu0 0.0
    %681 = vmatprep.subr.mxu0 0.0
    %682 = vmatpush1.msra.mxu0 0.0
    %683 = vmatprep.subr.mxu0 0.0
    %684 = vmatpush1.msra.mxu0 0.0
    %685 = vmatprep.subr.mxu0 0.0
    %686 = vmatpush1.msra.mxu0 0.0
    %687 = vmatprep.subr.mxu0 0.0
    %688 = vmatpush1.msra.mxu0 0.0
    %689 = vmatprep.subr.mxu0 0.0
    %690 = vmatpush1.msra.mxu0 0.0
    %691 = vmatprep.subr.mxu0 0.0
    %692 = vmatpush1.msra.mxu0 0.0
    %693 = vmatprep.subr.mxu0 0.0
    %694 = vmatpush1.msra.mxu0 0.0
    %695 = vmatprep.subr.mxu0 0.0
    %696 = vmatpush1.msra.mxu0 0.0
    %697 = vmatprep.subr.mxu0 0.0
    %698 = vmatpush1.msra.mxu0 0.0
    %699 = vmatprep.subr.mxu0 0.0
    %700 = vmatpush1.msra.mxu0 0.0
    %701 = vmatprep.subr.mxu0 0.0
    %702 = vmatpush1.msra.mxu0 0.0
    %703 = vmatprep.subr.mxu0 0.0
    %704 = vmatpush1.msra.mxu0 0.0
    %705 = vmatprep.subr.mxu0 0.0
    %706 = vmatpush1.msra.mxu0 0.0
    %707 = vmatprep.subr.mxu0 0.0
    %708 = vmatpush1.msra.mxu0 0.0
    %709 = vmatprep.subr.mxu0 0.0
    %710 = vmatpush1.msra.mxu0 0.0
    %711 = vmatprep.subr.mxu0 0.0
    %712 = vmatpush1.msra.mxu0 0.0
    %713 = vmatprep.mubr.f32.mxu0 0.0
    %714 = vmatmul.mubr.f32.gmra.mrb[0].mxu0 %v647
    %v715 = vpop.f32.mrb[0].mxu0
    %v716 = vadd.f32 %v643, %v715
    %v717 = vpop.f32.mrb[0].mxu0
    %718 = vdwg.mxu0
    %v719 = vxor.u32 %v716, 2147483648
    %v720 = vmul.f32 %v719, 1.442695
    %v721 = vpow.pop %v720
    %v722 = vadd.f32 %v721, 1.0
    %v723 = vrcp.pop %v722
    %v724 = vmul.f32 1.0, %v723
    %v725 = vtanh.pop %v716
    %727 = vrot.lane.b32.xlu0 %v570, 32
    %v728 = vpop.permute.xlu0 %727
    %v730 = vmul.f32 %v724, %v728
    %732 = vrot.lane.b32.xlu0 %v725, 64
    %v733 = vpop.permute.xlu0 %732
    %v735 = vmul.f32 %v724, %v733
    %737 = vrot.lane.b32.xlu0 %v735, 32
    %v738 = vpop.permute.xlu0 %737
    %v740 = vadd.f32 %v730, %v738
    %v741 = vtanh.pop %v740
    %743 = vrot.lane.b32.xlu0 %v741, 64
    %v744 = vpop.permute.xlu0 %743
    %v746 = vmul.f32 %v724, %v744
    %748 = vrot.lane.b32.xlu0 %v746, 32
    %v749 = vpop.permute.xlu0 %748
    %751 = vst.msk [vmem:[#allocation2] sm:$0xff] %vm363, %v749
    %753 = vrot.lane.b32.xlu0 %v740, 96
    %v754 = vpop.permute.xlu0 %753
    %756 = vst.msk [vmem:[#allocation3] sm:$0xff] %vm363, %v754
    %s757 = scalar_lea.vmem [#allocation5], 8
    %758 = vst.msk [vmem:[%s757] sm:$0xff] %vm363, %v749
    %s759 = scalar_lea.vmem [#allocation6], 8
    %760 = vst.msk [vmem:[%s759] sm:$0xff] %vm363, %v754
    %v761 = vld [vmem:[#allocation2] sm:$0xff]
    %v762 = vld [vmem:[#allocation3] sm:$0xff]
    %s763 = scalar_lea.vmem [#allocation4], 16
    %v764 = vld [vmem:[%s763] sm:$0xff]
    %v766 = vsel %vm363, %v761, 0
    %768 = vmatprep.subr.mxu0 0.0
    %769 = vmatpush1.msra.mxu0 %v376
    %770 = vmatprep.subr.mxu0 0.0
    %771 = vmatpush1.msra.mxu0 %v377
    %772 = vmatprep.subr.mxu0 0.0
    %773 = vmatpush1.msra.mxu0 %v378
    %774 = vmatprep.subr.mxu0 0.0
    %775 = vmatpush1.msra.mxu0 %v379
    %776 = vmatprep.subr.mxu0 0.0
    %777 = vmatpush1.msra.mxu0 0.0
    %778 = vmatprep.subr.mxu0 0.0
    %779 = vmatpush1.msra.mxu0 0.0
    %780 = vmatprep.subr.mxu0 0.0
    %781 = vmatpush1.msra.mxu0 0.0
    %782 = vmatprep.subr.mxu0 0.0
    %783 = vmatpush1.msra.mxu0 0.0
    %784 = vmatprep.subr.mxu0 0.0
    %785 = vmatpush1.msra.mxu0 0.0
    %786 = vmatprep.subr.mxu0 0.0
    %787 = vmatpush1.msra.mxu0 0.0
    %788 = vmatprep.subr.mxu0 0.0
    %789 = vmatpush1.msra.mxu0 0.0
    %790 = vmatprep.subr.mxu0 0.0
    %791 = vmatpush1.msra.mxu0 0.0
    %792 = vmatprep.subr.mxu0 0.0
    %793 = vmatpush1.msra.mxu0 0.0
    %794 = vmatprep.subr.mxu0 0.0
    %795 = vmatpush1.msra.mxu0 0.0
    %796 = vmatprep.subr.mxu0 0.0
    %797 = vmatpush1.msra.mxu0 0.0
    %798 = vmatprep.subr.mxu0 0.0
    %799 = vmatpush1.msra.mxu0 0.0
    %800 = vmatprep.subr.mxu0 0.0
    %801 = vmatpush1.msra.mxu0 0.0
    %802 = vmatprep.subr.mxu0 0.0
    %803 = vmatpush1.msra.mxu0 0.0
    %804 = vmatprep.subr.mxu0 0.0
    %805 = vmatpush1.msra.mxu0 0.0
    %806 = vmatprep.subr.mxu0 0.0
    %807 = vmatpush1.msra.mxu0 0.0
    %808 = vmatprep.subr.mxu0 0.0
    %809 = vmatpush1.msra.mxu0 0.0
    %810 = vmatprep.subr.mxu0 0.0
    %811 = vmatpush1.msra.mxu0 0.0
    %812 = vmatprep.subr.mxu0 0.0
    %813 = vmatpush1.msra.mxu0 0.0
    %814 = vmatprep.subr.mxu0 0.0
    %815 = vmatpush1.msra.mxu0 0.0
    %816 = vmatprep.subr.mxu0 0.0
    %817 = vmatpush1.msra.mxu0 0.0
    %818 = vmatprep.subr.mxu0 0.0
    %819 = vmatpush1.msra.mxu0 0.0
    %820 = vmatprep.subr.mxu0 0.0
    %821 = vmatpush1.msra.mxu0 0.0
    %822 = vmatprep.subr.mxu0 0.0
    %823 = vmatpush1.msra.mxu0 0.0
    %824 = vmatprep.subr.mxu0 0.0
    %825 = vmatpush1.msra.mxu0 0.0
    %826 = vmatprep.subr.mxu0 0.0
    %827 = vmatpush1.msra.mxu0 0.0
    %828 = vmatprep.subr.mxu0 0.0
    %829 = vmatpush1.msra.mxu0 0.0
    %830 = vmatprep.subr.mxu0 0.0
    %831 = vmatpush1.msra.mxu0 0.0
    %832 = vmatprep.mubr.f32.mxu0 0.0
    %833 = vmatmul.mubr.f32.gmra.mrb[0].mxu0 %v766
    %v834 = vpop.f32.mrb[0].mxu0
    %v835 = vadd.f32 0.0, %v834
    %v836 = vpop.f32.mrb[0].mxu0
    %837 = vdwg.mxu0
    %v839 = vsel %vm363, %v764, 0
    %841 = vmatprep.subr.mxu0 0.0
    %842 = vmatpush1.msra.mxu0 %v372
    %843 = vmatprep.subr.mxu0 0.0
    %844 = vmatpush1.msra.mxu0 %v373
    %845 = vmatprep.subr.mxu0 0.0
    %846 = vmatpush1.msra.mxu0 %v374
    %847 = vmatprep.subr.mxu0 0.0
    %848 = vmatpush1.msra.mxu0 %v375
    %849 = vmatprep.subr.mxu0 0.0
    %850 = vmatpush1.msra.mxu0 0.0
    %851 = vmatprep.subr.mxu0 0.0
    %852 = vmatpush1.msra.mxu0 0.0
    %853 = vmatprep.subr.mxu0 0.0
    %854 = vmatpush1.msra.mxu0 0.0
    %855 = vmatprep.subr.mxu0 0.0
    %856 = vmatpush1.msra.mxu0 0.0
    %857 = vmatprep.subr.mxu0 0.0
    %858 = vmatpush1.msra.mxu0 0.0
    %859 = vmatprep.subr.mxu0 0.0
    %860 = vmatpush1.msra.mxu0 0.0
    %861 = vmatprep.subr.mxu0 0.0
    %862 = vmatpush1.msra.mxu0 0.0
    %863 = vmatprep.subr.mxu0 0.0
    %864 = vmatpush1.msra.mxu0 0.0
    %865 = vmatprep.subr.mxu0 0.0
    %866 = vmatpush1.msra.mxu0 0.0
    %867 = vmatprep.subr.mxu0 0.0
    %868 = vmatpush1.msra.mxu0 0.0
    %869 = vmatprep.subr.mxu0 0.0
    %870 = vmatpush1.msra.mxu0 0.0
    %871 = vmatprep.subr.mxu0 0.0
    %872 = vmatpush1.msra.mxu0 0.0
    %873 = vmatprep.subr.mxu0 0.0
    %874 = vmatpush1.msra.mxu0 0.0
    %875 = vmatprep.subr.mxu0 0.0
    %876 = vmatpush1.msra.mxu0 0.0
    %877 = vmatprep.subr.mxu0 0.0
    %878 = vmatpush1.msra.mxu0 0.0
    %879 = vmatprep.subr.mxu0 0.0
    %880 = vmatpush1.msra.mxu0 0.0
    %881 = vmatprep.subr.mxu0 0.0
    %882 = vmatpush1.msra.mxu0 0.0
    %883 = vmatprep.subr.mxu0 0.0
    %884 = vmatpush1.msra.mxu0 0.0
    %885 = vmatprep.subr.mxu0 0.0
    %886 = vmatpush1.msra.mxu0 0.0
    %887 = vmatprep.subr.mxu0 0.0
    %888 = vmatpush1.msra.mxu0 0.0
    %889 = vmatprep.subr.mxu0 0.0
    %890 = vmatpush1.msra.mxu0 0.0
    %891 = vmatprep.subr.mxu0 0.0
    %892 = vmatpush1.msra.mxu0 0.0
    %893 = vmatprep.subr.mxu0 0.0
    %894 = vmatpush1.msra.mxu0 0.0
    %895 = vmatprep.subr.mxu0 0.0
    %896 = vmatpush1.msra.mxu0 0.0
    %897 = vmatprep.subr.mxu0 0.0
    %898 = vmatpush1.msra.mxu0 0.0
    %899 = vmatprep.subr.mxu0 0.0
    %900 = vmatpush1.msra.mxu0 0.0
    %901 = vmatprep.subr.mxu0 0.0
    %902 = vmatpush1.msra.mxu0 0.0
    %903 = vmatprep.subr.mxu0 0.0
    %904 = vmatpush1.msra.mxu0 0.0
    %905 = vmatprep.mubr.f32.mxu0 0.0
    %906 = vmatmul.mubr.f32.gmra.mrb[0].mxu0 %v839
    %v907 = vpop.f32.mrb[0].mxu0
    %v908 = vadd.f32 %v835, %v907
    %v909 = vpop.f32.mrb[0].mxu0
    %910 = vdwg.mxu0
    %v911 = vxor.u32 %v908, 2147483648
    %v912 = vmul.f32 %v911, 1.442695
    %v913 = vpow.pop %v912
    %v914 = vadd.f32 %v913, 1.0
    %v915 = vrcp.pop %v914
    %v916 = vmul.f32 1.0, %v915
    %v917 = vtanh.pop %v908
    %919 = vrot.lane.b32.xlu0 %v762, 32
    %v920 = vpop.permute.xlu0 %919
    %v922 = vmul.f32 %v916, %v920
    %924 = vrot.lane.b32.xlu0 %v917, 64
    %v925 = vpop.permute.xlu0 %924
    %v927 = vmul.f32 %v916, %v925
    %929 = vrot.lane.b32.xlu0 %v927, 32
    %v930 = vpop.permute.xlu0 %929
    %v932 = vadd.f32 %v922, %v930
    %v933 = vtanh.pop %v932
    %935 = vrot.lane.b32.xlu0 %v933, 64
    %v936 = vpop.permute.xlu0 %935
    %v938 = vmul.f32 %v916, %v936
    %940 = vrot.lane.b32.xlu0 %v938, 32
    %v941 = vpop.permute.xlu0 %940
    %943 = vst.msk [vmem:[#allocation2] sm:$0xff] %vm363, %v941
    %945 = vrot.lane.b32.xlu0 %v932, 96
    %v946 = vpop.permute.xlu0 %945
    %948 = vst.msk [vmem:[#allocation3] sm:$0xff] %vm363, %v946
    %s949 = scalar_lea.vmem [#allocation5], 16
    %950 = vst.msk [vmem:[%s949] sm:$0xff] %vm363, %v941
    %s951 = scalar_lea.vmem [#allocation6], 16
    %952 = vst.msk [vmem:[%s951] sm:$0xff] %vm363, %v946
    %v953 = vld [vmem:[#allocation2] sm:$0xff]
    %v954 = vld [vmem:[#allocation3] sm:$0xff]
    %s955 = scalar_lea.vmem [#allocation4], 24
    %v956 = vld [vmem:[%s955] sm:$0xff]
    %v958 = vsel %vm363, %v953, 0
    %960 = vmatprep.subr.mxu0 0.0
    %961 = vmatpush1.msra.mxu0 %v376
    %962 = vmatprep.subr.mxu0 0.0
    %963 = vmatpush1.msra.mxu0 %v377
    %964 = vmatprep.subr.mxu0 0.0
    %965 = vmatpush1.msra.mxu0 %v378
    %966 = vmatprep.subr.mxu0 0.0
    %967 = vmatpush1.msra.mxu0 %v379
    %968 = vmatprep.subr.mxu0 0.0
    %969 = vmatpush1.msra.mxu0 0.0
    %970 = vmatprep.subr.mxu0 0.0
    %971 = vmatpush1.msra.mxu0 0.0
    %972 = vmatprep.subr.mxu0 0.0
    %973 = vmatpush1.msra.mxu0 0.0
    %974 = vmatprep.subr.mxu0 0.0
    %975 = vmatpush1.msra.mxu0 0.0
    %976 = vmatprep.subr.mxu0 0.0
    %977 = vmatpush1.msra.mxu0 0.0
    %978 = vmatprep.subr.mxu0 0.0
    %979 = vmatpush1.msra.mxu0 0.0
    %980 = vmatprep.subr.mxu0 0.0
    %981 = vmatpush1.msra.mxu0 0.0
    %982 = vmatprep.subr.mxu0 0.0
    %983 = vmatpush1.msra.mxu0 0.0
    %984 = vmatprep.subr.mxu0 0.0
    %985 = vmatpush1.msra.mxu0 0.0
    %986 = vmatprep.subr.mxu0 0.0
    %987 = vmatpush1.msra.mxu0 0.0
    %988 = vmatprep.subr.mxu0 0.0
    %989 = vmatpush1.msra.mxu0 0.0
    %990 = vmatprep.subr.mxu0 0.0
    %991 = vmatpush1.msra.mxu0 0.0
    %992 = vmatprep.subr.mxu0 0.0
    %993 = vmatpush1.msra.mxu0 0.0
    %994 = vmatprep.subr.mxu0 0.0
    %995 = vmatpush1.msra.mxu0 0.0
    %996 = vmatprep.subr.mxu0 0.0
    %997 = vmatpush1.msra.mxu0 0.0
    %998 = vmatprep.subr.mxu0 0.0
    %999 = vmatpush1.msra.mxu0 0.0
    %1000 = vmatprep.subr.mxu0 0.0
    %1001 = vmatpush1.msra.mxu0 0.0
    %1002 = vmatprep.subr.mxu0 0.0
    %1003 = vmatpush1.msra.mxu0 0.0
    %1004 = vmatprep.subr.mxu0 0.0
    %1005 = vmatpush1.msra.mxu0 0.0
    %1006 = vmatprep.subr.mxu0 0.0
    %1007 = vmatpush1.msra.mxu0 0.0
    %1008 = vmatprep.subr.mxu0 0.0
    %1009 = vmatpush1.msra.mxu0 0.0
    %1010 = vmatprep.subr.mxu0 0.0
    %1011 = vmatpush1.msra.mxu0 0.0
    %1012 = vmatprep.subr.mxu0 0.0
    %1013 = vmatpush1.msra.mxu0 0.0
    %1014 = vmatprep.subr.mxu0 0.0
    %1015 = vmatpush1.msra.mxu0 0.0
    %1016 = vmatprep.subr.mxu0 0.0
    %1017 = vmatpush1.msra.mxu0 0.0
    %1018 = vmatprep.subr.mxu0 0.0
    %1019 = vmatpush1.msra.mxu0 0.0
    %1020 = vmatprep.subr.mxu0 0.0
    %1021 = vmatpush1.msra.mxu0 0.0
    %1022 = vmatprep.subr.mxu0 0.0
    %1023 = vmatpush1.msra.mxu0 0.0
    %1024 = vmatprep.mubr.f32.mxu0 0.0
    %1025 = vmatmul.mubr.f32.gmra.mrb[0].mxu0 %v958
    %v1026 = vpop.f32.mrb[0].mxu0
    %v1027 = vadd.f32 0.0, %v1026
    %v1028 = vpop.f32.mrb[0].mxu0
    %1029 = vdwg.mxu0
    %v1031 = vsel %vm363, %v956, 0
    %1033 = vmatprep.subr.mxu0 0.0
    %1034 = vmatpush1.msra.mxu0 %v372
    %1035 = vmatprep.subr.mxu0 0.0
    %1036 = vmatpush1.msra.mxu0 %v373
    %1037 = vmatprep.subr.mxu0 0.0
    %1038 = vmatpush1.msra.mxu0 %v374
    %1039 = vmatprep.subr.mxu0 0.0
    %1040 = vmatpush1.msra.mxu0 %v375
    %1041 = vmatprep.subr.mxu0 0.0
    %1042 = vmatpush1.msra.mxu0 0.0
    %1043 = vmatprep.subr.mxu0 0.0
    %1044 = vmatpush1.msra.mxu0 0.0
    %1045 = vmatprep.subr.mxu0 0.0
    %1046 = vmatpush1.msra.mxu0 0.0
    %1047 = vmatprep.subr.mxu0 0.0
    %1048 = vmatpush1.msra.mxu0 0.0
    %1049 = vmatprep.subr.mxu0 0.0
    %1050 = vmatpush1.msra.mxu0 0.0
    %1051 = vmatprep.subr.mxu0 0.0
    %1052 = vmatpush1.msra.mxu0 0.0
    %1053 = vmatprep.subr.mxu0 0.0
    %1054 = vmatpush1.msra.mxu0 0.0
    %1055 = vmatprep.subr.mxu0 0.0
    %1056 = vmatpush1.msra.mxu0 0.0
    %1057 = vmatprep.subr.mxu0 0.0
    %1058 = vmatpush1.msra.mxu0 0.0
    %1059 = vmatprep.subr.mxu0 0.0
    %1060 = vmatpush1.msra.mxu0 0.0
    %1061 = vmatprep.subr.mxu0 0.0
    %1062 = vmatpush1.msra.mxu0 0.0
    %1063 = vmatprep.subr.mxu0 0.0
    %1064 = vmatpush1.msra.mxu0 0.0
    %1065 = vmatprep.subr.mxu0 0.0
    %1066 = vmatpush1.msra.mxu0 0.0
    %1067 = vmatprep.subr.mxu0 0.0
    %1068 = vmatpush1.msra.mxu0 0.0
    %1069 = vmatprep.subr.mxu0 0.0
    %1070 = vmatpush1.msra.mxu0 0.0
    %1071 = vmatprep.subr.mxu0 0.0
    %1072 = vmatpush1.msra.mxu0 0.0
    %1073 = vmatprep.subr.mxu0 0.0
    %1074 = vmatpush1.msra.mxu0 0.0
    %1075 = vmatprep.subr.mxu0 0.0
    %1076 = vmatpush1.msra.mxu0 0.0
    %1077 = vmatprep.subr.mxu0 0.0
    %1078 = vmatpush1.msra.mxu0 0.0
    %1079 = vmatprep.subr.mxu0 0.0
    %1080 = vmatpush1.msra.mxu0 0.0
    %1081 = vmatprep.subr.mxu0 0.0
    %1082 = vmatpush1.msra.mxu0 0.0
    %1083 = vmatprep.subr.mxu0 0.0
    %1084 = vmatpush1.msra.mxu0 0.0
    %1085 = vmatprep.subr.mxu0 0.0
    %1086 = vmatpush1.msra.mxu0 0.0
    %1087 = vmatprep.subr.mxu0 0.0
    %1088 = vmatpush1.msra.mxu0 0.0
    %1089 = vmatprep.subr.mxu0 0.0
    %1090 = vmatpush1.msra.mxu0 0.0
    %1091 = vmatprep.subr.mxu0 0.0
    %1092 = vmatpush1.msra.mxu0 0.0
    %1093 = vmatprep.subr.mxu0 0.0
    %1094 = vmatpush1.msra.mxu0 0.0
    %1095 = vmatprep.subr.mxu0 0.0
    %1096 = vmatpush1.msra.mxu0 0.0
    %1097 = vmatprep.mubr.f32.mxu0 0.0
    %1098 = vmatmul.mubr.f32.gmra.mrb[0].mxu0 %v1031
    %v1099 = vpop.f32.mrb[0].mxu0
    %v1100 = vadd.f32 %v1027, %v1099
    %v1101 = vpop.f32.mrb[0].mxu0
    %1102 = vdwg.mxu0
    %v1103 = vxor.u32 %v1100, 2147483648
    %v1104 = vmul.f32 %v1103, 1.442695
    %v1105 = vpow.pop %v1104
    %v1106 = vadd.f32 %v1105, 1.0
    %v1107 = vrcp.pop %v1106
    %v1108 = vmul.f32 1.0, %v1107
    %v1109 = vtanh.pop %v1100
    %1111 = vrot.lane.b32.xlu0 %v954, 32
    %v1112 = vpop.permute.xlu0 %1111
    %v1114 = vmul.f32 %v1108, %v1112
    %1116 = vrot.lane.b32.xlu0 %v1109, 64
    %v1117 = vpop.permute.xlu0 %1116
    %v1119 = vmul.f32 %v1108, %v1117
    %1121 = vrot.lane.b32.xlu0 %v1119, 32
    %v1122 = vpop.permute.xlu0 %1121
    %v1124 = vadd.f32 %v1114, %v1122
    %v1125 = vtanh.pop %v1124
    %1127 = vrot.lane.b32.xlu0 %v1125, 64
    %v1128 = vpop.permute.xlu0 %1127
    %v1130 = vmul.f32 %v1108, %v1128
    %1132 = vrot.lane.b32.xlu0 %v1130, 32
    %v1133 = vpop.permute.xlu0 %1132
    %1135 = vst.msk [vmem:[#allocation2] sm:$0xff] %vm363, %v1133
    %1137 = vrot.lane.b32.xlu0 %v1124, 96
    %v1138 = vpop.permute.xlu0 %1137
    %1140 = vst.msk [vmem:[#allocation3] sm:$0xff] %vm363, %v1138
    %s1141 = scalar_lea.vmem [#allocation5], 24
    %1142 = vst.msk [vmem:[%s1141] sm:$0xff] %vm363, %v1133
    %s1143 = scalar_lea.vmem [#allocation6], 24
    %1144 = vst.msk [vmem:[%s1143] sm:$0xff] %vm363, %v1138
    %v1145 = vld [vmem:[#allocation2] sm:$0xff]
    %v1146 = vld [vmem:[#allocation3] sm:$0xff]
    %s1147 = scalar_lea.vmem [#allocation4], 32
    %v1148 = vld [vmem:[%s1147] sm:$0xff]
    %v1150 = vsel %vm363, %v1145, 0
    %1152 = vmatprep.subr.mxu0 0.0
    %1153 = vmatpush1.msra.mxu0 %v376
    %1154 = vmatprep.subr.mxu0 0.0
    %1155 = vmatpush1.msra.mxu0 %v377
    %1156 = vmatprep.subr.mxu0 0.0
    %1157 = vmatpush1.msra.mxu0 %v378
    %1158 = vmatprep.subr.mxu0 0.0
    %1159 = vmatpush1.msra.mxu0 %v379
    %1160 = vmatprep.subr.mxu0 0.0
    %1161 = vmatpush1.msra.mxu0 0.0
    %1162 = vmatprep.subr.mxu0 0.0
    %1163 = vmatpush1.msra.mxu0 0.0
    %1164 = vmatprep.subr.mxu0 0.0
    %1165 = vmatpush1.msra.mxu0 0.0
    %1166 = vmatprep.subr.mxu0 0.0
    %1167 = vmatpush1.msra.mxu0 0.0
    %1168 = vmatprep.subr.mxu0 0.0
    %1169 = vmatpush1.msra.mxu0 0.0
    %1170 = vmatprep.subr.mxu0 0.0
    %1171 = vmatpush1.msra.mxu0 0.0
    %1172 = vmatprep.subr.mxu0 0.0
    %1173 = vmatpush1.msra.mxu0 0.0
    %1174 = vmatprep.subr.mxu0 0.0
    %1175 = vmatpush1.msra.mxu0 0.0
    %1176 = vmatprep.subr.mxu0 0.0
    %1177 = vmatpush1.msra.mxu0 0.0
    %1178 = vmatprep.subr.mxu0 0.0
    %1179 = vmatpush1.msra.mxu0 0.0
    %1180 = vmatprep.subr.mxu0 0.0
    %1181 = vmatpush1.msra.mxu0 0.0
    %1182 = vmatprep.subr.mxu0 0.0
    %1183 = vmatpush1.msra.mxu0 0.0
    %1184 = vmatprep.subr.mxu0 0.0
    %1185 = vmatpush1.msra.mxu0 0.0
    %1186 = vmatprep.subr.mxu0 0.0
    %1187 = vmatpush1.msra.mxu0 0.0
    %1188 = vmatprep.subr.mxu0 0.0
    %1189 = vmatpush1.msra.mxu0 0.0
    %1190 = vmatprep.subr.mxu0 0.0
    %1191 = vmatpush1.msra.mxu0 0.0
    %1192 = vmatprep.subr.mxu0 0.0
    %1193 = vmatpush1.msra.mxu0 0.0
    %1194 = vmatprep.subr.mxu0 0.0
    %1195 = vmatpush1.msra.mxu0 0.0
    %1196 = vmatprep.subr.mxu0 0.0
    %1197 = vmatpush1.msra.mxu0 0.0
    %1198 = vmatprep.subr.mxu0 0.0
    %1199 = vmatpush1.msra.mxu0 0.0
    %1200 = vmatprep.subr.mxu0 0.0
    %1201 = vmatpush1.msra.mxu0 0.0
    %1202 = vmatprep.subr.mxu0 0.0
    %1203 = vmatpush1.msra.mxu0 0.0
    %1204 = vmatprep.subr.mxu0 0.0
    %1205 = vmatpush1.msra.mxu0 0.0
    %1206 = vmatprep.subr.mxu0 0.0
    %1207 = vmatpush1.msra.mxu0 0.0
    %1208 = vmatprep.subr.mxu0 0.0
    %1209 = vmatpush1.msra.mxu0 0.0
    %1210 = vmatprep.subr.mxu0 0.0
    %1211 = vmatpush1.msra.mxu0 0.0
    %1212 = vmatprep.subr.mxu0 0.0
    %1213 = vmatpush1.msra.mxu0 0.0
    %1214 = vmatprep.subr.mxu0 0.0
    %1215 = vmatpush1.msra.mxu0 0.0
    %1216 = vmatprep.mubr.f32.mxu0 0.0
    %1217 = vmatmul.mubr.f32.gmra.mrb[0].mxu0 %v1150
    %v1218 = vpop.f32.mrb[0].mxu0
    %v1219 = vadd.f32 0.0, %v1218
    %v1220 = vpop.f32.mrb[0].mxu0
    %1221 = vdwg.mxu0
    %v1223 = vsel %vm363, %v1148, 0
    %1225 = vmatprep.subr.mxu0 0.0
    %1226 = vmatpush1.msra.mxu0 %v372
    %1227 = vmatprep.subr.mxu0 0.0
    %1228 = vmatpush1.msra.mxu0 %v373
    %1229 = vmatprep.subr.mxu0 0.0
    %1230 = vmatpush1.msra.mxu0 %v374
    %1231 = vmatprep.subr.mxu0 0.0
    %1232 = vmatpush1.msra.mxu0 %v375
    %1233 = vmatprep.subr.mxu0 0.0
    %1234 = vmatpush1.msra.mxu0 0.0
    %1235 = vmatprep.subr.mxu0 0.0
    %1236 = vmatpush1.msra.mxu0 0.0
    %1237 = vmatprep.subr.mxu0 0.0
    %1238 = vmatpush1.msra.mxu0 0.0
    %1239 = vmatprep.subr.mxu0 0.0
    %1240 = vmatpush1.msra.mxu0 0.0
    %1241 = vmatprep.subr.mxu0 0.0
    %1242 = vmatpush1.msra.mxu0 0.0
    %1243 = vmatprep.subr.mxu0 0.0
    %1244 = vmatpush1.msra.mxu0 0.0
    %1245 = vmatprep.subr.mxu0 0.0
    %1246 = vmatpush1.msra.mxu0 0.0
    %1247 = vmatprep.subr.mxu0 0.0
    %1248 = vmatpush1.msra.mxu0 0.0
    %1249 = vmatprep.subr.mxu0 0.0
    %1250 = vmatpush1.msra.mxu0 0.0
    %1251 = vmatprep.subr.mxu0 0.0
    %1252 = vmatpush1.msra.mxu0 0.0
    %1253 = vmatprep.subr.mxu0 0.0
    %1254 = vmatpush1.msra.mxu0 0.0
    %1255 = vmatprep.subr.mxu0 0.0
    %1256 = vmatpush1.msra.mxu0 0.0
    %1257 = vmatprep.subr.mxu0 0.0
    %1258 = vmatpush1.msra.mxu0 0.0
    %1259 = vmatprep.subr.mxu0 0.0
    %1260 = vmatpush1.msra.mxu0 0.0
    %1261 = vmatprep.subr.mxu0 0.0
    %1262 = vmatpush1.msra.mxu0 0.0
    %1263 = vmatprep.subr.mxu0 0.0
    %1264 = vmatpush1.msra.mxu0 0.0
    %1265 = vmatprep.subr.mxu0 0.0
    %1266 = vmatpush1.msra.mxu0 0.0
    %1267 = vmatprep.subr.mxu0 0.0
    %1268 = vmatpush1.msra.mxu0 0.0
    %1269 = vmatprep.subr.mxu0 0.0
    %1270 = vmatpush1.msra.mxu0 0.0
    %1271 = vmatprep.subr.mxu0 0.0
    %1272 = vmatpush1.msra.mxu0 0.0
    %1273 = vmatprep.subr.mxu0 0.0
    %1274 = vmatpush1.msra.mxu0 0.0
    %1275 = vmatprep.subr.mxu0 0.0
    %1276 = vmatpush1.msra.mxu0 0.0
    %1277 = vmatprep.subr.mxu0 0.0
    %1278 = vmatpush1.msra.mxu0 0.0
    %1279 = vmatprep.subr.mxu0 0.0
    %1280 = vmatpush1.msra.mxu0 0.0
    %1281 = vmatprep.subr.mxu0 0.0
    %1282 = vmatpush1.msra.mxu0 0.0
    %1283 = vmatprep.subr.mxu0 0.0
    %1284 = vmatpush1.msra.mxu0 0.0
    %1285 = vmatprep.subr.mxu0 0.0
    %1286 = vmatpush1.msra.mxu0 0.0
    %1287 = vmatprep.subr.mxu0 0.0
    %1288 = vmatpush1.msra.mxu0 0.0
    %1289 = vmatprep.mubr.f32.mxu0 0.0
    %1290 = vmatmul.mubr.f32.gmra.mrb[0].mxu0 %v1223
    %v1291 = vpop.f32.mrb[0].mxu0
    %v1292 = vadd.f32 %v1219, %v1291
    %v1293 = vpop.f32.mrb[0].mxu0
    %1294 = vdwg.mxu0
    %v1295 = vxor.u32 %v1292, 2147483648
    %v1296 = vmul.f32 %v1295, 1.442695
    %v1297 = vpow.pop %v1296
    %v1298 = vadd.f32 %v1297, 1.0
    %v1299 = vrcp.pop %v1298
    %v1300 = vmul.f32 1.0, %v1299
    %v1301 = vtanh.pop %v1292
    %1303 = vrot.lane.b32.xlu0 %v1146, 32
    %v1304 = vpop.permute.xlu0 %1303
    %v1306 = vmul.f32 %v1300, %v1304
    %1308 = vrot.lane.b32.xlu0 %v1301, 64
    %v1309 = vpop.permute.xlu0 %1308
    %v1311 = vmul.f32 %v1300, %v1309
    %1313 = vrot.lane.b32.xlu0 %v1311, 32
    %v1314 = vpop.permute.xlu0 %1313
    %v1316 = vadd.f32 %v1306, %v1314
    %v1317 = vtanh.pop %v1316
    %1319 = vrot.lane.b32.xlu0 %v1317, 64
    %v1320 = vpop.permute.xlu0 %1319
    %v1322 = vmul.f32 %v1300, %v1320
    %1324 = vrot.lane.b32.xlu0 %v1322, 32
    %v1325 = vpop.permute.xlu0 %1324
    %1327 = vst.msk [vmem:[#allocation2] sm:$0xff] %vm363, %v1325
    %1329 = vrot.lane.b32.xlu0 %v1316, 96
    %v1330 = vpop.permute.xlu0 %1329
    %1332 = vst.msk [vmem:[#allocation3] sm:$0xff] %vm363, %v1330
    %s1333 = scalar_lea.vmem [#allocation5], 32
    %1334 = vst.msk [vmem:[%s1333] sm:$0xff] %vm363, %v1325
    %s1335 = scalar_lea.vmem [#allocation6], 32
    %1336 = vst.msk [vmem:[%s1335] sm:$0xff] %vm363, %v1330
    %v1337 = vld [vmem:[#allocation2] sm:$0xff]
    %v1338 = vld [vmem:[#allocation3] sm:$0xff]
    %s1339 = scalar_lea.vmem [#allocation4], 40
    %v1340 = vld [vmem:[%s1339] sm:$0xff]
    %v1342 = vsel %vm363, %v1337, 0
    %1344 = vmatprep.subr.mxu0 0.0
    %1345 = vmatpush1.msra.mxu0 %v376
    %1346 = vmatprep.subr.mxu0 0.0
    %1347 = vmatpush1.msra.mxu0 %v377
    %1348 = vmatprep.subr.mxu0 0.0
    %1349 = vmatpush1.msra.mxu0 %v378
    %1350 = vmatprep.subr.mxu0 0.0
    %1351 = vmatpush1.msra.mxu0 %v379
    %1352 = vmatprep.subr.mxu0 0.0
    %1353 = vmatpush1.msra.mxu0 0.0
    %1354 = vmatprep.subr.mxu0 0.0
    %1355 = vmatpush1.msra.mxu0 0.0
    %1356 = vmatprep.subr.mxu0 0.0
    %1357 = vmatpush1.msra.mxu0 0.0
    %1358 = vmatprep.subr.mxu0 0.0
    %1359 = vmatpush1.msra.mxu0 0.0
    %1360 = vmatprep.subr.mxu0 0.0
    %1361 = vmatpush1.msra.mxu0 0.0
    %1362 = vmatprep.subr.mxu0 0.0
    %1363 = vmatpush1.msra.mxu0 0.0
    %1364 = vmatprep.subr.mxu0 0.0
    %1365 = vmatpush1.msra.mxu0 0.0
    %1366 = vmatprep.subr.mxu0 0.0
    %1367 = vmatpush1.msra.mxu0 0.0
    %1368 = vmatprep.subr.mxu0 0.0
    %1369 = vmatpush1.msra.mxu0 0.0
    %1370 = vmatprep.subr.mxu0 0.0
    %1371 = vmatpush1.msra.mxu0 0.0
    %1372 = vmatprep.subr.mxu0 0.0
    %1373 = vmatpush1.msra.mxu0 0.0
    %1374 = vmatprep.subr.mxu0 0.0
    %1375 = vmatpush1.msra.mxu0 0.0
    %1376 = vmatprep.subr.mxu0 0.0
    %1377 = vmatpush1.msra.mxu0 0.0
    %1378 = vmatprep.subr.mxu0 0.0
    %1379 = vmatpush1.msra.mxu0 0.0
    %1380 = vmatprep.subr.mxu0 0.0
    %1381 = vmatpush1.msra.mxu0 0.0
    %1382 = vmatprep.subr.mxu0 0.0
    %1383 = vmatpush1.msra.mxu0 0.0
    %1384 = vmatprep.subr.mxu0 0.0
    %1385 = vmatpush1.msra.mxu0 0.0
    %1386 = vmatprep.subr.mxu0 0.0
    %1387 = vmatpush1.msra.mxu0 0.0
    %1388 = vmatprep.subr.mxu0 0.0
    %1389 = vmatpush1.msra.mxu0 0.0
    %1390 = vmatprep.subr.mxu0 0.0
    %1391 = vmatpush1.msra.mxu0 0.0
    %1392 = vmatprep.subr.mxu0 0.0
    %1393 = vmatpush1.msra.mxu0 0.0
    %1394 = vmatprep.subr.mxu0 0.0
    %1395 = vmatpush1.msra.mxu0 0.0
    %1396 = vmatprep.subr.mxu0 0.0
    %1397 = vmatpush1.msra.mxu0 0.0
    %1398 = vmatprep.subr.mxu0 0.0
    %1399 = vmatpush1.msra.mxu0 0.0
    %1400 = vmatprep.subr.mxu0 0.0
    %1401 = vmatpush1.msra.mxu0 0.0
    %1402 = vmatprep.subr.mxu0 0.0
    %1403 = vmatpush1.msra.mxu0 0.0
    %1404 = vmatprep.subr.mxu0 0.0
    %1405 = vmatpush1.msra.mxu0 0.0
    %1406 = vmatprep.subr.mxu0 0.0
    %1407 = vmatpush1.msra.mxu0 0.0
    %1408 = vmatprep.mubr.f32.mxu0 0.0
    %1409 = vmatmul.mubr.f32.gmra.mrb[0].mxu0 %v1342
    %v1410 = vpop.f32.mrb[0].mxu0
    %v1411 = vadd.f32 0.0, %v1410
    %v1412 = vpop.f32.mrb[0].mxu0
    %1413 = vdwg.mxu0
    %v1415 = vsel %vm363, %v1340, 0
    %1417 = vmatprep.subr.mxu0 0.0
    %1418 = vmatpush1.msra.mxu0 %v372
    %1419 = vmatprep.subr.mxu0 0.0
    %1420 = vmatpush1.msra.mxu0 %v373
    %1421 = vmatprep.subr.mxu0 0.0
    %1422 = vmatpush1.msra.mxu0 %v374
    %1423 = vmatprep.subr.mxu0 0.0
    %1424 = vmatpush1.msra.mxu0 %v375
    %1425 = vmatprep.subr.mxu0 0.0
    %1426 = vmatpush1.msra.mxu0 0.0
    %1427 = vmatprep.subr.mxu0 0.0
    %1428 = vmatpush1.msra.mxu0 0.0
    %1429 = vmatprep.subr.mxu0 0.0
    %1430 = vmatpush1.msra.mxu0 0.0
    %1431 = vmatprep.subr.mxu0 0.0
    %1432 = vmatpush1.msra.mxu0 0.0
    %1433 = vmatprep.subr.mxu0 0.0
    %1434 = vmatpush1.msra.mxu0 0.0
    %1435 = vmatprep.subr.mxu0 0.0
    %1436 = vmatpush1.msra.mxu0 0.0
    %1437 = vmatprep.subr.mxu0 0.0
    %1438 = vmatpush1.msra.mxu0 0.0
    %1439 = vmatprep.subr.mxu0 0.0
    %1440 = vmatpush1.msra.mxu0 0.0
    %1441 = vmatprep.subr.mxu0 0.0
    %1442 = vmatpush1.msra.mxu0 0.0
    %1443 = vmatprep.subr.mxu0 0.0
    %1444 = vmatpush1.msra.mxu0 0.0
    %1445 = vmatprep.subr.mxu0 0.0
    %1446 = vmatpush1.msra.mxu0 0.0
    %1447 = vmatprep.subr.mxu0 0.0
    %1448 = vmatpush1.msra.mxu0 0.0
    %1449 = vmatprep.subr.mxu0 0.0
    %1450 = vmatpush1.msra.mxu0 0.0
    %1451 = vmatprep.subr.mxu0 0.0
    %1452 = vmatpush1.msra.mxu0 0.0
    %1453 = vmatprep.subr.mxu0 0.0
    %1454 = vmatpush1.msra.mxu0 0.0
    %1455 = vmatprep.subr.mxu0 0.0
    %1456 = vmatpush1.msra.mxu0 0.0
    %1457 = vmatprep.subr.mxu0 0.0
    %1458 = vmatpush1.msra.mxu0 0.0
    %1459 = vmatprep.subr.mxu0 0.0
    %1460 = vmatpush1.msra.mxu0 0.0
    %1461 = vmatprep.subr.mxu0 0.0
    %1462 = vmatpush1.msra.mxu0 0.0
    %1463 = vmatprep.subr.mxu0 0.0
    %1464 = vmatpush1.msra.mxu0 0.0
    %1465 = vmatprep.subr.mxu0 0.0
    %1466 = vmatpush1.msra.mxu0 0.0
    %1467 = vmatprep.subr.mxu0 0.0
    %1468 = vmatpush1.msra.mxu0 0.0
    %1469 = vmatprep.subr.mxu0 0.0
    %1470 = vmatpush1.msra.mxu0 0.0
    %1471 = vmatprep.subr.mxu0 0.0
    %1472 = vmatpush1.msra.mxu0 0.0
    %1473 = vmatprep.subr.mxu0 0.0
    %1474 = vmatpush1.msra.mxu0 0.0
    %1475 = vmatprep.subr.mxu0 0.0
    %1476 = vmatpush1.msra.mxu0 0.0
    %1477 = vmatprep.subr.mxu0 0.0
    %1478 = vmatpush1.msra.mxu0 0.0
    %1479 = vmatprep.subr.mxu0 0.0
    %1480 = vmatpush1.msra.mxu0 0.0
    %1481 = vmatprep.mubr.f32.mxu0 0.0
    %1482 = vmatmul.mubr.f32.gmra.mrb[0].mxu0 %v1415
    %v1483 = vpop.f32.mrb[0].mxu0
    %v1484 = vadd.f32 %v1411, %v1483
    %v1485 = vpop.f32.mrb[0].mxu0
    %1486 = vdwg.mxu0
    %v1487 = vxor.u32 %v1484, 2147483648
    %v1488 = vmul.f32 %v1487, 1.442695
    %v1489 = vpow.pop %v1488
    %v1490 = vadd.f32 %v1489, 1.0
    %v1491 = vrcp.pop %v1490
    %v1492 = vmul.f32 1.0, %v1491
    %v1493 = vtanh.pop %v1484
    %1495 = vrot.lane.b32.xlu0 %v1338, 32
    %v1496 = vpop.permute.xlu0 %1495
    %v1498 = vmul.f32 %v1492, %v1496
    %1500 = vrot.lane.b32.xlu0 %v1493, 64
    %v1501 = vpop.permute.xlu0 %1500
    %v1503 = vmul.f32 %v1492, %v1501
    %1505 = vrot.lane.b32.xlu0 %v1503, 32
    %v1506 = vpop.permute.xlu0 %1505
    %v1508 = vadd.f32 %v1498, %v1506
    %v1509 = vtanh.pop %v1508
    %1511 = vrot.lane.b32.xlu0 %v1509, 64
    %v1512 = vpop.permute.xlu0 %1511
    %v1514 = vmul.f32 %v1492, %v1512
    %1516 = vrot.lane.b32.xlu0 %v1514, 32
    %v1517 = vpop.permute.xlu0 %1516
    %1519 = vst.msk [vmem:[#allocation2] sm:$0xff] %vm363, %v1517
    %1521 = vrot.lane.b32.xlu0 %v1508, 96
    %v1522 = vpop.permute.xlu0 %1521
    %1524 = vst.msk [vmem:[#allocation3] sm:$0xff] %vm363, %v1522
    %s1525 = scalar_lea.vmem [#allocation5], 40
    %1526 = vst.msk [vmem:[%s1525] sm:$0xff] %vm363, %v1517
    %s1527 = scalar_lea.vmem [#allocation6], 40
    %1528 = vst.msk [vmem:[%s1527] sm:$0xff] %vm363, %v1522
    %v1529 = vld [vmem:[#allocation2] sm:$0xff]
    %v1530 = vld [vmem:[#allocation3] sm:$0xff]
    %s1531 = scalar_lea.vmem [#allocation4], 48
    %v1532 = vld [vmem:[%s1531] sm:$0xff]
    %v1534 = vsel %vm363, %v1529, 0
    %1536 = vmatprep.subr.mxu0 0.0
    %1537 = vmatpush1.msra.mxu0 %v376
    %1538 = vmatprep.subr.mxu0 0.0
    %1539 = vmatpush1.msra.mxu0 %v377
    %1540 = vmatprep.subr.mxu0 0.0
    %1541 = vmatpush1.msra.mxu0 %v378
    %1542 = vmatprep.subr.mxu0 0.0
    %1543 = vmatpush1.msra.mxu0 %v379
    %1544 = vmatprep.subr.mxu0 0.0
    %1545 = vmatpush1.msra.mxu0 0.0
    %1546 = vmatprep.subr.mxu0 0.0
    %1547 = vmatpush1.msra.mxu0 0.0
    %1548 = vmatprep.subr.mxu0 0.0
    %1549 = vmatpush1.msra.mxu0 0.0
    %1550 = vmatprep.subr.mxu0 0.0
    %1551 = vmatpush1.msra.mxu0 0.0
    %1552 = vmatprep.subr.mxu0 0.0
    %1553 = vmatpush1.msra.mxu0 0.0
    %1554 = vmatprep.subr.mxu0 0.0
    %1555 = vmatpush1.msra.mxu0 0.0
    %1556 = vmatprep.subr.mxu0 0.0
    %1557 = vmatpush1.msra.mxu0 0.0
    %1558 = vmatprep.subr.mxu0 0.0
    %1559 = vmatpush1.msra.mxu0 0.0
    %1560 = vmatprep.subr.mxu0 0.0
    %1561 = vmatpush1.msra.mxu0 0.0
    %1562 = vmatprep.subr.mxu0 0.0
    %1563 = vmatpush1.msra.mxu0 0.0
    %1564 = vmatprep.subr.mxu0 0.0
    %1565 = vmatpush1.msra.mxu0 0.0
    %1566 = vmatprep.subr.mxu0 0.0
    %1567 = vmatpush1.msra.mxu0 0.0
    %1568 = vmatprep.subr.mxu0 0.0
    %1569 = vmatpush1.msra.mxu0 0.0
    %1570 = vmatprep.subr.mxu0 0.0
    %1571 = vmatpush1.msra.mxu0 0.0
    %1572 = vmatprep.subr.mxu0 0.0
    %1573 = vmatpush1.msra.mxu0 0.0
    %1574 = vmatprep.subr.mxu0 0.0
    %1575 = vmatpush1.msra.mxu0 0.0
    %1576 = vmatprep.subr.mxu0 0.0
    %1577 = vmatpush1.msra.mxu0 0.0
    %1578 = vmatprep.subr.mxu0 0.0
    %1579 = vmatpush1.msra.mxu0 0.0
    %1580 = vmatprep.subr.mxu0 0.0
    %1581 = vmatpush1.msra.mxu0 0.0
    %1582 = vmatprep.subr.mxu0 0.0
    %1583 = vmatpush1.msra.mxu0 0.0
    %1584 = vmatprep.subr.mxu0 0.0
    %1585 = vmatpush1.msra.mxu0 0.0
    %1586 = vmatprep.subr.mxu0 0.0
    %1587 = vmatpush1.msra.mxu0 0.0
    %1588 = vmatprep.subr.mxu0 0.0
    %1589 = vmatpush1.msra.mxu0 0.0
    %1590 = vmatprep.subr.mxu0 0.0
    %1591 = vmatpush1.msra.mxu0 0.0
    %1592 = vmatprep.subr.mxu0 0.0
    %1593 = vmatpush1.msra.mxu0 0.0
    %1594 = vmatprep.subr.mxu0 0.0
    %1595 = vmatpush1.msra.mxu0 0.0
    %1596 = vmatprep.subr.mxu0 0.0
    %1597 = vmatpush1.msra.mxu0 0.0
    %1598 = vmatprep.subr.mxu0 0.0
    %1599 = vmatpush1.msra.mxu0 0.0
    %1600 = vmatprep.mubr.f32.mxu0 0.0
    %1601 = vmatmul.mubr.f32.gmra.mrb[0].mxu0 %v1534
    %v1602 = vpop.f32.mrb[0].mxu0
    %v1603 = vadd.f32 0.0, %v1602
    %v1604 = vpop.f32.mrb[0].mxu0
    %1605 = vdwg.mxu0
    %v1607 = vsel %vm363, %v1532, 0
    %1609 = vmatprep.subr.mxu0 0.0
    %1610 = vmatpush1.msra.mxu0 %v372
    %1611 = vmatprep.subr.mxu0 0.0
    %1612 = vmatpush1.msra.mxu0 %v373
    %1613 = vmatprep.subr.mxu0 0.0
    %1614 = vmatpush1.msra.mxu0 %v374
    %1615 = vmatprep.subr.mxu0 0.0
    %1616 = vmatpush1.msra.mxu0 %v375
    %1617 = vmatprep.subr.mxu0 0.0
    %1618 = vmatpush1.msra.mxu0 0.0
    %1619 = vmatprep.subr.mxu0 0.0
    %1620 = vmatpush1.msra.mxu0 0.0
    %1621 = vmatprep.subr.mxu0 0.0
    %1622 = vmatpush1.msra.mxu0 0.0
    %1623 = vmatprep.subr.mxu0 0.0
    %1624 = vmatpush1.msra.mxu0 0.0
    %1625 = vmatprep.subr.mxu0 0.0
    %1626 = vmatpush1.msra.mxu0 0.0
    %1627 = vmatprep.subr.mxu0 0.0
    %1628 = vmatpush1.msra.mxu0 0.0
    %1629 = vmatprep.subr.mxu0 0.0
    %1630 = vmatpush1.msra.mxu0 0.0
    %1631 = vmatprep.subr.mxu0 0.0
    %1632 = vmatpush1.msra.mxu0 0.0
    %1633 = vmatprep.subr.mxu0 0.0
    %1634 = vmatpush1.msra.mxu0 0.0
    %1635 = vmatprep.subr.mxu0 0.0
    %1636 = vmatpush1.msra.mxu0 0.0
    %1637 = vmatprep.subr.mxu0 0.0
    %1638 = vmatpush1.msra.mxu0 0.0
    %1639 = vmatprep.subr.mxu0 0.0
    %1640 = vmatpush1.msra.mxu0 0.0
    %1641 = vmatprep.subr.mxu0 0.0
    %1642 = vmatpush1.msra.mxu0 0.0
    %1643 = vmatprep.subr.mxu0 0.0
    %1644 = vmatpush1.msra.mxu0 0.0
    %1645 = vmatprep.subr.mxu0 0.0
    %1646 = vmatpush1.msra.mxu0 0.0
    %1647 = vmatprep.subr.mxu0 0.0
    %1648 = vmatpush1.msra.mxu0 0.0
    %1649 = vmatprep.subr.mxu0 0.0
    %1650 = vmatpush1.msra.mxu0 0.0
    %1651 = vmatprep.subr.mxu0 0.0
    %1652 = vmatpush1.msra.mxu0 0.0
    %1653 = vmatprep.subr.mxu0 0.0
    %1654 = vmatpush1.msra.mxu0 0.0
    %1655 = vmatprep.subr.mxu0 0.0
    %1656 = vmatpush1.msra.mxu0 0.0
    %1657 = vmatprep.subr.mxu0 0.0
    %1658 = vmatpush1.msra.mxu0 0.0
    %1659 = vmatprep.subr.mxu0 0.0
    %1660 = vmatpush1.msra.mxu0 0.0
    %1661 = vmatprep.subr.mxu0 0.0
    %1662 = vmatpush1.msra.mxu0 0.0
    %1663 = vmatprep.subr.mxu0 0.0
    %1664 = vmatpush1.msra.mxu0 0.0
    %1665 = vmatprep.subr.mxu0 0.0
    %1666 = vmatpush1.msra.mxu0 0.0
    %1667 = vmatprep.subr.mxu0 0.0
    %1668 = vmatpush1.msra.mxu0 0.0
    %1669 = vmatprep.subr.mxu0 0.0
    %1670 = vmatpush1.msra.mxu0 0.0
    %1671 = vmatprep.subr.mxu0 0.0
    %1672 = vmatpush1.msra.mxu0 0.0
    %1673 = vmatprep.mubr.f32.mxu0 0.0
    %1674 = vmatmul.mubr.f32.gmra.mrb[0].mxu0 %v1607
    %v1675 = vpop.f32.mrb[0].mxu0
    %v1676 = vadd.f32 %v1603, %v1675
    %v1677 = vpop.f32.mrb[0].mxu0
    %1678 = vdwg.mxu0
    %v1679 = vxor.u32 %v1676, 2147483648
    %v1680 = vmul.f32 %v1679, 1.442695
    %v1681 = vpow.pop %v1680
    %v1682 = vadd.f32 %v1681, 1.0
    %v1683 = vrcp.pop %v1682
    %v1684 = vmul.f32 1.0, %v1683
    %v1685 = vtanh.pop %v1676
    %1687 = vrot.lane.b32.xlu0 %v1530, 32
    %v1688 = vpop.permute.xlu0 %1687
    %v1690 = vmul.f32 %v1684, %v1688
    %1692 = vrot.lane.b32.xlu0 %v1685, 64
    %v1693 = vpop.permute.xlu0 %1692
    %v1695 = vmul.f32 %v1684, %v1693
    %1697 = vrot.lane.b32.xlu0 %v1695, 32
    %v1698 = vpop.permute.xlu0 %1697
    %v1700 = vadd.f32 %v1690, %v1698
    %v1701 = vtanh.pop %v1700
    %1703 = vrot.lane.b32.xlu0 %v1701, 64
    %v1704 = vpop.permute.xlu0 %1703
    %v1706 = vmul.f32 %v1684, %v1704
    %1708 = vrot.lane.b32.xlu0 %v1706, 32
    %v1709 = vpop.permute.xlu0 %1708
    %1711 = vst.msk [vmem:[#allocation2] sm:$0xff] %vm363, %v1709
    %1713 = vrot.lane.b32.xlu0 %v1700, 96
    %v1714 = vpop.permute.xlu0 %1713
    %1716 = vst.msk [vmem:[#allocation3] sm:$0xff] %vm363, %v1714
    %s1717 = scalar_lea.vmem [#allocation5], 48
    %1718 = vst.msk [vmem:[%s1717] sm:$0xff] %vm363, %v1709
    %s1719 = scalar_lea.vmem [#allocation6], 48
    %1720 = vst.msk [vmem:[%s1719] sm:$0xff] %vm363, %v1714
    %v1721 = vld [vmem:[#allocation2] sm:$0xff]
    %v1722 = vld [vmem:[#allocation3] sm:$0xff]
    %s1723 = scalar_lea.vmem [#allocation4], 56
    %v1724 = vld [vmem:[%s1723] sm:$0xff]
    %v1726 = vsel %vm363, %v1721, 0
    %1728 = vmatprep.subr.mxu0 0.0
    %1729 = vmatpush1.msra.mxu0 %v376
    %1730 = vmatprep.subr.mxu0 0.0
    %1731 = vmatpush1.msra.mxu0 %v377
    %1732 = vmatprep.subr.mxu0 0.0
    %1733 = vmatpush1.msra.mxu0 %v378
    %1734 = vmatprep.subr.mxu0 0.0
    %1735 = vmatpush1.msra.mxu0 %v379
    %1736 = vmatprep.subr.mxu0 0.0
    %1737 = vmatpush1.msra.mxu0 0.0
    %1738 = vmatprep.subr.mxu0 0.0
    %1739 = vmatpush1.msra.mxu0 0.0
    %1740 = vmatprep.subr.mxu0 0.0
    %1741 = vmatpush1.msra.mxu0 0.0
    %1742 = vmatprep.subr.mxu0 0.0
    %1743 = vmatpush1.msra.mxu0 0.0
    %1744 = vmatprep.subr.mxu0 0.0
    %1745 = vmatpush1.msra.mxu0 0.0
    %1746 = vmatprep.subr.mxu0 0.0
    %1747 = vmatpush1.msra.mxu0 0.0
    %1748 = vmatprep.subr.mxu0 0.0
    %1749 = vmatpush1.msra.mxu0 0.0
    %1750 = vmatprep.subr.mxu0 0.0
    %1751 = vmatpush1.msra.mxu0 0.0
    %1752 = vmatprep.subr.mxu0 0.0
    %1753 = vmatpush1.msra.mxu0 0.0
    %1754 = vmatprep.subr.mxu0 0.0
    %1755 = vmatpush1.msra.mxu0 0.0
    %1756 = vmatprep.subr.mxu0 0.0
    %1757 = vmatpush1.msra.mxu0 0.0
    %1758 = vmatprep.subr.mxu0 0.0
    %1759 = vmatpush1.msra.mxu0 0.0
    %1760 = vmatprep.subr.mxu0 0.0
    %1761 = vmatpush1.msra.mxu0 0.0
    %1762 = vmatprep.subr.mxu0 0.0
    %1763 = vmatpush1.msra.mxu0 0.0
    %1764 = vmatprep.subr.mxu0 0.0
    %1765 = vmatpush1.msra.mxu0 0.0
    %1766 = vmatprep.subr.mxu0 0.0
    %1767 = vmatpush1.msra.mxu0 0.0
    %1768 = vmatprep.subr.mxu0 0.0
    %1769 = vmatpush1.msra.mxu0 0.0
    %1770 = vmatprep.subr.mxu0 0.0
    %1771 = vmatpush1.msra.mxu0 0.0
    %1772 = vmatprep.subr.mxu0 0.0
    %1773 = vmatpush1.msra.mxu0 0.0
    %1774 = vmatprep.subr.mxu0 0.0
    %1775 = vmatpush1.msra.mxu0 0.0
    %1776 = vmatprep.subr.mxu0 0.0
    %1777 = vmatpush1.msra.mxu0 0.0
    %1778 = vmatprep.subr.mxu0 0.0
    %1779 = vmatpush1.msra.mxu0 0.0
    %1780 = vmatprep.subr.mxu0 0.0
    %1781 = vmatpush1.msra.mxu0 0.0
    %1782 = vmatprep.subr.mxu0 0.0
    %1783 = vmatpush1.msra.mxu0 0.0
    %1784 = vmatprep.subr.mxu0 0.0
    %1785 = vmatpush1.msra.mxu0 0.0
    %1786 = vmatprep.subr.mxu0 0.0
    %1787 = vmatpush1.msra.mxu0 0.0
    %1788 = vmatprep.subr.mxu0 0.0
    %1789 = vmatpush1.msra.mxu0 0.0
    %1790 = vmatprep.subr.mxu0 0.0
    %1791 = vmatpush1.msra.mxu0 0.0
    %1792 = vmatprep.mubr.f32.mxu0 0.0
    %1793 = vmatmul.mubr.f32.gmra.mrb[0].mxu0 %v1726
    %v1794 = vpop.f32.mrb[0].mxu0
    %v1795 = vadd.f32 0.0, %v1794
    %v1796 = vpop.f32.mrb[0].mxu0
    %1797 = vdwg.mxu0
    %v1799 = vsel %vm363, %v1724, 0
    %1801 = vmatprep.subr.mxu0 0.0
    %1802 = vmatpush1.msra.mxu0 %v372
    %1803 = vmatprep.subr.mxu0 0.0
    %1804 = vmatpush1.msra.mxu0 %v373
    %1805 = vmatprep.subr.mxu0 0.0
    %1806 = vmatpush1.msra.mxu0 %v374
    %1807 = vmatprep.subr.mxu0 0.0
    %1808 = vmatpush1.msra.mxu0 %v375
    %1809 = vmatprep.subr.mxu0 0.0
    %1810 = vmatpush1.msra.mxu0 0.0
    %1811 = vmatprep.subr.mxu0 0.0
    %1812 = vmatpush1.msra.mxu0 0.0
    %1813 = vmatprep.subr.mxu0 0.0
    %1814 = vmatpush1.msra.mxu0 0.0
    %1815 = vmatprep.subr.mxu0 0.0
    %1816 = vmatpush1.msra.mxu0 0.0
    %1817 = vmatprep.subr.mxu0 0.0
    %1818 = vmatpush1.msra.mxu0 0.0
    %1819 = vmatprep.subr.mxu0 0.0
    %1820 = vmatpush1.msra.mxu0 0.0
    %1821 = vmatprep.subr.mxu0 0.0
    %1822 = vmatpush1.msra.mxu0 0.0
    %1823 = vmatprep.subr.mxu0 0.0
    %1824 = vmatpush1.msra.mxu0 0.0
    %1825 = vmatprep.subr.mxu0 0.0
    %1826 = vmatpush1.msra.mxu0 0.0
    %1827 = vmatprep.subr.mxu0 0.0
    %1828 = vmatpush1.msra.mxu0 0.0
    %1829 = vmatprep.subr.mxu0 0.0
    %1830 = vmatpush1.msra.mxu0 0.0
    %1831 = vmatprep.subr.mxu0 0.0
    %1832 = vmatpush1.msra.mxu0 0.0
    %1833 = vmatprep.subr.mxu0 0.0
    %1834 = vmatpush1.msra.mxu0 0.0
    %1835 = vmatprep.subr.mxu0 0.0
    %1836 = vmatpush1.msra.mxu0 0.0
    %1837 = vmatprep.subr.mxu0 0.0
    %1838 = vmatpush1.msra.mxu0 0.0
    %1839 = vmatprep.subr.mxu0 0.0
    %1840 = vmatpush1.msra.mxu0 0.0
    %1841 = vmatprep.subr.mxu0 0.0
    %1842 = vmatpush1.msra.mxu0 0.0
    %1843 = vmatprep.subr.mxu0 0.0
    %1844 = vmatpush1.msra.mxu0 0.0
    %1845 = vmatprep.subr.mxu0 0.0
    %1846 = vmatpush1.msra.mxu0 0.0
    %1847 = vmatprep.subr.mxu0 0.0
    %1848 = vmatpush1.msra.mxu0 0.0
    %1849 = vmatprep.subr.mxu0 0.0
    %1850 = vmatpush1.msra.mxu0 0.0
    %1851 = vmatprep.subr.mxu0 0.0
    %1852 = vmatpush1.msra.mxu0 0.0
    %1853 = vmatprep.subr.mxu0 0.0
    %1854 = vmatpush1.msra.mxu0 0.0
    %1855 = vmatprep.subr.mxu0 0.0
    %1856 = vmatpush1.msra.mxu0 0.0
    %1857 = vmatprep.subr.mxu0 0.0
    %1858 = vmatpush1.msra.mxu0 0.0
    %1859 = vmatprep.subr.mxu0 0.0
    %1860 = vmatpush1.msra.mxu0 0.0
    %1861 = vmatprep.subr.mxu0 0.0
    %1862 = vmatpush1.msra.mxu0 0.0
    %1863 = vmatprep.subr.mxu0 0.0
    %1864 = vmatpush1.msra.mxu0 0.0
    %1865 = vmatprep.mubr.f32.mxu0 0.0
    %1866 = vmatmul.mubr.f32.gmra.mrb[0].mxu0 %v1799
    %v1867 = vpop.f32.mrb[0].mxu0
    %v1868 = vadd.f32 %v1795, %v1867
    %v1869 = vpop.f32.mrb[0].mxu0
    %1870 = vdwg.mxu0
    %v1871 = vxor.u32 %v1868, 2147483648
    %v1872 = vmul.f32 %v1871, 1.442695
    %v1873 = vpow.pop %v1872
    %v1874 = vadd.f32 %v1873, 1.0
    %v1875 = vrcp.pop %v1874
    %v1876 = vmul.f32 1.0, %v1875
    %v1877 = vtanh.pop %v1868
    %1879 = vrot.lane.b32.xlu0 %v1722, 32
    %v1880 = vpop.permute.xlu0 %1879
    %v1882 = vmul.f32 %v1876, %v1880
    %1884 = vrot.lane.b32.xlu0 %v1877, 64
    %v1885 = vpop.permute.xlu0 %1884
    %v1887 = vmul.f32 %v1876, %v1885
    %1889 = vrot.lane.b32.xlu0 %v1887, 32
    %v1890 = vpop.permute.xlu0 %1889
    %v1892 = vadd.f32 %v1882, %v1890
    %v1893 = vtanh.pop %v1892
    %1895 = vrot.lane.b32.xlu0 %v1893, 64
    %v1896 = vpop.permute.xlu0 %1895
    %v1898 = vmul.f32 %v1876, %v1896
    %1900 = vrot.lane.b32.xlu0 %v1898, 32
    %v1901 = vpop.permute.xlu0 %1900
    %1903 = vst.msk [vmem:[#allocation2] sm:$0xff] %vm363, %v1901
    %1905 = vrot.lane.b32.xlu0 %v1892, 96
    %v1906 = vpop.permute.xlu0 %1905
    %1908 = vst.msk [vmem:[#allocation3] sm:$0xff] %vm363, %v1906
    %s1909 = scalar_lea.vmem [#allocation5], 56
    %1910 = vst.msk [vmem:[%s1909] sm:$0xff] %vm363, %v1901
    %s1911 = scalar_lea.vmem [#allocation6], 56
    %1912 = vst.msk [vmem:[%s1911] sm:$0xff] %vm363, %v1906
    %v1913 = vld [vmem:[#allocation5] sm:$0xff]
    %v1914 = vld [vmem:[#allocation5 + $0x8] sm:$0xff]
    %v1915 = vld [vmem:[#allocation5 + $0x10] sm:$0xff]
    %v1916 = vld [vmem:[#allocation5 + $0x18] sm:$0xff]
    %v1917 = vld [vmem:[#allocation5 + $0x20] sm:$0xff]
    %v1918 = vld [vmem:[#allocation5 + $0x28] sm:$0xff]
    %v1919 = vld [vmem:[#allocation5 + $0x30] sm:$0xff]
    %v1920 = vld [vmem:[#allocation5 + $0x38] sm:$0xff]
    %v1921 = vld [vmem:[#allocation6] sm:$0xff]
    %v1922 = vld [vmem:[#allocation6 + $0x8] sm:$0xff]
    %v1923 = vld [vmem:[#allocation6 + $0x10] sm:$0xff]
    %v1924 = vld [vmem:[#allocation6 + $0x18] sm:$0xff]
    %v1925 = vld [vmem:[#allocation6 + $0x20] sm:$0xff]
    %v1926 = vld [vmem:[#allocation6 + $0x28] sm:$0xff]
    %v1927 = vld [vmem:[#allocation6 + $0x30] sm:$0xff]
    %v1928 = vld [vmem:[#allocation6 + $0x38] sm:$0xff]
    %v1929 = vld [vmem:[#allocation10] sm:$0xff]
    %v1930 = vld [vmem:[#allocation10 + $0x8] sm:$0xff]
    %v1931 = vld [vmem:[#allocation10 + $0x10] sm:$0xff]
    %v1932 = vld [vmem:[#allocation10 + $0x18] sm:$0xff]
    %v1933 = vld [vmem:[#allocation10 + $0x20] sm:$0xff]
    %v1934 = vld [vmem:[#allocation10 + $0x28] sm:$0xff]
    %v1935 = vld [vmem:[#allocation10 + $0x30] sm:$0xff]
    %v1936 = vld [vmem:[#allocation10 + $0x38] sm:$0xff]
    %v1937 = vld [vmem:[%s3] sm:$0xff]
    %v1938 = vld [vmem:[%s3 + $0x8] sm:$0xff]
    %v1939 = vld [vmem:[%s3 + $0x10] sm:$0xff]
    %v1940 = vld [vmem:[%s3 + $0x18] sm:$0xff]
    %v1941 = vld [vmem:[%s3 + $0x20] sm:$0xff]
    %v1942 = vld [vmem:[%s3 + $0x28] sm:$0xff]
    %v1943 = vld [vmem:[%s3 + $0x30] sm:$0xff]
    %v1944 = vld [vmem:[%s3 + $0x38] sm:$0xff]
    %v1945 = vld [vmem:[#allocation7 + $0xa0] sm:$0xff]
    %v1946 = vld [vmem:[#allocation7 + $0xa8] sm:$0xff]
    %v1947 = vld [vmem:[#allocation7 + $0xb0] sm:$0xff]
    %v1948 = vld [vmem:[#allocation7 + $0xb8] sm:$0xff]
    %v1949 = vld [vmem:[#allocation7 + $0xc0] sm:$0xff]
    %v1950 = vld [vmem:[#allocation7 + $0xc8] sm:$0xff]
    %v1951 = vld [vmem:[#allocation7 + $0xd0] sm:$0xff]
    %v1952 = vld [vmem:[#allocation7 + $0xd8] sm:$0xff]
    %v1954 = vsel %vm363, %v1929, 0
    %v1957 = vsel %vm363, %v1930, 0
    %v1960 = vsel %vm363, %v1931, 0
    %v1963 = vsel %vm363, %v1932, 0
    %v1966 = vsel %vm363, %v1933, 0
    %v1969 = vsel %vm363, %v1934, 0
    %v1972 = vsel %vm363, %v1935, 0
    %v1975 = vsel %vm363, %v1936, 0
    %1977 = vmatprep.subr.mxu0 0.0
    %1978 = vmatpush1.msra.mxu0 %v1949
    %1979 = vmatprep.subr.mxu0 0.0
    %1980 = vmatpush1.msra.mxu0 %v1950
    %1981 = vmatprep.subr.mxu0 0.0
    %1982 = vmatpush1.msra.mxu0 %v1951
    %1983 = vmatprep.subr.mxu0 0.0
    %1984 = vmatpush1.msra.mxu0 %v1952
    %1985 = vmatprep.subr.mxu0 0.0
    %1986 = vmatpush1.msra.mxu0 0.0
    %1987 = vmatprep.subr.mxu0 0.0
    %1988 = vmatpush1.msra.mxu0 0.0
    %1989 = vmatprep.subr.mxu0 0.0
    %1990 = vmatpush1.msra.mxu0 0.0
    %1991 = vmatprep.subr.mxu0 0.0
    %1992 = vmatpush1.msra.mxu0 0.0
    %1993 = vmatprep.subr.mxu0 0.0
    %1994 = vmatpush1.msra.mxu0 0.0
    %1995 = vmatprep.subr.mxu0 0.0
    %1996 = vmatpush1.msra.mxu0 0.0
    %1997 = vmatprep.subr.mxu0 0.0
    %1998 = vmatpush1.msra.mxu0 0.0
    %1999 = vmatprep.subr.mxu0 0.0
    %2000 = vmatpush1.msra.mxu0 0.0
    %2001 = vmatprep.subr.mxu0 0.0
    %2002 = vmatpush1.msra.mxu0 0.0
    %2003 = vmatprep.subr.mxu0 0.0
    %2004 = vmatpush1.msra.mxu0 0.0
    %2005 = vmatprep.subr.mxu0 0.0
    %2006 = vmatpush1.msra.mxu0 0.0
    %2007 = vmatprep.subr.mxu0 0.0
    %2008 = vmatpush1.msra.mxu0 0.0
    %2009 = vmatprep.subr.mxu0 0.0
    %2010 = vmatpush1.msra.mxu0 0.0
    %2011 = vmatprep.subr.mxu0 0.0
    %2012 = vmatpush1.msra.mxu0 0.0
    %2013 = vmatprep.subr.mxu0 0.0
    %2014 = vmatpush1.msra.mxu0 0.0
    %2015 = vmatprep.subr.mxu0 0.0
    %2016 = vmatpush1.msra.mxu0 0.0
    %2017 = vmatprep.subr.mxu0 0.0
    %2018 = vmatpush1.msra.mxu0 0.0
    %2019 = vmatprep.subr.mxu0 0.0
    %2020 = vmatpush1.msra.mxu0 0.0
    %2021 = vmatprep.subr.mxu0 0.0
    %2022 = vmatpush1.msra.mxu0 0.0
    %2023 = vmatprep.subr.mxu0 0.0
    %2024 = vmatpush1.msra.mxu0 0.0
    %2025 = vmatprep.subr.mxu0 0.0
    %2026 = vmatpush1.msra.mxu0 0.0
    %2027 = vmatprep.subr.mxu0 0.0
    %2028 = vmatpush1.msra.mxu0 0.0
    %2029 = vmatprep.subr.mxu0 0.0
    %2030 = vmatpush1.msra.mxu0 0.0
    %2031 = vmatprep.subr.mxu0 0.0
    %2032 = vmatpush1.msra.mxu0 0.0
    %2033 = vmatprep.subr.mxu0 0.0
    %2034 = vmatpush1.msra.mxu0 0.0
    %2035 = vmatprep.subr.mxu0 0.0
    %2036 = vmatpush1.msra.mxu0 0.0
    %2037 = vmatprep.subr.mxu0 0.0
    %2038 = vmatpush1.msra.mxu0 0.0
    %2039 = vmatprep.subr.mxu0 0.0
    %2040 = vmatpush1.msra.mxu0 0.0
    %2041 = vmatprep.mubr.f32.mxu0 0.0
    %2042 = vmatmul.mubr.f32.gmra.mrb[0].mxu0 %v1954
    %v2043 = vpop.f32.mrb[0].mxu0
    %v2044 = vadd.f32 0.0, %v2043
    %v2045 = vpop.f32.mrb[0].mxu0
    %2046 = vmatprep.mubr.f32.mxu0 0.0
    %2047 = vmatmul.mubr.f32.gmra.mrb[0].mxu0 %v1957
    %v2048 = vpop.f32.mrb[0].mxu0
    %v2049 = vadd.f32 0.0, %v2048
    %v2050 = vpop.f32.mrb[0].mxu0
    %2051 = vmatprep.mubr.f32.mxu0 0.0
    %2052 = vmatmul.mubr.f32.gmra.mrb[0].mxu0 %v1960
    %v2053 = vpop.f32.mrb[0].mxu0
    %v2054 = vadd.f32 0.0, %v2053
    %v2055 = vpop.f32.mrb[0].mxu0
    %2056 = vmatprep.mubr.f32.mxu0 0.0
    %2057 = vmatmul.mubr.f32.gmra.mrb[0].mxu0 %v1963
    %v2058 = vpop.f32.mrb[0].mxu0
    %v2059 = vadd.f32 0.0, %v2058
    %v2060 = vpop.f32.mrb[0].mxu0
    %2061 = vmatprep.mubr.f32.mxu0 0.0
    %2062 = vmatmul.mubr.f32.gmra.mrb[0].mxu0 %v1966
    %v2063 = vpop.f32.mrb[0].mxu0
    %v2064 = vadd.f32 0.0, %v2063
    %v2065 = vpop.f32.mrb[0].mxu0
    %2066 = vmatprep.mubr.f32.mxu0 0.0
    %2067 = vmatmul.mubr.f32.gmra.mrb[0].mxu0 %v1969
    %v2068 = vpop.f32.mrb[0].mxu0
    %v2069 = vadd.f32 0.0, %v2068
    %v2070 = vpop.f32.mrb[0].mxu0
    %2071 = vmatprep.mubr.f32.mxu0 0.0
    %2072 = vmatmul.mubr.f32.gmra.mrb[0].mxu0 %v1972
    %v2073 = vpop.f32.mrb[0].mxu0
    %v2074 = vadd.f32 0.0, %v2073
    %v2075 = vpop.f32.mrb[0].mxu0
    %2076 = vmatprep.mubr.f32.mxu0 0.0
    %2077 = vmatmul.mubr.f32.gmra.mrb[0].mxu0 %v1975
    %v2078 = vpop.f32.mrb[0].mxu0
    %v2079 = vadd.f32 0.0, %v2078
    %v2080 = vpop.f32.mrb[0].mxu0
    %2081 = vdwg.mxu0
    %v2083 = vsel %vm363, %v1913, 0
    %v2086 = vsel %vm363, %v1914, 0
    %v2089 = vsel %vm363, %v1915, 0
    %v2092 = vsel %vm363, %v1916, 0
    %v2095 = vsel %vm363, %v1917, 0
    %v2098 = vsel %vm363, %v1918, 0
    %v2101 = vsel %vm363, %v1919, 0
    %v2104 = vsel %vm363, %v1920, 0
    %2106 = vmatprep.subr.mxu0 0.0
    %2107 = vmatpush1.msra.mxu0 %v1945
    %2108 = vmatprep.subr.mxu0 0.0
    %2109 = vmatpush1.msra.mxu0 %v1946
    %2110 = vmatprep.subr.mxu0 0.0
    %2111 = vmatpush1.msra.mxu0 %v1947
    %2112 = vmatprep.subr.mxu0 0.0
    %2113 = vmatpush1.msra.mxu0 %v1948
    %2114 = vmatprep.subr.mxu0 0.0
    %2115 = vmatpush1.msra.mxu0 0.0
    %2116 = vmatprep.subr.mxu0 0.0
    %2117 = vmatpush1.msra.mxu0 0.0
    %2118 = vmatprep.subr.mxu0 0.0
    %2119 = vmatpush1.msra.mxu0 0.0
    %2120 = vmatprep.subr.mxu0 0.0
    %2121 = vmatpush1.msra.mxu0 0.0
    %2122 = vmatprep.subr.mxu0 0.0
    %2123 = vmatpush1.msra.mxu0 0.0
    %2124 = vmatprep.subr.mxu0 0.0
    %2125 = vmatpush1.msra.mxu0 0.0
    %2126 = vmatprep.subr.mxu0 0.0
    %2127 = vmatpush1.msra.mxu0 0.0
    %2128 = vmatprep.subr.mxu0 0.0
    %2129 = vmatpush1.msra.mxu0 0.0
    %2130 = vmatprep.subr.mxu0 0.0
    %2131 = vmatpush1.msra.mxu0 0.0
    %2132 = vmatprep.subr.mxu0 0.0
    %2133 = vmatpush1.msra.mxu0 0.0
    %2134 = vmatprep.subr.mxu0 0.0
    %2135 = vmatpush1.msra.mxu0 0.0
    %2136 = vmatprep.subr.mxu0 0.0
    %2137 = vmatpush1.msra.mxu0 0.0
    %2138 = vmatprep.subr.mxu0 0.0
    %2139 = vmatpush1.msra.mxu0 0.0
    %2140 = vmatprep.subr.mxu0 0.0
    %2141 = vmatpush1.msra.mxu0 0.0
    %2142 = vmatprep.subr.mxu0 0.0
    %2143 = vmatpush1.msra.mxu0 0.0
    %2144 = vmatprep.subr.mxu0 0.0
    %2145 = vmatpush1.msra.mxu0 0.0
    %2146 = vmatprep.subr.mxu0 0.0
    %2147 = vmatpush1.msra.mxu0 0.0
    %2148 = vmatprep.subr.mxu0 0.0
    %2149 = vmatpush1.msra.mxu0 0.0
    %2150 = vmatprep.subr.mxu0 0.0
    %2151 = vmatpush1.msra.mxu0 0.0
    %2152 = vmatprep.subr.mxu0 0.0
    %2153 = vmatpush1.msra.mxu0 0.0
    %2154 = vmatprep.subr.mxu0 0.0
    %2155 = vmatpush1.msra.mxu0 0.0
    %2156 = vmatprep.subr.mxu0 0.0
    %2157 = vmatpush1.msra.mxu0 0.0
    %2158 = vmatprep.subr.mxu0 0.0
    %2159 = vmatpush1.msra.mxu0 0.0
    %2160 = vmatprep.subr.mxu0 0.0
    %2161 = vmatpush1.msra.mxu0 0.0
    %2162 = vmatprep.subr.mxu0 0.0
    %2163 = vmatpush1.msra.mxu0 0.0
    %2164 = vmatprep.subr.mxu0 0.0
    %2165 = vmatpush1.msra.mxu0 0.0
    %2166 = vmatprep.subr.mxu0 0.0
    %2167 = vmatpush1.msra.mxu0 0.0
    %2168 = vmatprep.subr.mxu0 0.0
    %2169 = vmatpush1.msra.mxu0 0.0
    %2170 = vmatprep.mubr.f32.mxu0 0.0
    %2171 = vmatmul.mubr.f32.gmra.mrb[0].mxu0 %v2083
    %v2172 = vpop.f32.mrb[0].mxu0
    %v2173 = vadd.f32 %v2044, %v2172
    %v2174 = vpop.f32.mrb[0].mxu0
    %2175 = vmatprep.mubr.f32.mxu0 0.0
    %2176 = vmatmul.mubr.f32.gmra.mrb[0].mxu0 %v2086
    %v2177 = vpop.f32.mrb[0].mxu0
    %v2178 = vadd.f32 %v2049, %v2177
    %v2179 = vpop.f32.mrb[0].mxu0
    %2180 = vmatprep.mubr.f32.mxu0 0.0
    %2181 = vmatmul.mubr.f32.gmra.mrb[0].mxu0 %v2089
    %v2182 = vpop.f32.mrb[0].mxu0
    %v2183 = vadd.f32 %v2054, %v2182
    %v2184 = vpop.f32.mrb[0].mxu0
    %2185 = vmatprep.mubr.f32.mxu0 0.0
    %2186 = vmatmul.mubr.f32.gmra.mrb[0].mxu0 %v2092
    %v2187 = vpop.f32.mrb[0].mxu0
    %v2188 = vadd.f32 %v2059, %v2187
    %v2189 = vpop.f32.mrb[0].mxu0
    %2190 = vmatprep.mubr.f32.mxu0 0.0
    %2191 = vmatmul.mubr.f32.gmra.mrb[0].mxu0 %v2095
    %v2192 = vpop.f32.mrb[0].mxu0
    %v2193 = vadd.f32 %v2064, %v2192
    %v2194 = vpop.f32.mrb[0].mxu0
    %2195 = vmatprep.mubr.f32.mxu0 0.0
    %2196 = vmatmul.mubr.f32.gmra.mrb[0].mxu0 %v2098
    %v2197 = vpop.f32.mrb[0].mxu0
    %v2198 = vadd.f32 %v2069, %v2197
    %v2199 = vpop.f32.mrb[0].mxu0
    %2200 = vmatprep.mubr.f32.mxu0 0.0
    %2201 = vmatmul.mubr.f32.gmra.mrb[0].mxu0 %v2101
    %v2202 = vpop.f32.mrb[0].mxu0
    %v2203 = vadd.f32 %v2074, %v2202
    %v2204 = vpop.f32.mrb[0].mxu0
    %2205 = vmatprep.mubr.f32.mxu0 0.0
    %2206 = vmatmul.mubr.f32.gmra.mrb[0].mxu0 %v2104
    %v2207 = vpop.f32.mrb[0].mxu0
    %v2208 = vadd.f32 %v2079, %v2207
    %v2209 = vpop.f32.mrb[0].mxu0
    %2210 = vdwg.mxu0
    %v2211 = vld [vmem:[#allocation7 + $0xe0] sm:$0x1]
    %v2212 = vlaneseq
    %v2213 = vshrl.u32 %v2212, 7
    %v2214 = vsub.s32 0, %v2213
    %v2215 = vrot.slane %v2211, %v2214
    %v2216 = vmul.f32 %v1937, %v2215
    %v2217 = vmul.f32 %v1938, %v2215
    %v2218 = vmul.f32 %v1939, %v2215
    %v2219 = vmul.f32 %v1940, %v2215
    %v2220 = vmul.f32 %v1941, %v2215
    %v2221 = vmul.f32 %v1942, %v2215
    %v2222 = vmul.f32 %v1943, %v2215
    %v2223 = vmul.f32 %v1944, %v2215
    %vm2224 = vcmask 15360
    %v2225 = vsel %vm2224, %v2216, 0.0
    %2226 = vadd.xlane.f32.xlu0 %v2225
    %v2227 = vpop.xlane.xlu0 %2226
    %v2228 = vsel %vm2224, %v2217, 0.0
    %2229 = vadd.xlane.f32.xlu0 %v2228
    %v2230 = vpop.xlane.xlu0 %2229
    %v2231 = vsel %vm2224, %v2218, 0.0
    %2232 = vadd.xlane.f32.xlu0 %v2231
    %v2233 = vpop.xlane.xlu0 %2232
    %v2234 = vsel %vm2224, %v2219, 0.0
    %2235 = vadd.xlane.f32.xlu0 %v2234
    %v2236 = vpop.xlane.xlu0 %2235
    %v2237 = vsel %vm2224, %v2220, 0.0
    %2238 = vadd.xlane.f32.xlu0 %v2237
    %v2239 = vpop.xlane.xlu0 %2238
    %v2240 = vsel %vm2224, %v2221, 0.0
    %2241 = vadd.xlane.f32.xlu0 %v2240
    %v2242 = vpop.xlane.xlu0 %2241
    %v2243 = vsel %vm2224, %v2222, 0.0
    %2244 = vadd.xlane.f32.xlu0 %v2243
    %v2245 = vpop.xlane.xlu0 %2244
    %v2246 = vsel %vm2224, %v2223, 0.0
    %2247 = vadd.xlane.f32.xlu0 %v2246
    %v2248 = vpop.xlane.xlu0 %2247
    %v2249 = vadd.f32 %v2173, %v2227
    %v2250 = vadd.f32 %v2178, %v2230
    %v2251 = vadd.f32 %v2183, %v2233
    %v2252 = vadd.f32 %v2188, %v2236
    %v2253 = vadd.f32 %v2193, %v2239
    %v2254 = vadd.f32 %v2198, %v2242
    %v2255 = vadd.f32 %v2203, %v2245
    %v2256 = vadd.f32 %v2208, %v2248
    %2258 = vrot.lane.b32.xlu0 %v2215, 3
    %v2259 = vpop.permute.xlu0 %2258
    %v2261 = vadd.f32 %v2249, %v2259
    %v2262 = vadd.f32 %v2250, %v2259
    %v2263 = vadd.f32 %v2251, %v2259
    %v2264 = vadd.f32 %v2252, %v2259
    %v2265 = vadd.f32 %v2253, %v2259
    %v2266 = vadd.f32 %v2254, %v2259
    %v2267 = vadd.f32 %v2255, %v2259
    %v2268 = vadd.f32 %v2256, %v2259
    %2277 = vrot.lane.b32.xlu0 %v1921, 32
    %v2278 = vpop.permute.xlu0 %2277
    %2279 = vrot.lane.b32.xlu0 %v1922, 32
    %v2280 = vpop.permute.xlu0 %2279
    %2281 = vrot.lane.b32.xlu0 %v1923, 32
    %v2282 = vpop.permute.xlu0 %2281
    %2283 = vrot.lane.b32.xlu0 %v1924, 32
    %v2284 = vpop.permute.xlu0 %2283
    %2285 = vrot.lane.b32.xlu0 %v1925, 32
    %v2286 = vpop.permute.xlu0 %2285
    %2287 = vrot.lane.b32.xlu0 %v1926, 32
    %v2288 = vpop.permute.xlu0 %2287
    %2289 = vrot.lane.b32.xlu0 %v1927, 32
    %v2290 = vpop.permute.xlu0 %2289
    %2291 = vrot.lane.b32.xlu0 %v1928, 32
    %v2292 = vpop.permute.xlu0 %2291
    %2309 = vrot.lane.b32.xlu0 %v2173, 64
    %v2310 = vpop.permute.xlu0 %2309
    %2311 = vrot.lane.b32.xlu0 %v2178, 64
    %v2312 = vpop.permute.xlu0 %2311
    %2313 = vrot.lane.b32.xlu0 %v2183, 64
    %v2314 = vpop.permute.xlu0 %2313
    %2315 = vrot.lane.b32.xlu0 %v2188, 64
    %v2316 = vpop.permute.xlu0 %2315
    %2317 = vrot.lane.b32.xlu0 %v2193, 64
    %v2318 = vpop.permute.xlu0 %2317
    %2319 = vrot.lane.b32.xlu0 %v2198, 64
    %v2320 = vpop.permute.xlu0 %2319
    %2321 = vrot.lane.b32.xlu0 %v2203, 64
    %v2322 = vpop.permute.xlu0 %2321
    %2323 = vrot.lane.b32.xlu0 %v2208, 64
    %v2324 = vpop.permute.xlu0 %2323
    %2341 = vrot.lane.b32.xlu0 %v2261, 64
    %v2342 = vpop.permute.xlu0 %2341
    %2343 = vrot.lane.b32.xlu0 %v2262, 64
    %v2344 = vpop.permute.xlu0 %2343
    %2345 = vrot.lane.b32.xlu0 %v2263, 64
    %v2346 = vpop.permute.xlu0 %2345
    %2347 = vrot.lane.b32.xlu0 %v2264, 64
    %v2348 = vpop.permute.xlu0 %2347
    %2349 = vrot.lane.b32.xlu0 %v2265, 64
    %v2350 = vpop.permute.xlu0 %2349
    %2351 = vrot.lane.b32.xlu0 %v2266, 64
    %v2352 = vpop.permute.xlu0 %2351
    %2353 = vrot.lane.b32.xlu0 %v2267, 64
    %v2354 = vpop.permute.xlu0 %2353
    %2355 = vrot.lane.b32.xlu0 %v2268, 64
    %v2356 = vpop.permute.xlu0 %2355
    %v2365 = vsel %vm363, %v1913, %v2278
    %v2366 = vsel %vm363, %v1914, %v2280
    %v2367 = vsel %vm363, %v1915, %v2282
    %v2368 = vsel %vm363, %v1916, %v2284
    %v2369 = vsel %vm363, %v1917, %v2286
    %v2370 = vsel %vm363, %v1918, %v2288
    %v2371 = vsel %vm363, %v1919, %v2290
    %v2372 = vsel %vm363, %v1920, %v2292
    %v2373 = vsel %vm225, %v2365, %v2310
    %v2374 = vsel %vm225, %v2366, %v2312
    %v2375 = vsel %vm225, %v2367, %v2314
    %v2376 = vsel %vm225, %v2368, %v2316
    %v2377 = vsel %vm225, %v2369, %v2318
    %v2378 = vsel %vm225, %v2370, %v2320
    %v2379 = vsel %vm225, %v2371, %v2322
    %v2380 = vsel %vm225, %v2372, %v2324
    %vm2381 = vcmask 564224
    %v2382 = vsel %vm2381, %v2373, %v2342
    %v2383 = vsel %vm2381, %v2374, %v2344
    %v2384 = vsel %vm2381, %v2375, %v2346
    %v2385 = vsel %vm2381, %v2376, %v2348
    %v2386 = vsel %vm2381, %v2377, %v2350
    %v2387 = vsel %vm2381, %v2378, %v2352
    %v2388 = vsel %vm2381, %v2379, %v2354
    %v2389 = vsel %vm2381, %v2380, %v2356
    %vm2390 = vcmask 572416
    %v2391 = vsel %vm2390, %v2382, 0.0
    %v2392 = vsel %vm2390, %v2383, 0.0
    %v2393 = vsel %vm2390, %v2384, 0.0
    %v2394 = vsel %vm2390, %v2385, 0.0
    %v2395 = vsel %vm2390, %v2386, 0.0
    %v2396 = vsel %vm2390, %v2387, 0.0
    %v2397 = vsel %vm2390, %v2388, 0.0
    %v2398 = vsel %vm2390, %v2389, 0.0
    %2399 = vst [vmem:[#allocation12] sm:$0xff] %v2391
    %2400 = vst [vmem:[#allocation12 + $0x8] sm:$0xff] %v2392
    %2401 = vst [vmem:[#allocation12 + $0x10] sm:$0xff] %v2393
    %2402 = vst [vmem:[#allocation12 + $0x18] sm:$0xff] %v2394
    %2403 = vst [vmem:[#allocation12 + $0x20] sm:$0xff] %v2395
    %2404 = vst [vmem:[#allocation12 + $0x28] sm:$0xff] %v2396
    %2405 = vst [vmem:[#allocation12 + $0x30] sm:$0xff] %v2397
    %2406 = vst [vmem:[#allocation12 + $0x38] sm:$0xff] %v2398
    // Predicated region
    $region30: #{tpu_custom_call.1} parent=1 // pred_check
      _
    $region31: #{tpu_custom_call.1} parent=1 // pred_check_branch
      %2408 = sbr.rel (0) target = $region33
    $region32: #{tpu_custom_call.1} parent=1 // pred_region
      %s2410 = ssub.s32 1024, 1024
      %2411 = vsyncadd [#allocation9], %s2410
      %s2412 = sshll.u32 [#allocation12], 4
      %s2413 = int_to_ptr.vmem [resolvable:$true] %s2412
      %2418 = dma.vmem_to_hbm [thread:$0]  %s2413, 1024, %s4, [#allocation9], 128, 128, 8
    $region33: #{tpu_custom_call.1} parent=1 // pred_fallthru
      _
    // Predicated region
    $region34: #{tpu_custom_call.1} parent=1 // pred_check
      _
    $region35: #{tpu_custom_call.1} parent=1 // pred_check_branch
      %2420 = sbr.rel (0) target = $region37
    $region36: #{tpu_custom_call.1} parent=1 // pred_region
      %2421 = dma.done [#allocation9], 1024
    $region37: #{tpu_custom_call.1} parent=1 // pred_fallthru
      _
    %2422 = vsyncpa [#allocation8], 1
    %2423 = vsyncpa [#allocation11], 1
    %2424 = vsyncpa [#allocation9], 1

</llo_original>
